<compile_context>
chip_gen: v6e
topology: v6e:2x2x1
jax: 0.10.0
libtpu: 0.0.40
codegen_flags: <defaults>
</compile_context>

<pallas_src>
import functools

import jax
import jax.numpy as jnp
from jax.experimental import pallas as pl
from jax.experimental.pallas import tpu as pltpu


# ----------------------------------------------------------------------------
# Pallas kernels
# ----------------------------------------------------------------------------
def _matmul_bn_kernel(x_ref, w_ref, b_ref, o_ref, *, activation):
    """One (1, Cin, TM) pixel slab: BN-folded 1x1-conv as a channel matmul.

    x_ref : (1, Cin, TM)  pixels on lanes, channels on sublanes
    w_ref : (Cout, Cin)   BN-folded conv weight (PyTorch (Cout, Cin) layout)
    b_ref : (Cout, 1)     BN-folded bias
    o_ref : (1, Cout, TM)
    """
    x = x_ref[0].astype(jnp.float32)                                  # (Cin, TM)
    y = jnp.dot(w_ref[...], x, preferred_element_type=jnp.float32) + b_ref[...]
    if activation == "hardswish":
        y = y * jnp.clip(y + 3.0, 0.0, 6.0) * (1.0 / 6.0)
    o_ref[0] = y.astype(o_ref.dtype)                                  # lane-dense store


def _fuse_sum_hswish_kernel(t_ref, o_ref):
    """Sum the T fuse terms of one pixel slab and apply hard-swish.

    t_ref : (T, 1, C, TM) stacked branch contributions
    o_ref : (1, C, TM)
    """
    s = jnp.sum(t_ref[...].astype(jnp.float32), axis=0)               # (1, C, TM)
    o_ref[...] = (s * jnp.clip(s + 3.0, 0.0, 6.0) * (1.0 / 6.0)).astype(o_ref.dtype)


def _pick_tile(p):
    """Pixel tile: biggest multiple of 128 (<= 2048) dividing P, else full P."""
    if p % 128 != 0:
        return p                         # full-extent block is always legal
    for t in (2048, 1024, 512, 256, 128):
        if t <= p and p % t == 0:
            return t
    return p


# ----------------------------------------------------------------------------
# pallas_call wrappers
# ----------------------------------------------------------------------------
def _channel_matmul(x, w, b, *, activation=None):
    """x: (N, Cin, P) -> (N, Cout, P).  1x1 conv (+ folded BN, opt. HardSwish)."""
    N, Cin, P = x.shape
    Cout = w.shape[0]
    TM = _pick_tile(P)
    grid = (N, P // TM)
    dtype_bytes = jnp.dtype(x.dtype).itemsize
    cost = pl.CostEstimate(
        flops=2 * N * P * Cin * Cout,
        transcendentals=0,
        bytes_accessed=N * P * (Cin + Cout) * dtype_bytes + 4 * Cin * Cout,
    )
    kernel = functools.partial(_matmul_bn_kernel, activation=activation)
    return pl.pallas_call(
        kernel,
        out_shape=jax.ShapeDtypeStruct((N, Cout, P), x.dtype),
        grid_spec=pltpu.PrefetchScalarGridSpec(
            num_scalar_prefetch=0,
            grid=grid,
            in_specs=[
                pl.BlockSpec((1, Cin, TM), lambda n, t: (n, 0, t)),   # pixel slab
                pl.BlockSpec((Cout, Cin), lambda n, t: (0, 0)),       # weight
                pl.BlockSpec((Cout, 1), lambda n, t: (0, 0)),         # bias
            ],
            out_specs=pl.BlockSpec((1, Cout, TM), lambda n, t: (n, 0, t)),
        ),
        compiler_params=pltpu.CompilerParams(
            dimension_semantics=("parallel", "parallel")),
        cost_estimate=cost,
    )(x, w, b)


def _fuse_sum_hardswish(terms):
    """terms: list of (N, C, P) branch contributions -> hard_swish(sum(terms))."""
    t = jnp.stack(terms, axis=0)                                      # (T, N, C, P)
    T, N, C, P = t.shape
    TM = _pick_tile(P)
    grid = (N, P // TM)
    dtype_bytes = jnp.dtype(t.dtype).itemsize
    cost = pl.CostEstimate(
        flops=(T + 3) * N * C * P,
        transcendentals=0,
        bytes_accessed=(T + 1) * N * C * P * dtype_bytes,
    )
    return pl.pallas_call(
        _fuse_sum_hswish_kernel,
        out_shape=jax.ShapeDtypeStruct((N, C, P), terms[0].dtype),
        grid_spec=pltpu.PrefetchScalarGridSpec(
            num_scalar_prefetch=0,
            grid=grid,
            in_specs=[pl.BlockSpec((T, 1, C, TM), lambda n, p: (0, n, 0, p))],
            out_specs=pl.BlockSpec((1, C, TM), lambda n, p: (n, 0, p)),
        ),
        compiler_params=pltpu.CompilerParams(
            dimension_semantics=("parallel", "parallel")),
        cost_estimate=cost,
    )(t)


# ----------------------------------------------------------------------------
# Layout plumbing (zero-FLOP index replication, kept in the JAX wrapper)
# ----------------------------------------------------------------------------
def _nearest_upsample(x_nchw, s):
    # TODO(synk): nn.Upsample(mode='nearest') is pure index replication; kept as
    # wrapper-side layout plumbing rather than an in-kernel lane shuffle.
    return jnp.repeat(jnp.repeat(x_nchw, s, axis=2), s, axis=3)


def _im2col_3x3_s2(x_nchw):
    """3x3 / stride-2 / pad-1 patches: (N,C,H,W) -> (N, C*9, Ho*Wo), tap order ky*3+kx."""
    # TODO(synk): im2col for the stride-2 3x3 fuse convs is layout plumbing done in
    # the wrapper; the actual conv FLOPs run as a Pallas channel matmul on the MXU.
    N, C, H, W = x_nchw.shape
    Ho, Wo = (H + 1) // 2, (W + 1) // 2
    xp = jnp.pad(x_nchw, ((0, 0), (0, 0), (1, 1), (1, 1)))
    taps = []
    for ky in range(3):
        for kx in range(3):
            taps.append(xp[:, :, ky:ky + 2 * Ho - 1:2, kx:kx + 2 * Wo - 1:2])
    patches = jnp.stack(taps, axis=2)                                 # (N, C, 9, Ho, Wo)
    return patches.reshape(N, C * 9, Ho * Wo), (Ho, Wo)


# ----------------------------------------------------------------------------
# Parameter handling (fold inference-mode BatchNorm into the preceding conv)
# ----------------------------------------------------------------------------
def _fold_bn(w2d, bn_stats, eps=1e-5):
    gamma, beta, mean, var = bn_stats
    scale = gamma / jnp.sqrt(var + eps)
    return w2d * scale[:, None], (beta - mean * scale).reshape(-1, 1)


def fold_params(raw):
    folded = {"fuse": {}}
    for (i, j), p in raw["fuse"].items():
        if j > i:                                   # 1x1 conv + BN
            w, b = _fold_bn(p["w"], p["bn"])
            folded["fuse"][(i, j)] = {"w": w, "b": b}
        else:                                       # chain of 3x3 s2 convs + BN
            convs = []
            for pk in p["convs"]:
                cout = pk["w"].shape[0]
                w, b = _fold_bn(pk["w"].reshape(cout, -1), pk["bn"])
                convs.append({"w": w, "b": b})
            folded["fuse"][(i, j)] = {"convs": convs}
    return folded


def make_params(key, channels):
    """Random fuse-layer parameters matching HighResolutionModule._make_fuse_layers."""
    nb = len(channels)
    kiter = iter(jax.random.split(key, 256))

    def bn_stats(c):
        gamma = 1.0 + 0.05 * jax.random.normal(next(kiter), (c,), jnp.float32)
        beta = 0.02 * jnp.arange(c, dtype=jnp.float32)
        mean = 0.01 * jax.random.normal(next(kiter), (c,), jnp.float32)
        var = jnp.abs(1.0 + 0.1 * jax.random.normal(next(kiter), (c,), jnp.float32))
        return (gamma, beta, mean, var)

    raw = {"fuse": {}}
    for i in range(nb):
        for j in range(nb):
            if j > i:
                w = 0.1 * jax.random.normal(next(kiter), (channels[i], channels[j]),
                                            jnp.float32)
                raw["fuse"][(i, j)] = {"w": w, "bn": bn_stats(channels[i])}
            elif j < i:
                convs = []
                for k in range(i - j):
                    cout = channels[i] if k == i - j - 1 else channels[j]
                    w = 0.1 * jax.random.normal(next(kiter),
                                                (cout, channels[j], 3, 3), jnp.float32)
                    convs.append({"w": w, "bn": bn_stats(cout)})
                raw["fuse"][(i, j)] = {"convs": convs}
    return raw


# ----------------------------------------------------------------------------
# HighResolutionModule forward (fuse stage), Pallas-backed
# ----------------------------------------------------------------------------
def hrm_forward(xs, folded_params, *, multi_scale_output=True):
    """xs: list of NCHW arrays (highest resolution first), one per branch."""
    nb = len(xs)
    # TODO(synk): branch residual blocks (self.branches[i]) are built from an
    # externally supplied `block` class that is not part of this module's code;
    # they are treated as identity here.
    if nb == 1:
        return [xs[0]]

    shapes = [x.shape for x in xs]
    flats = [x.reshape(s[0], s[1], s[2] * s[3]) for x, s in zip(xs, shapes)]
    n_out = nb if multi_scale_output else 1

    outs = []
    for i in range(n_out):
        N, Ci, Hi, Wi = shapes[i]
        terms = []
        for j in range(nb):
            if j == i:
                terms.append(flats[j])
            elif j > i:                                     # low-res -> high-res path
                p = folded_params["fuse"][(i, j)]
                z = _channel_matmul(flats[j], p["w"], p["b"])        # (N, Ci, Hj*Wj)
                z = z.reshape(N, Ci, shapes[j][2], shapes[j][3])
                z = _nearest_upsample(z, 2 ** (j - i))
                terms.append(z.reshape(N, Ci, Hi * Wi))
            else:                                           # high-res -> low-res path
                cur = xs[j]
                for k in range(i - j):
                    pk = folded_params["fuse"][(i, j)]["convs"][k]
                    patches, (ho, wo) = _im2col_3x3_s2(cur)          # (N, Cin*9, ho*wo)
                    act = "hardswish" if k < i - j - 1 else None
                    z = _channel_matmul(patches, pk["w"], pk["b"], activation=act)
                    cur = z.reshape(N, z.shape[1], ho, wo)
                terms.append(cur.reshape(N, Ci, Hi * Wi))
        outs.append(_fuse_sum_hardswish(terms).reshape(N, Ci, Hi, Wi))
    return outs


# ----------------------------------------------------------------------------
# Pure-JAX reference (unfolded BN, lax.conv) for correctness checking
# ----------------------------------------------------------------------------
def hrm_reference(xs, raw, *, multi_scale_output=True, eps=1e-5):
    nb = len(xs)
    if nb == 1:
        return [xs[0]]

    def bn(z, st):
        g, b, m, v = st
        inv = g / jnp.sqrt(v + eps)
        return (z - m[None, :, None, None]) * inv[None, :, None, None] \
            + b[None, :, None, None]

    def hswish(z):
        return z * jnp.clip(z + 3.0, 0.0, 6.0) / 6.0

    n_out = nb if multi_scale_output else 1
    outs = []
    for i in range(n_out):
        y = None
        for j in range(nb):
            if j == i:
                t = xs[j]
            elif j > i:
                p = raw["fuse"][(i, j)]
                z = jnp.einsum("oc,nchw->nohw", p["w"], xs[j],
                               precision=jax.lax.Precision.HIGHEST)
                t = _nearest_upsample(bn(z, p["bn"]), 2 ** (j - i))
            else:
                cur = xs[j]
                for k in range(i - j):
                    pk = raw["fuse"][(i, j)]["convs"][k]
                    z = jax.lax.conv_general_dilated(
                        cur, pk["w"], window_strides=(2, 2),
                        padding=((1, 1), (1, 1)),
                        dimension_numbers=("NCHW", "OIHW", "NCHW"),
                        precision=jax.lax.Precision.HIGHEST)
                    z = bn(z, pk["bn"])
                    if k < i - j - 1:
                        z = hswish(z)
                    cur = z
                t = cur
            y = t if y is None else y + t
        outs.append(hswish(y))
    return outs


# ----------------------------------------------------------------------------
if __name__ == "__main__":
    key = jax.random.PRNGKey(0)
    k0, k1, k2, kp = jax.random.split(key, 4)

    N = 2
    channels = (16, 32, 64)          # 3 branches: 16x16, 8x8, 4x4 spatial
    H = W = 16
    xs = [
        jax.random.normal(k0, (N, channels[0], H, W), jnp.float32),
        jax.random.normal(k1, (N, channels[1], H // 2, W // 2), jnp.float32),
        jax.random.normal(k2, (N, channels[2], H // 4, W // 4), jnp.float32),
    ]

    raw = make_params(kp, channels)
    folded = fold_params(raw)

    fwd = jax.jit(lambda *xin: hrm_forward(list(xin), folded))
    outs = [jax.block_until_ready(o) for o in fwd(*xs)]
    refs = hrm_reference(xs, raw)

    assert len(outs) == len(xs)
    for o, r in zip(outs, refs):
        assert o.shape == r.shape
        assert bool(jnp.allclose(o, r, atol=1e-3, rtol=1e-3)), \
            "Pallas fuse output mismatch vs pure-JAX reference"

    print("KERNEL_OK")
</pallas_src>

<mosaic_0001>
module attributes {stable_mosaic.version = 11 : i64} {
  func.func @_matmul_bn_kernel(%arg0: i32, %arg1: i32, %arg2: memref<1x144x64xf32, #tpu.memory_space<vmem>>, %arg3: memref<16x144xf32, #tpu.memory_space<vmem>>, %arg4: memref<16x1xf32, #tpu.memory_space<vmem>>, %arg5: memref<1x16x64xf32, #tpu.memory_space<vmem>>) attributes {dimension_semantics = [#tpu.dimension_semantics<parallel>, #tpu.dimension_semantics<parallel>], iteration_bounds = array<i64: 2, 1>, scalar_prefetch = 0 : i64, scratch_operands = 0 : i64, tpu.core_type = #tpu.core_type<tc>, window_params = [{transform_indices = @transform_0, window_bounds = array<i64: 1, 144, 64>}, {pipeline_mode = #tpu.pipeline_mode<synchronous>, transform_indices = @transform_1, window_bounds = array<i64: 16, 144>}, {pipeline_mode = #tpu.pipeline_mode<synchronous>, transform_indices = @transform_2, window_bounds = array<i64: 16, 1>}, {transform_indices = @transform_3, window_bounds = array<i64: 1, 16, 64>}]} {
    %c0 = arith.constant 0 : index
    %c0_0 = arith.constant 0 : index
    %c0_1 = arith.constant 0 : index
    %0 = vector.load %arg2[%c0, %c0_0, %c0_1] : memref<1x144x64xf32, #tpu.memory_space<vmem>>, vector<1x144x64xf32>
    %1 = vector.shape_cast %0 : vector<1x144x64xf32> to vector<144x64xf32>
    %c0_2 = arith.constant 0 : index
    %c0_3 = arith.constant 0 : index
    %2 = vector.load %arg3[%c0_2, %c0_3] : memref<16x144xf32, #tpu.memory_space<vmem>>, vector<16x144xf32>
    %cst = arith.constant dense<0.000000e+00> : vector<16x64xf32>
    %3 = tpu.matmul %2, %1, %cst {dimension_numbers = #tpu.dot_dimension_numbers<[1], [0], [0], [1], [0, 0, 1, 1], [], []>} : vector<16x144xf32>, vector<144x64xf32>, vector<16x64xf32> -> vector<16x64xf32>
    %c0_4 = arith.constant 0 : index
    %c0_5 = arith.constant 0 : index
    %4 = vector.load %arg4[%c0_4, %c0_5] : memref<16x1xf32, #tpu.memory_space<vmem>>, vector<16x1xf32>
    %5 = vector.broadcast %4 : vector<16x1xf32> to vector<16x64xf32>
    %6 = arith.addf %3, %5 : vector<16x64xf32>
    %cst_6 = arith.constant 3.000000e+00 : f32
    %7 = vector.broadcast %cst_6 : f32 to vector<16x64xf32>
    %8 = arith.addf %6, %7 : vector<16x64xf32>
    %cst_7 = arith.constant 0.000000e+00 : f32
    %cst_8 = arith.constant 6.000000e+00 : f32
    %9 = vector.broadcast %cst_7 : f32 to vector<16x64xf32>
    %10 = arith.maximumf %9, %8 : vector<16x64xf32>
    %11 = vector.broadcast %cst_8 : f32 to vector<16x64xf32>
    %12 = arith.minimumf %11, %10 : vector<16x64xf32>
    %13 = arith.mulf %6, %12 : vector<16x64xf32>
    %cst_9 = arith.constant 0.166666672 : f32
    %14 = vector.broadcast %cst_9 : f32 to vector<16x64xf32>
    %15 = arith.mulf %13, %14 : vector<16x64xf32>
    %c0_10 = arith.constant 0 : index
    %c0_11 = arith.constant 0 : index
    %c0_12 = arith.constant 0 : index
    %16 = vector.load %arg5[%c0_10, %c0_11, %c0_12] : memref<1x16x64xf32, #tpu.memory_space<vmem>>, vector<1x16x64xf32>
    %17 = vector.shape_cast %16 : vector<1x16x64xf32> to vector<16x64xf32>
    %18 = vector.shape_cast %15 : vector<16x64xf32> to vector<1x16x64xf32>
    tpu.vector_store %arg5[%c0_10, %c0_11, %c0_12], %18 {strides = array<i32>} : memref<1x16x64xf32, #tpu.memory_space<vmem>>, vector<1x16x64xf32>,
    return
  }
  func.func @transform_0(%arg0: i32, %arg1: i32) -> (i32, i32, i32) {
    %c0_i32 = arith.constant 0 : i32
    %c0_i32_0 = arith.constant 0 : i32
    return %arg0, %c0_i32, %arg1 : i32, i32, i32
  }
  func.func @transform_1(%arg0: i32, %arg1: i32) -> (i32, i32) {
    %c0_i32 = arith.constant 0 : i32
    %c0_i32_0 = arith.constant 0 : i32
    %c0_i32_1 = arith.constant 0 : i32
    return %c0_i32, %c0_i32_0 : i32, i32
  }
  func.func @transform_2(%arg0: i32, %arg1: i32) -> (i32, i32) {
    %c0_i32 = arith.constant 0 : i32
    %c0_i32_0 = arith.constant 0 : i32
    %c0_i32_1 = arith.constant 0 : i32
    return %c0_i32, %c0_i32_0 : i32, i32
  }
  func.func @transform_3(%arg0: i32, %arg1: i32) -> (i32, i32, i32) {
    %c0_i32 = arith.constant 0 : i32
    %c0_i32_0 = arith.constant 0 : i32
    return %arg0, %c0_i32, %arg1 : i32, i32, i32
  }
}

module attributes {stable_mosaic.version = 11 : i64} {
  func.func @_matmul_bn_kernel(%arg0: i32, %arg1: i32, %arg2: memref<1x144x16xf32, #tpu.memory_space<vmem>>, %arg3: memref<64x144xf32, #tpu.memory_space<vmem>>, %arg4: memref<64x1xf32, #tpu.memory_space<vmem>>, %arg5: memref<1x64x16xf32, #tpu.memory_space<vmem>>) attributes {dimension_semantics = [#tpu.dimension_semantics<parallel>, #tpu.dimension_semantics<parallel>], iteration_bounds = array<i64: 2, 1>, scalar_prefetch = 0 : i64, scratch_operands = 0 : i64, tpu.core_type = #tpu.core_type<tc>, window_params = [{transform_indices = @transform_0, window_bounds = array<i64: 1, 144, 16>}, {pipeline_mode = #tpu.pipeline_mode<synchronous>, transform_indices = @transform_1, window_bounds = array<i64: 64, 144>}, {pipeline_mode = #tpu.pipeline_mode<synchronous>, transform_indices = @transform_2, window_bounds = array<i64: 64, 1>}, {transform_indices = @transform_3, window_bounds = array<i64: 1, 64, 16>}]} {
    %c0 = arith.constant 0 : index
    %c0_0 = arith.constant 0 : index
    %c0_1 = arith.constant 0 : index
    %0 = vector.load %arg2[%c0, %c0_0, %c0_1] : memref<1x144x16xf32, #tpu.memory_space<vmem>>, vector<1x144x16xf32>
    %1 = vector.shape_cast %0 : vector<1x144x16xf32> to vector<144x16xf32>
    %c0_2 = arith.constant 0 : index
    %c0_3 = arith.constant 0 : index
    %2 = vector.load %arg3[%c0_2, %c0_3] : memref<64x144xf32, #tpu.memory_space<vmem>>, vector<64x144xf32>
    %cst = arith.constant dense<0.000000e+00> : vector<64x16xf32>
    %3 = tpu.matmul %2, %1, %cst {dimension_numbers = #tpu.dot_dimension_numbers<[1], [0], [0], [1], [0, 0, 1, 1], [], []>} : vector<64x144xf32>, vector<144x16xf32>, vector<64x16xf32> -> vector<64x16xf32>
    %c0_4 = arith.constant 0 : index
    %c0_5 = arith.constant 0 : index
    %4 = vector.load %arg4[%c0_4, %c0_5] : memref<64x1xf32, #tpu.memory_space<vmem>>, vector<64x1xf32>
    %5 = vector.broadcast %4 : vector<64x1xf32> to vector<64x16xf32>
    %6 = arith.addf %3, %5 : vector<64x16xf32>
    %c0_6 = arith.constant 0 : index
    %c0_7 = arith.constant 0 : index
    %c0_8 = arith.constant 0 : index
    %7 = vector.load %arg5[%c0_6, %c0_7, %c0_8] : memref<1x64x16xf32, #tpu.memory_space<vmem>>, vector<1x64x16xf32>
    %8 = vector.shape_cast %7 : vector<1x64x16xf32> to vector<64x16xf32>
    %9 = vector.shape_cast %6 : vector<64x16xf32> to vector<1x64x16xf32>
    tpu.vector_store %arg5[%c0_6, %c0_7, %c0_8], %9 {strides = array<i32>} : memref<1x64x16xf32, #tpu.memory_space<vmem>>, vector<1x64x16xf32>,
    return
  }
  func.func @transform_0(%arg0: i32, %arg1: i32) -> (i32, i32, i32) {
    %c0_i32 = arith.constant 0 : i32
    %c0_i32_0 = arith.constant 0 : i32
    return %arg0, %c0_i32, %arg1 : i32, i32, i32
  }
  func.func @transform_1(%arg0: i32, %arg1: i32) -> (i32, i32) {
    %c0_i32 = arith.constant 0 : i32
    %c0_i32_0 = arith.constant 0 : i32
    %c0_i32_1 = arith.constant 0 : i32
    return %c0_i32, %c0_i32_0 : i32, i32
  }
  func.func @transform_2(%arg0: i32, %arg1: i32) -> (i32, i32) {
    %c0_i32 = arith.constant 0 : i32
    %c0_i32_0 = arith.constant 0 : i32
    %c0_i32_1 = arith.constant 0 : i32
    return %c0_i32, %c0_i32_0 : i32, i32
  }
  func.func @transform_3(%arg0: i32, %arg1: i32) -> (i32, i32, i32) {
    %c0_i32 = arith.constant 0 : i32
    %c0_i32_0 = arith.constant 0 : i32
    return %arg0, %c0_i32, %arg1 : i32, i32, i32
  }
}

module attributes {stable_mosaic.version = 11 : i64} {
  func.func @_matmul_bn_kernel(%arg0: i32, %arg1: i32, %arg2: memref<1x288x16xf32, #tpu.memory_space<vmem>>, %arg3: memref<64x288xf32, #tpu.memory_space<vmem>>, %arg4: memref<64x1xf32, #tpu.memory_space<vmem>>, %arg5: memref<1x64x16xf32, #tpu.memory_space<vmem>>) attributes {dimension_semantics = [#tpu.dimension_semantics<parallel>, #tpu.dimension_semantics<parallel>], iteration_bounds = array<i64: 2, 1>, scalar_prefetch = 0 : i64, scratch_operands = 0 : i64, tpu.core_type = #tpu.core_type<tc>, window_params = [{transform_indices = @transform_0, window_bounds = array<i64: 1, 288, 16>}, {pipeline_mode = #tpu.pipeline_mode<synchronous>, transform_indices = @transform_1, window_bounds = array<i64: 64, 288>}, {pipeline_mode = #tpu.pipeline_mode<synchronous>, transform_indices = @transform_2, window_bounds = array<i64: 64, 1>}, {transform_indices = @transform_3, window_bounds = array<i64: 1, 64, 16>}]} {
    %c0 = arith.constant 0 : index
    %c0_0 = arith.constant 0 : index
    %c0_1 = arith.constant 0 : index
    %0 = vector.load %arg2[%c0, %c0_0, %c0_1] : memref<1x288x16xf32, #tpu.memory_space<vmem>>, vector<1x288x16xf32>
    %1 = vector.shape_cast %0 : vector<1x288x16xf32> to vector<288x16xf32>
    %c0_2 = arith.constant 0 : index
    %c0_3 = arith.constant 0 : index
    %2 = vector.load %arg3[%c0_2, %c0_3] : memref<64x288xf32, #tpu.memory_space<vmem>>, vector<64x288xf32>
    %cst = arith.constant dense<0.000000e+00> : vector<64x16xf32>
    %3 = tpu.matmul %2, %1, %cst {dimension_numbers = #tpu.dot_dimension_numbers<[1], [0], [0], [1], [0, 0, 1, 1], [], []>} : vector<64x288xf32>, vector<288x16xf32>, vector<64x16xf32> -> vector<64x16xf32>
    %c0_4 = arith.constant 0 : index
    %c0_5 = arith.constant 0 : index
    %4 = vector.load %arg4[%c0_4, %c0_5] : memref<64x1xf32, #tpu.memory_space<vmem>>, vector<64x1xf32>
    %5 = vector.broadcast %4 : vector<64x1xf32> to vector<64x16xf32>
    %6 = arith.addf %3, %5 : vector<64x16xf32>
    %c0_6 = arith.constant 0 : index
    %c0_7 = arith.constant 0 : index
    %c0_8 = arith.constant 0 : index
    %7 = vector.load %arg5[%c0_6, %c0_7, %c0_8] : memref<1x64x16xf32, #tpu.memory_space<vmem>>, vector<1x64x16xf32>
    %8 = vector.shape_cast %7 : vector<1x64x16xf32> to vector<64x16xf32>
    %9 = vector.shape_cast %6 : vector<64x16xf32> to vector<1x64x16xf32>
    tpu.vector_store %arg5[%c0_6, %c0_7, %c0_8], %9 {strides = array<i32>} : memref<1x64x16xf32, #tpu.memory_space<vmem>>, vector<1x64x16xf32>,
    return
  }
  func.func @transform_0(%arg0: i32, %arg1: i32) -> (i32, i32, i32) {
    %c0_i32 = arith.constant 0 : i32
    %c0_i32_0 = arith.constant 0 : i32
    return %arg0, %c0_i32, %arg1 : i32, i32, i32
  }
  func.func @transform_1(%arg0: i32, %arg1: i32) -> (i32, i32) {
    %c0_i32 = arith.constant 0 : i32
    %c0_i32_0 = arith.constant 0 : i32
    %c0_i32_1 = arith.constant 0 : i32
    return %c0_i32, %c0_i32_0 : i32, i32
  }
  func.func @transform_2(%arg0: i32, %arg1: i32) -> (i32, i32) {
    %c0_i32 = arith.constant 0 : i32
    %c0_i32_0 = arith.constant 0 : i32
    %c0_i32_1 = arith.constant 0 : i32
    return %c0_i32, %c0_i32_0 : i32, i32
  }
  func.func @transform_3(%arg0: i32, %arg1: i32) -> (i32, i32, i32) {
    %c0_i32 = arith.constant 0 : i32
    %c0_i32_0 = arith.constant 0 : i32
    return %arg0, %c0_i32, %arg1 : i32, i32, i32
  }
}

module attributes {stable_mosaic.version = 11 : i64} {
  func.func @_fuse_sum_hswish_kernel(%arg0: i32, %arg1: i32, %arg2: memref<3x1x64x16xf32, #tpu.memory_space<vmem>>, %arg3: memref<1x64x16xf32, #tpu.memory_space<vmem>>) attributes {dimension_semantics = [#tpu.dimension_semantics<parallel>, #tpu.dimension_semantics<parallel>], iteration_bounds = array<i64: 2, 1>, scalar_prefetch = 0 : i64, scratch_operands = 0 : i64, tpu.core_type = #tpu.core_type<tc>, window_params = [{transform_indices = @transform_0, window_bounds = array<i64: 3, 1, 64, 16>}, {transform_indices = @transform_1, window_bounds = array<i64: 1, 64, 16>}]} {
    %c0 = arith.constant 0 : index
    %c0_0 = arith.constant 0 : index
    %c0_1 = arith.constant 0 : index
    %c0_2 = arith.constant 0 : index
    %0 = vector.load %arg2[%c0, %c0_0, %c0_1, %c0_2] : memref<3x1x64x16xf32, #tpu.memory_space<vmem>>, vector<3x1x64x16xf32>
    %cst = arith.constant dense<0.000000e+00> : vector<1x64x16xf32>
    %1 = vector.multi_reduction <add>, %0, %cst [0] : vector<3x1x64x16xf32> to vector<1x64x16xf32>
    %cst_3 = arith.constant 3.000000e+00 : f32
    %2 = vector.broadcast %cst_3 : f32 to vector<1x64x16xf32>
    %3 = arith.addf %1, %2 : vector<1x64x16xf32>
    %cst_4 = arith.constant 0.000000e+00 : f32
    %cst_5 = arith.constant 6.000000e+00 : f32
    %4 = vector.broadcast %cst_4 : f32 to vector<1x64x16xf32>
    %5 = arith.maximumf %4, %3 : vector<1x64x16xf32>
    %6 = vector.broadcast %cst_5 : f32 to vector<1x64x16xf32>
    %7 = arith.minimumf %6, %5 : vector<1x64x16xf32>
    %8 = arith.mulf %1, %7 : vector<1x64x16xf32>
    %cst_6 = arith.constant 0.166666672 : f32
    %9 = vector.broadcast %cst_6 : f32 to vector<1x64x16xf32>
    %10 = arith.mulf %8, %9 : vector<1x64x16xf32>
    %c0_7 = arith.constant 0 : index
    %c0_8 = arith.constant 0 : index
    %c0_9 = arith.constant 0 : index
    %11 = vector.load %arg3[%c0_7, %c0_8, %c0_9] : memref<1x64x16xf32, #tpu.memory_space<vmem>>, vector<1x64x16xf32>
    tpu.vector_store %arg3[%c0_7, %c0_8, %c0_9], %10 {strides = array<i32>} : memref<1x64x16xf32, #tpu.memory_space<vmem>>, vector<1x64x16xf32>,
    return
  }
  func.func @transform_0(%arg0: i32, %arg1: i32) -> (i32, i32, i32, i32) {
    %c0_i32 = arith.constant 0 : i32
    %c0_i32_0 = arith.constant 0 : i32
    %c0_i32_1 = arith.constant 0 : i32
    return %c0_i32, %arg0, %c0_i32_0, %arg1 : i32, i32, i32, i32
  }
  func.func @transform_1(%arg0: i32, %arg1: i32) -> (i32, i32, i32) {
    %c0_i32 = arith.constant 0 : i32
    %c0_i32_0 = arith.constant 0 : i32
    return %arg0, %c0_i32, %arg1 : i32, i32, i32
  }
}

module attributes {stable_mosaic.version = 11 : i64} {
  func.func @_matmul_bn_kernel(%arg0: i32, %arg1: i32, %arg2: memref<1x144x64xf32, #tpu.memory_space<vmem>>, %arg3: memref<32x144xf32, #tpu.memory_space<vmem>>, %arg4: memref<32x1xf32, #tpu.memory_space<vmem>>, %arg5: memref<1x32x64xf32, #tpu.memory_space<vmem>>) attributes {dimension_semantics = [#tpu.dimension_semantics<parallel>, #tpu.dimension_semantics<parallel>], iteration_bounds = array<i64: 2, 1>, scalar_prefetch = 0 : i64, scratch_operands = 0 : i64, tpu.core_type = #tpu.core_type<tc>, window_params = [{transform_indices = @transform_0, window_bounds = array<i64: 1, 144, 64>}, {pipeline_mode = #tpu.pipeline_mode<synchronous>, transform_indices = @transform_1, window_bounds = array<i64: 32, 144>}, {pipeline_mode = #tpu.pipeline_mode<synchronous>, transform_indices = @transform_2, window_bounds = array<i64: 32, 1>}, {transform_indices = @transform_3, window_bounds = array<i64: 1, 32, 64>}]} {
    %c0 = arith.constant 0 : index
    %c0_0 = arith.constant 0 : index
    %c0_1 = arith.constant 0 : index
    %0 = vector.load %arg2[%c0, %c0_0, %c0_1] : memref<1x144x64xf32, #tpu.memory_space<vmem>>, vector<1x144x64xf32>
    %1 = vector.shape_cast %0 : vector<1x144x64xf32> to vector<144x64xf32>
    %c0_2 = arith.constant 0 : index
    %c0_3 = arith.constant 0 : index
    %2 = vector.load %arg3[%c0_2, %c0_3] : memref<32x144xf32, #tpu.memory_space<vmem>>, vector<32x144xf32>
    %cst = arith.constant dense<0.000000e+00> : vector<32x64xf32>
    %3 = tpu.matmul %2, %1, %cst {dimension_numbers = #tpu.dot_dimension_numbers<[1], [0], [0], [1], [0, 0, 1, 1], [], []>} : vector<32x144xf32>, vector<144x64xf32>, vector<32x64xf32> -> vector<32x64xf32>
    %c0_4 = arith.constant 0 : index
    %c0_5 = arith.constant 0 : index
    %4 = vector.load %arg4[%c0_4, %c0_5] : memref<32x1xf32, #tpu.memory_space<vmem>>, vector<32x1xf32>
    %5 = vector.broadcast %4 : vector<32x1xf32> to vector<32x64xf32>
    %6 = arith.addf %3, %5 : vector<32x64xf32>
    %c0_6 = arith.constant 0 : index
    %c0_7 = arith.constant 0 : index
    %c0_8 = arith.constant 0 : index
    %7 = vector.load %arg5[%c0_6, %c0_7, %c0_8] : memref<1x32x64xf32, #tpu.memory_space<vmem>>, vector<1x32x64xf32>
    %8 = vector.shape_cast %7 : vector<1x32x64xf32> to vector<32x64xf32>
    %9 = vector.shape_cast %6 : vector<32x64xf32> to vector<1x32x64xf32>
    tpu.vector_store %arg5[%c0_6, %c0_7, %c0_8], %9 {strides = array<i32>} : memref<1x32x64xf32, #tpu.memory_space<vmem>>, vector<1x32x64xf32>,
    return
  }
  func.func @transform_0(%arg0: i32, %arg1: i32) -> (i32, i32, i32) {
    %c0_i32 = arith.constant 0 : i32
    %c0_i32_0 = arith.constant 0 : i32
    return %arg0, %c0_i32, %arg1 : i32, i32, i32
  }
  func.func @transform_1(%arg0: i32, %arg1: i32) -> (i32, i32) {
    %c0_i32 = arith.constant 0 : i32
    %c0_i32_0 = arith.constant 0 : i32
    %c0_i32_1 = arith.constant 0 : i32
    return %c0_i32, %c0_i32_0 : i32, i32
  }
  func.func @transform_2(%arg0: i32, %arg1: i32) -> (i32, i32) {
    %c0_i32 = arith.constant 0 : i32
    %c0_i32_0 = arith.constant 0 : i32
    %c0_i32_1 = arith.constant 0 : i32
    return %c0_i32, %c0_i32_0 : i32, i32
  }
  func.func @transform_3(%arg0: i32, %arg1: i32) -> (i32, i32, i32) {
    %c0_i32 = arith.constant 0 : i32
    %c0_i32_0 = arith.constant 0 : i32
    return %arg0, %c0_i32, %arg1 : i32, i32, i32
  }
}

module attributes {stable_mosaic.version = 11 : i64} {
  func.func @_matmul_bn_kernel(%arg0: i32, %arg1: i32, %arg2: memref<1x64x16xf32, #tpu.memory_space<vmem>>, %arg3: memref<32x64xf32, #tpu.memory_space<vmem>>, %arg4: memref<32x1xf32, #tpu.memory_space<vmem>>, %arg5: memref<1x32x16xf32, #tpu.memory_space<vmem>>) attributes {dimension_semantics = [#tpu.dimension_semantics<parallel>, #tpu.dimension_semantics<parallel>], iteration_bounds = array<i64: 2, 1>, scalar_prefetch = 0 : i64, scratch_operands = 0 : i64, tpu.core_type = #tpu.core_type<tc>, window_params = [{transform_indices = @transform_0, window_bounds = array<i64: 1, 64, 16>}, {pipeline_mode = #tpu.pipeline_mode<synchronous>, transform_indices = @transform_1, window_bounds = array<i64: 32, 64>}, {pipeline_mode = #tpu.pipeline_mode<synchronous>, transform_indices = @transform_2, window_bounds = array<i64: 32, 1>}, {transform_indices = @transform_3, window_bounds = array<i64: 1, 32, 16>}]} {
    %c0 = arith.constant 0 : index
    %c0_0 = arith.constant 0 : index
    %c0_1 = arith.constant 0 : index
    %0 = vector.load %arg2[%c0, %c0_0, %c0_1] : memref<1x64x16xf32, #tpu.memory_space<vmem>>, vector<1x64x16xf32>
    %1 = vector.shape_cast %0 : vector<1x64x16xf32> to vector<64x16xf32>
    %c0_2 = arith.constant 0 : index
    %c0_3 = arith.constant 0 : index
    %2 = vector.load %arg3[%c0_2, %c0_3] : memref<32x64xf32, #tpu.memory_space<vmem>>, vector<32x64xf32>
    %cst = arith.constant dense<0.000000e+00> : vector<32x16xf32>
    %3 = tpu.matmul %2, %1, %cst {dimension_numbers = #tpu.dot_dimension_numbers<[1], [0], [0], [1], [0, 0, 1, 1], [], []>} : vector<32x64xf32>, vector<64x16xf32>, vector<32x16xf32> -> vector<32x16xf32>
    %c0_4 = arith.constant 0 : index
    %c0_5 = arith.constant 0 : index
    %4 = vector.load %arg4[%c0_4, %c0_5] : memref<32x1xf32, #tpu.memory_space<vmem>>, vector<32x1xf32>
    %5 = vector.broadcast %4 : vector<32x1xf32> to vector<32x16xf32>
    %6 = arith.addf %3, %5 : vector<32x16xf32>
    %c0_6 = arith.constant 0 : index
    %c0_7 = arith.constant 0 : index
    %c0_8 = arith.constant 0 : index
    %7 = vector.load %arg5[%c0_6, %c0_7, %c0_8] : memref<1x32x16xf32, #tpu.memory_space<vmem>>, vector<1x32x16xf32>
    %8 = vector.shape_cast %7 : vector<1x32x16xf32> to vector<32x16xf32>
    %9 = vector.shape_cast %6 : vector<32x16xf32> to vector<1x32x16xf32>
    tpu.vector_store %arg5[%c0_6, %c0_7, %c0_8], %9 {strides = array<i32>} : memref<1x32x16xf32, #tpu.memory_space<vmem>>, vector<1x32x16xf32>,
    return
  }
  func.func @transform_0(%arg0: i32, %arg1: i32) -> (i32, i32, i32) {
    %c0_i32 = arith.constant 0 : i32
    %c0_i32_0 = arith.constant 0 : i32
    return %arg0, %c0_i32, %arg1 : i32, i32, i32
  }
  func.func @transform_1(%arg0: i32, %arg1: i32) -> (i32, i32) {
    %c0_i32 = arith.constant 0 : i32
    %c0_i32_0 = arith.constant 0 : i32
    %c0_i32_1 = arith.constant 0 : i32
    return %c0_i32, %c0_i32_0 : i32, i32
  }
  func.func @transform_2(%arg0: i32, %arg1: i32) -> (i32, i32) {
    %c0_i32 = arith.constant 0 : i32
    %c0_i32_0 = arith.constant 0 : i32
    %c0_i32_1 = arith.constant 0 : i32
    return %c0_i32, %c0_i32_0 : i32, i32
  }
  func.func @transform_3(%arg0: i32, %arg1: i32) -> (i32, i32, i32) {
    %c0_i32 = arith.constant 0 : i32
    %c0_i32_0 = arith.constant 0 : i32
    return %arg0, %c0_i32, %arg1 : i32, i32, i32
  }
}

module attributes {stable_mosaic.version = 11 : i64} {
  func.func @_fuse_sum_hswish_kernel(%arg0: i32, %arg1: i32, %arg2: memref<3x1x32x64xf32, #tpu.memory_space<vmem>>, %arg3: memref<1x32x64xf32, #tpu.memory_space<vmem>>) attributes {dimension_semantics = [#tpu.dimension_semantics<parallel>, #tpu.dimension_semantics<parallel>], iteration_bounds = array<i64: 2, 1>, scalar_prefetch = 0 : i64, scratch_operands = 0 : i64, tpu.core_type = #tpu.core_type<tc>, window_params = [{transform_indices = @transform_0, window_bounds = array<i64: 3, 1, 32, 64>}, {transform_indices = @transform_1, window_bounds = array<i64: 1, 32, 64>}]} {
    %c0 = arith.constant 0 : index
    %c0_0 = arith.constant 0 : index
    %c0_1 = arith.constant 0 : index
    %c0_2 = arith.constant 0 : index
    %0 = vector.load %arg2[%c0, %c0_0, %c0_1, %c0_2] : memref<3x1x32x64xf32, #tpu.memory_space<vmem>>, vector<3x1x32x64xf32>
    %cst = arith.constant dense<0.000000e+00> : vector<1x32x64xf32>
    %1 = vector.multi_reduction <add>, %0, %cst [0] : vector<3x1x32x64xf32> to vector<1x32x64xf32>
    %cst_3 = arith.constant 3.000000e+00 : f32
    %2 = vector.broadcast %cst_3 : f32 to vector<1x32x64xf32>
    %3 = arith.addf %1, %2 : vector<1x32x64xf32>
    %cst_4 = arith.constant 0.000000e+00 : f32
    %cst_5 = arith.constant 6.000000e+00 : f32
    %4 = vector.broadcast %cst_4 : f32 to vector<1x32x64xf32>
    %5 = arith.maximumf %4, %3 : vector<1x32x64xf32>
    %6 = vector.broadcast %cst_5 : f32 to vector<1x32x64xf32>
    %7 = arith.minimumf %6, %5 : vector<1x32x64xf32>
    %8 = arith.mulf %1, %7 : vector<1x32x64xf32>
    %cst_6 = arith.constant 0.166666672 : f32
    %9 = vector.broadcast %cst_6 : f32 to vector<1x32x64xf32>
    %10 = arith.mulf %8, %9 : vector<1x32x64xf32>
    %c0_7 = arith.constant 0 : index
    %c0_8 = arith.constant 0 : index
    %c0_9 = arith.constant 0 : index
    %11 = vector.load %arg3[%c0_7, %c0_8, %c0_9] : memref<1x32x64xf32, #tpu.memory_space<vmem>>, vector<1x32x64xf32>
    tpu.vector_store %arg3[%c0_7, %c0_8, %c0_9], %10 {strides = array<i32>} : memref<1x32x64xf32, #tpu.memory_space<vmem>>, vector<1x32x64xf32>,
    return
  }
  func.func @transform_0(%arg0: i32, %arg1: i32) -> (i32, i32, i32, i32) {
    %c0_i32 = arith.constant 0 : i32
    %c0_i32_0 = arith.constant 0 : i32
    %c0_i32_1 = arith.constant 0 : i32
    return %c0_i32, %arg0, %c0_i32_0, %arg1 : i32, i32, i32, i32
  }
  func.func @transform_1(%arg0: i32, %arg1: i32) -> (i32, i32, i32) {
    %c0_i32 = arith.constant 0 : i32
    %c0_i32_0 = arith.constant 0 : i32
    return %arg0, %c0_i32, %arg1 : i32, i32, i32
  }
}

module attributes {stable_mosaic.version = 11 : i64} {
  func.func @_matmul_bn_kernel(%arg0: i32, %arg1: i32, %arg2: memref<1x64x16xf32, #tpu.memory_space<vmem>>, %arg3: memref<16x64xf32, #tpu.memory_space<vmem>>, %arg4: memref<16x1xf32, #tpu.memory_space<vmem>>, %arg5: memref<1x16x16xf32, #tpu.memory_space<vmem>>) attributes {dimension_semantics = [#tpu.dimension_semantics<parallel>, #tpu.dimension_semantics<parallel>], iteration_bounds = array<i64: 2, 1>, scalar_prefetch = 0 : i64, scratch_operands = 0 : i64, tpu.core_type = #tpu.core_type<tc>, window_params = [{transform_indices = @transform_0, window_bounds = array<i64: 1, 64, 16>}, {pipeline_mode = #tpu.pipeline_mode<synchronous>, transform_indices = @transform_1, window_bounds = array<i64: 16, 64>}, {pipeline_mode = #tpu.pipeline_mode<synchronous>, transform_indices = @transform_2, window_bounds = array<i64: 16, 1>}, {transform_indices = @transform_3, window_bounds = array<i64: 1, 16, 16>}]} {
    %c0 = arith.constant 0 : index
    %c0_0 = arith.constant 0 : index
    %c0_1 = arith.constant 0 : index
    %0 = vector.load %arg2[%c0, %c0_0, %c0_1] : memref<1x64x16xf32, #tpu.memory_space<vmem>>, vector<1x64x16xf32>
    %1 = vector.shape_cast %0 : vector<1x64x16xf32> to vector<64x16xf32>
    %c0_2 = arith.constant 0 : index
    %c0_3 = arith.constant 0 : index
    %2 = vector.load %arg3[%c0_2, %c0_3] : memref<16x64xf32, #tpu.memory_space<vmem>>, vector<16x64xf32>
    %cst = arith.constant dense<0.000000e+00> : vector<16x16xf32>
    %3 = tpu.matmul %2, %1, %cst {dimension_numbers = #tpu.dot_dimension_numbers<[1], [0], [0], [1], [0, 0, 1, 1], [], []>} : vector<16x64xf32>, vector<64x16xf32>, vector<16x16xf32> -> vector<16x16xf32>
    %c0_4 = arith.constant 0 : index
    %c0_5 = arith.constant 0 : index
    %4 = vector.load %arg4[%c0_4, %c0_5] : memref<16x1xf32, #tpu.memory_space<vmem>>, vector<16x1xf32>
    %5 = vector.broadcast %4 : vector<16x1xf32> to vector<16x16xf32>
    %6 = arith.addf %3, %5 : vector<16x16xf32>
    %c0_6 = arith.constant 0 : index
    %c0_7 = arith.constant 0 : index
    %c0_8 = arith.constant 0 : index
    %7 = vector.load %arg5[%c0_6, %c0_7, %c0_8] : memref<1x16x16xf32, #tpu.memory_space<vmem>>, vector<1x16x16xf32>
    %8 = vector.shape_cast %7 : vector<1x16x16xf32> to vector<16x16xf32>
    %9 = vector.shape_cast %6 : vector<16x16xf32> to vector<1x16x16xf32>
    tpu.vector_store %arg5[%c0_6, %c0_7, %c0_8], %9 {strides = array<i32>} : memref<1x16x16xf32, #tpu.memory_space<vmem>>, vector<1x16x16xf32>,
    return
  }
  func.func @transform_0(%arg0: i32, %arg1: i32) -> (i32, i32, i32) {
    %c0_i32 = arith.constant 0 : i32
    %c0_i32_0 = arith.constant 0 : i32
    return %arg0, %c0_i32, %arg1 : i32, i32, i32
  }
  func.func @transform_1(%arg0: i32, %arg1: i32) -> (i32, i32) {
    %c0_i32 = arith.constant 0 : i32
    %c0_i32_0 = arith.constant 0 : i32
    %c0_i32_1 = arith.constant 0 : i32
    return %c0_i32, %c0_i32_0 : i32, i32
  }
  func.func @transform_2(%arg0: i32, %arg1: i32) -> (i32, i32) {
    %c0_i32 = arith.constant 0 : i32
    %c0_i32_0 = arith.constant 0 : i32
    %c0_i32_1 = arith.constant 0 : i32
    return %c0_i32, %c0_i32_0 : i32, i32
  }
  func.func @transform_3(%arg0: i32, %arg1: i32) -> (i32, i32, i32) {
    %c0_i32 = arith.constant 0 : i32
    %c0_i32_0 = arith.constant 0 : i32
    return %arg0, %c0_i32, %arg1 : i32, i32, i32
  }
}

module attributes {stable_mosaic.version = 11 : i64} {
  func.func @_matmul_bn_kernel(%arg0: i32, %arg1: i32, %arg2: memref<1x32x64xf32, #tpu.memory_space<vmem>>, %arg3: memref<16x32xf32, #tpu.memory_space<vmem>>, %arg4: memref<16x1xf32, #tpu.memory_space<vmem>>, %arg5: memref<1x16x64xf32, #tpu.memory_space<vmem>>) attributes {dimension_semantics = [#tpu.dimension_semantics<parallel>, #tpu.dimension_semantics<parallel>], iteration_bounds = array<i64: 2, 1>, scalar_prefetch = 0 : i64, scratch_operands = 0 : i64, tpu.core_type = #tpu.core_type<tc>, window_params = [{transform_indices = @transform_0, window_bounds = array<i64: 1, 32, 64>}, {pipeline_mode = #tpu.pipeline_mode<synchronous>, transform_indices = @transform_1, window_bounds = array<i64: 16, 32>}, {pipeline_mode = #tpu.pipeline_mode<synchronous>, transform_indices = @transform_2, window_bounds = array<i64: 16, 1>}, {transform_indices = @transform_3, window_bounds = array<i64: 1, 16, 64>}]} {
    %c0 = arith.constant 0 : index
    %c0_0 = arith.constant 0 : index
    %c0_1 = arith.constant 0 : index
    %0 = vector.load %arg2[%c0, %c0_0, %c0_1] : memref<1x32x64xf32, #tpu.memory_space<vmem>>, vector<1x32x64xf32>
    %1 = vector.shape_cast %0 : vector<1x32x64xf32> to vector<32x64xf32>
    %c0_2 = arith.constant 0 : index
    %c0_3 = arith.constant 0 : index
    %2 = vector.load %arg3[%c0_2, %c0_3] : memref<16x32xf32, #tpu.memory_space<vmem>>, vector<16x32xf32>
    %cst = arith.constant dense<0.000000e+00> : vector<16x64xf32>
    %3 = tpu.matmul %2, %1, %cst {dimension_numbers = #tpu.dot_dimension_numbers<[1], [0], [0], [1], [0, 0, 1, 1], [], []>} : vector<16x32xf32>, vector<32x64xf32>, vector<16x64xf32> -> vector<16x64xf32>
    %c0_4 = arith.constant 0 : index
    %c0_5 = arith.constant 0 : index
    %4 = vector.load %arg4[%c0_4, %c0_5] : memref<16x1xf32, #tpu.memory_space<vmem>>, vector<16x1xf32>
    %5 = vector.broadcast %4 : vector<16x1xf32> to vector<16x64xf32>
    %6 = arith.addf %3, %5 : vector<16x64xf32>
    %c0_6 = arith.constant 0 : index
    %c0_7 = arith.constant 0 : index
    %c0_8 = arith.constant 0 : index
    %7 = vector.load %arg5[%c0_6, %c0_7, %c0_8] : memref<1x16x64xf32, #tpu.memory_space<vmem>>, vector<1x16x64xf32>
    %8 = vector.shape_cast %7 : vector<1x16x64xf32> to vector<16x64xf32>
    %9 = vector.shape_cast %6 : vector<16x64xf32> to vector<1x16x64xf32>
    tpu.vector_store %arg5[%c0_6, %c0_7, %c0_8], %9 {strides = array<i32>} : memref<1x16x64xf32, #tpu.memory_space<vmem>>, vector<1x16x64xf32>,
    return
  }
  func.func @transform_0(%arg0: i32, %arg1: i32) -> (i32, i32, i32) {
    %c0_i32 = arith.constant 0 : i32
    %c0_i32_0 = arith.constant 0 : i32
    return %arg0, %c0_i32, %arg1 : i32, i32, i32
  }
  func.func @transform_1(%arg0: i32, %arg1: i32) -> (i32, i32) {
    %c0_i32 = arith.constant 0 : i32
    %c0_i32_0 = arith.constant 0 : i32
    %c0_i32_1 = arith.constant 0 : i32
    return %c0_i32, %c0_i32_0 : i32, i32
  }
  func.func @transform_2(%arg0: i32, %arg1: i32) -> (i32, i32) {
    %c0_i32 = arith.constant 0 : i32
    %c0_i32_0 = arith.constant 0 : i32
    %c0_i32_1 = arith.constant 0 : i32
    return %c0_i32, %c0_i32_0 : i32, i32
  }
  func.func @transform_3(%arg0: i32, %arg1: i32) -> (i32, i32, i32) {
    %c0_i32 = arith.constant 0 : i32
    %c0_i32_0 = arith.constant 0 : i32
    return %arg0, %c0_i32, %arg1 : i32, i32, i32
  }
}

module attributes {stable_mosaic.version = 11 : i64} {
  func.func @_fuse_sum_hswish_kernel(%arg0: i32, %arg1: i32, %arg2: memref<3x1x16x256xf32, #tpu.memory_space<vmem>>, %arg3: memref<1x16x256xf32, #tpu.memory_space<vmem>>) attributes {dimension_semantics = [#tpu.dimension_semantics<parallel>, #tpu.dimension_semantics<parallel>], iteration_bounds = array<i64: 2, 1>, scalar_prefetch = 0 : i64, scratch_operands = 0 : i64, tpu.core_type = #tpu.core_type<tc>, window_params = [{transform_indices = @transform_0, window_bounds = array<i64: 3, 1, 16, 256>}, {transform_indices = @transform_1, window_bounds = array<i64: 1, 16, 256>}]} {
    %c0 = arith.constant 0 : index
    %c0_0 = arith.constant 0 : index
    %c0_1 = arith.constant 0 : index
    %c0_2 = arith.constant 0 : index
    %0 = vector.load %arg2[%c0, %c0_0, %c0_1, %c0_2] : memref<3x1x16x256xf32, #tpu.memory_space<vmem>>, vector<3x1x16x256xf32>
    %cst = arith.constant dense<0.000000e+00> : vector<1x16x256xf32>
    %1 = vector.multi_reduction <add>, %0, %cst [0] : vector<3x1x16x256xf32> to vector<1x16x256xf32>
    %cst_3 = arith.constant 3.000000e+00 : f32
    %2 = vector.broadcast %cst_3 : f32 to vector<1x16x256xf32>
    %3 = arith.addf %1, %2 : vector<1x16x256xf32>
    %cst_4 = arith.constant 0.000000e+00 : f32
    %cst_5 = arith.constant 6.000000e+00 : f32
    %4 = vector.broadcast %cst_4 : f32 to vector<1x16x256xf32>
    %5 = arith.maximumf %4, %3 : vector<1x16x256xf32>
    %6 = vector.broadcast %cst_5 : f32 to vector<1x16x256xf32>
    %7 = arith.minimumf %6, %5 : vector<1x16x256xf32>
    %8 = arith.mulf %1, %7 : vector<1x16x256xf32>
    %cst_6 = arith.constant 0.166666672 : f32
    %9 = vector.broadcast %cst_6 : f32 to vector<1x16x256xf32>
    %10 = arith.mulf %8, %9 : vector<1x16x256xf32>
    %c0_7 = arith.constant 0 : index
    %c0_8 = arith.constant 0 : index
    %c0_9 = arith.constant 0 : index
    %11 = vector.load %arg3[%c0_7, %c0_8, %c0_9] : memref<1x16x256xf32, #tpu.memory_space<vmem>>, vector<1x16x256xf32>
    tpu.vector_store %arg3[%c0_7, %c0_8, %c0_9], %10 {strides = array<i32>} : memref<1x16x256xf32, #tpu.memory_space<vmem>>, vector<1x16x256xf32>,
    return
  }
  func.func @transform_0(%arg0: i32, %arg1: i32) -> (i32, i32, i32, i32) {
    %c0_i32 = arith.constant 0 : i32
    %c0_i32_0 = arith.constant 0 : i32
    %c0_i32_1 = arith.constant 0 : i32
    return %c0_i32, %arg0, %c0_i32_0, %arg1 : i32, i32, i32, i32
  }
  func.func @transform_1(%arg0: i32, %arg1: i32) -> (i32, i32, i32) {
    %c0_i32 = arith.constant 0 : i32
    %c0_i32_0 = arith.constant 0 : i32
    return %arg0, %c0_i32, %arg1 : i32, i32, i32
  }
}

</mosaic_0001>

<llo_original>
// kernel: _lambda_.16
$region0: #{_lambda_.16}
  #allocation0 [shape = 'u32[]', space=smem, size = 0x4, offset = 0x4, fixed_abs, tag = 'smem constant byte address 0x4 - core index']
  #allocation1 [shape = 'u32[144,128]{1,0:T(1,128)}', space=vmem, size = 0x12000, scoped, tag = 'internal scratch']
  %s0 = inlined_call_operand.vmem [shape: f32[2,144,64], index: 0, kind: input, shape index: {}]
  %s1 = inlined_call_operand.vmem [shape: f32[16,144], index: 1, kind: input, shape index: {}]
  %s2 = inlined_call_operand.vmem [shape: f32[16,1], index: 2, kind: input, shape index: {}]
  %s3 = inlined_call_operand.vmem [shape: f32[2,16,64], index: 3, kind: output, shape index: {}]
  %s4 = sld [smem:[#allocation0]]
  $region45: #{_lambda_.16} parent=0
    _
  %s6 = ssub.s32 1, %s4
  %s7 = scalar_select 0, %s6, %s4
  loop: start=0, step=1, limit=4
  $region2: #{_lambda_.16} parent=0 // loop_pre_header
    _
  $region3: #{_lambda_.16} parent=0 // loop_header
    %s9 = sphi 0, %s13
    %p10 = scmp.ge.s32.totalorder %s9, 4
    %s16 = sphi 0, %s28
    %s17 = sphi 0, %s24
    %s18 = sphi 0, %s16
    %s19 = sphi 0, %s17
    %s20 = sphi 0, %s18
    %s21 = sphi 0, %s19
    %s33 = sphi 0, %s35
    %s36 = sphi 0, %s33
    %s37 = sphi 0, %s36
    %s53 = sphi 0, %s37
    %s57 = sphi 0, %s57
    %s59 = sphi 0, %s57
    %s60 = sphi 0, %s59
    %s74 = sphi 0, %s60
    %s78 = sphi 0, %s78
    %s80 = sphi 0, %s78
    %s81 = sphi 0, %s80
    %s95 = sphi 0, %s81
    %s103 = sphi 0, %s105
    %s106 = sphi 0, %s103
    %s107 = sphi 0, %s106
    %s123 = sphi 0, %s107
  $region4: #{_lambda_.16} parent=0 // loop_header_branch
    %12 = sbr.rel (%p10) target = $region8
  $region5: #{_lambda_.16} parent=0 // loop_body
    %s14 = ssub.s32 %s9, 1
    %s15 = ssub.s32 %s9, 2
    %s22 = sadd.s32 1, %s17
    %p23 = scmp.ge.s32.totalorder %s22, 1
    %s24 = scalar_select %p23, 0, %s22
    %s25 = sadd.s32 1, %s16
    %s26 = scalar_select %p23, %s25, %s16
    %p27 = scmp.ge.s32.totalorder %s26, 2
    %s28 = scalar_select %p27, 0, %s26
    %s29 = ssub.s32 %s16, %s28
    %s30 = ssub.s32 %s17, %s24
    %s31 = sor.u32 %s29, %s30
    %p32 = scmp.eq.s32.totalorder %s31, 0
    %s34 = sadd.s32 %s33, 1
    %s35 = scalar_select %p32, %s33, %s34
    %p38 = pneg %p32
    %p39 = scmp.eq.s32.totalorder %s9, 1
    %p40 = por %p38, %p39
    %p41 = scmp.ne.s32.totalorder %s33, %s36
    %p42 = scmp.eq.s32.totalorder %s9, 0
    %p43 = por %p41, %p42
    %p44 = scmp.ne.s32.totalorder %s33, %s36
    %p45 = scmp.eq.s32.totalorder %s14, 1
    %p46 = por %p44, %p45
    %p47 = scmp.ne.s32.totalorder %s36, %s37
    %p48 = scmp.eq.s32.totalorder %s14, 0
    %p49 = por %p47, %p48
    %p50 = scmp.ne.s32.totalorder %s36, %s37
    %p51 = scmp.eq.s32.totalorder %s15, 1
    %p52 = por %p50, %p51
    %p54 = scmp.ne.s32.totalorder %s37, %s53
    %p55 = scmp.eq.s32.totalorder %s15, 0
    %p56 = por %p54, %p55
    %s58 = sadd.s32 %s57, 1
    %p61 = scmp.eq.s32.totalorder %s9, 1
    %p62 = scmp.ne.s32.totalorder %s57, %s59
    %p63 = scmp.eq.s32.totalorder %s9, 0
    %p64 = por %p62, %p63
    %p65 = scmp.ne.s32.totalorder %s57, %s59
    %p66 = scmp.eq.s32.totalorder %s14, 1
    %p67 = por %p65, %p66
    %p68 = scmp.ne.s32.totalorder %s59, %s60
    %p69 = scmp.eq.s32.totalorder %s14, 0
    %p70 = por %p68, %p69
    %p71 = scmp.ne.s32.totalorder %s59, %s60
    %p72 = scmp.eq.s32.totalorder %s15, 1
    %p73 = por %p71, %p72
    %p75 = scmp.ne.s32.totalorder %s60, %s74
    %p76 = scmp.eq.s32.totalorder %s15, 0
    %p77 = por %p75, %p76
    %s79 = sadd.s32 %s78, 1
    %p82 = scmp.eq.s32.totalorder %s9, 1
    %p83 = scmp.ne.s32.totalorder %s78, %s80
    %p84 = scmp.eq.s32.totalorder %s9, 0
    %p85 = por %p83, %p84
    %p86 = scmp.ne.s32.totalorder %s78, %s80
    %p87 = scmp.eq.s32.totalorder %s14, 1
    %p88 = por %p86, %p87
    %p89 = scmp.ne.s32.totalorder %s80, %s81
    %p90 = scmp.eq.s32.totalorder %s14, 0
    %p91 = por %p89, %p90
    %p92 = scmp.ne.s32.totalorder %s80, %s81
    %p93 = scmp.eq.s32.totalorder %s15, 1
    %p94 = por %p92, %p93
    %p96 = scmp.ne.s32.totalorder %s81, %s95
    %p97 = scmp.eq.s32.totalorder %s15, 0
    %p98 = por %p96, %p97
    %s99 = ssub.s32 %s16, %s28
    %s100 = ssub.s32 %s17, %s24
    %s101 = sor.u32 %s99, %s100
    %p102 = scmp.eq.s32.totalorder %s101, 0
    %s104 = sadd.s32 %s103, 1
    %s105 = scalar_select %p102, %s103, %s104
    %p108 = pneg %p102
    %p109 = scmp.eq.s32.totalorder %s9, 1
    %p110 = por %p108, %p109
    %p111 = scmp.ne.s32.totalorder %s103, %s106
    %p112 = scmp.eq.s32.totalorder %s9, 0
    %p113 = por %p111, %p112
    %p114 = scmp.ne.s32.totalorder %s103, %s106
    %p115 = scmp.eq.s32.totalorder %s14, 1
    %p116 = por %p114, %p115
    %p117 = scmp.ne.s32.totalorder %s106, %s107
    %p118 = scmp.eq.s32.totalorder %s14, 0
    %p119 = por %p117, %p118
    %p120 = scmp.ne.s32.totalorder %s106, %s107
    %p121 = scmp.eq.s32.totalorder %s15, 1
    %p122 = por %p120, %p121
    %p124 = scmp.ne.s32.totalorder %s107, %s123
    %p125 = scmp.eq.s32.totalorder %s15, 0
    %p126 = por %p124, %p125
    %p127 = scmp.le.s32.totalorder 1, %s9
    %p128 = scmp.lt.s32.totalorder %s9, 3
    %p129 = pnand %p127, %p128
    %p130 = pneg %p129
    // Predicated region
    $region9: #{_lambda_.16} parent=5 // pred_check
      _
    $region10: #{_lambda_.16} parent=5 // pred_check_branch
      %132 = sbr.rel (%p129) target = $region12
    $region11: #{_lambda_.16} parent=5 // pred_region
      %s133 = ssub.s32 %s9, 1
      // Predicated region
      $region13: #{_lambda_.16} parent=11 // pred_check
        %p134 = pneg %p70
      $region14: #{_lambda_.16} parent=11 // pred_check_branch
        %136 = sbr.rel (%p134) target = $region16
      $region15: #{_lambda_.16} parent=11 // pred_region
        _
      $region16: #{_lambda_.16} parent=11 // pred_fallthru
        _
      // Predicated region
      $region17: #{_lambda_.16} parent=11 // pred_check
        %p137 = pneg %p91
      $region18: #{_lambda_.16} parent=11 // pred_check_branch
        %139 = sbr.rel (%p137) target = $region20
      $region19: #{_lambda_.16} parent=11 // pred_region
        _
      $region20: #{_lambda_.16} parent=11 // pred_fallthru
        _
    $region12: #{_lambda_.16} parent=5 // pred_fallthru
      _
    %p140 = scmp.lt.s32.totalorder %s9, 2
    // Predicated region
    $region21: #{_lambda_.16} parent=5 // pred_check
      %p141 = pneg %p140
    $region22: #{_lambda_.16} parent=5 // pred_check_branch
      %143 = sbr.rel (%p141) target = $region24
    $region23: #{_lambda_.16} parent=5 // pred_region
      // Predicated region
      $region25: #{_lambda_.16} parent=23 // pred_check
        %p144 = pneg %p43
      $region26: #{_lambda_.16} parent=23 // pred_check_branch
        %146 = sbr.rel (%p144) target = $region28
      $region27: #{_lambda_.16} parent=23 // pred_region
        %p147 = scmp.lt.s32.totalorder %s16, 1
        %s148 = scalar_select %p147, %s16, 1
        %p149 = scmp.lt.s32.totalorder %s17, 0
        %s150 = scalar_select %p149, %s17, 0
        %s151 = smul.addr %s148, 18
        %s152 = sadd.s32 %s150, %s151
        %s153 = smul.addr %s152, 8
        %s154 = scalar_lea.vmem %s0, %s153
      $region28: #{_lambda_.16} parent=23 // pred_fallthru
        _
    $region24: #{_lambda_.16} parent=5 // pred_fallthru
      _
    %p155 = scmp.le.s32.totalorder 1, %s9
    %p156 = scmp.lt.s32.totalorder %s9, 3
    %p157 = pnand %p155, %p156
    %p158 = pneg %p157
    // Predicated region
    $region29: #{_lambda_.16} parent=5 // pred_check
      _
    $region30: #{_lambda_.16} parent=5 // pred_check_branch
      %160 = sbr.rel (%p157) target = $region32
    $region31: #{_lambda_.16} parent=5 // pred_region
      %s161 = ssub.s32 %s9, 1
      %p162 = scmp.lt.s32.totalorder %s18, 1
      %s163 = scalar_select %p162, %s18, 1
      %p164 = scmp.lt.s32.totalorder %s19, 0
      %s165 = scalar_select %p164, %s19, 0
      %s166 = smul.addr %s163, 18
      %s167 = sadd.s32 %s165, %s166
      %s168 = smul.addr %s167, 8
      %s169 = scalar_lea.vmem %s0, %s168
      %p170 = pneg %p49
      %p171 = pneg %p46
      %p172 = pneg %p70
      %p173 = pneg %p67
      %p174 = pneg %p91
      %p175 = pneg %p88
      %p176 = pneg %p119
      %p177 = pneg %p116
      %p178 = scmp.lt.s32.totalorder %s18, 1
      %s179 = scalar_select %p178, %s18, 1
      %p180 = scmp.lt.s32.totalorder %s19, 0
      %s181 = scalar_select %p180, %s19, 0
      %s182 = smul.addr %s179, 2
      %s183 = sadd.s32 %s181, %s182
      %s184 = smul.addr %s183, 8
      %s185 = scalar_lea.vmem %s3, %s184
      %p186 = scmp.lt.s32.totalorder %s18, 1
      %s187 = scalar_select %p186, %s18, 1
      %p188 = scmp.lt.s32.totalorder %s19, 0
      %s189 = scalar_select %p188, %s19, 0
      %s190 = smul.addr %s187, 18
      %s191 = sadd.s32 %s189, %s190
      %s192 = smul.addr %s191, 8
      %s193 = scalar_lea.vmem %s0, %s192
      %p194 = scmp.lt.s32.totalorder %s18, 1
      %s195 = scalar_select %p194, %s18, 1
      %p196 = scmp.lt.s32.totalorder %s19, 0
      %s197 = scalar_select %p196, %s19, 0
      %s198 = smul.addr %s195, 2
      %s199 = sadd.s32 %s197, %s198
      %s200 = smul.addr %s199, 8
      %s201 = scalar_lea.vmem %s3, %s200
      %v202 = vld [vmem:[%s193] sm:$0xff]
      %v203 = vld [vmem:[%s193 + $0x8] sm:$0xff]
      %v204 = vld [vmem:[%s193 + $0x10] sm:$0xff]
      %v205 = vld [vmem:[%s193 + $0x18] sm:$0xff]
      %v206 = vld [vmem:[%s193 + $0x20] sm:$0xff]
      %v207 = vld [vmem:[%s193 + $0x28] sm:$0xff]
      %v208 = vld [vmem:[%s193 + $0x30] sm:$0xff]
      %v209 = vld [vmem:[%s193 + $0x38] sm:$0xff]
      %v210 = vld [vmem:[%s193 + $0x40] sm:$0xff]
      %v211 = vld [vmem:[%s193 + $0x48] sm:$0xff]
      %v212 = vld [vmem:[%s193 + $0x50] sm:$0xff]
      %v213 = vld [vmem:[%s193 + $0x58] sm:$0xff]
      %v214 = vld [vmem:[%s193 + $0x60] sm:$0xff]
      %v215 = vld [vmem:[%s193 + $0x68] sm:$0xff]
      %v216 = vld [vmem:[%s193 + $0x70] sm:$0xff]
      %v217 = vld [vmem:[%s193 + $0x78] sm:$0xff]
      %v218 = vld [vmem:[%s193 + $0x80] sm:$0xff]
      %v219 = vld [vmem:[%s193 + $0x88] sm:$0xff]
      %v220 = vld [vmem:[%s1] sm:$0xff]
      %v221 = vld [vmem:[%s1 + $0x8] sm:$0xff]
      %v222 = vld [vmem:[%s1 + $0x10] sm:$0xff]
      %v223 = vld [vmem:[%s1 + $0x18] sm:$0xff]
      %v224 = vld [vmem:[%s2] sm:$0xff]
      %v225 = vld [vmem:[%s2 + $0x8] sm:$0xff]
      %227 = vset.pattern.permute.xlu0 0
      %228 = vperm.xlu0 %227, %v224
      %v229 = vpop.permute.xlu0 %228
      %232 = vset.pattern.permute.xlu0 0
      %233 = vperm.xlu0 %232, %v225
      %v234 = vpop.permute.xlu0 %233
      %vm236 = vcmask 130048
      %v238 = vsel %vm236, %v221, 0
      %v241 = vsel %vm236, %v223, 0
      %243 = vmatprep.subr.mxu0 0.0
      %244 = vmatpush1.msra.mxu0 %v217
      %245 = vmatprep.subr.mxu0 0.0
      %246 = vmatpush1.msra.mxu0 %v216
      %247 = vmatprep.subr.mxu0 0.0
      %248 = vmatpush1.msra.mxu0 %v215
      %249 = vmatprep.subr.mxu0 0.0
      %250 = vmatpush1.msra.mxu0 %v214
      %251 = vmatprep.subr.mxu0 0.0
      %252 = vmatpush1.msra.mxu0 %v213
      %253 = vmatprep.subr.mxu0 0.0
      %254 = vmatpush1.msra.mxu0 %v212
      %255 = vmatprep.subr.mxu0 0.0
      %256 = vmatpush1.msra.mxu0 %v211
      %257 = vmatprep.subr.mxu0 0.0
      %258 = vmatpush1.msra.mxu0 %v210
      %259 = vmatprep.subr.mxu0 0.0
      %260 = vmatpush1.msra.mxu0 %v209
      %261 = vmatprep.subr.mxu0 0.0
      %262 = vmatpush1.msra.mxu0 %v208
      %263 = vmatprep.subr.mxu0 0.0
      %264 = vmatpush1.msra.mxu0 %v207
      %265 = vmatprep.subr.mxu0 0.0
      %266 = vmatpush1.msra.mxu0 %v206
      %267 = vmatprep.subr.mxu0 0.0
      %268 = vmatpush1.msra.mxu0 %v205
      %269 = vmatprep.subr.mxu0 0.0
      %270 = vmatpush1.msra.mxu0 %v204
      %271 = vmatprep.subr.mxu0 0.0
      %272 = vmatpush1.msra.mxu0 %v203
      %273 = vmatprep.subr.mxu0 0.0
      %274 = vmatpush1.msra.mxu0 %v202
      %275 = vmatprep.subr.mxu0 0.0
      %276 = vmatpush2.msra.mxu0 0.0
      %277 = vmatprep.subr.mxu0 0.0
      %278 = vmatpush2.msra.mxu0 0.0
      %279 = vmatprep.subr.mxu0 0.0
      %280 = vmatpush2.msra.mxu0 0.0
      %281 = vmatprep.subr.mxu0 0.0
      %282 = vmatpush2.msra.mxu0 0.0
      %283 = vmatprep.subr.mxu0 0.0
      %284 = vmatpush2.msra.mxu0 0.0
      %285 = vmatprep.subr.mxu0 0.0
      %286 = vmatpush2.msra.mxu0 0.0
      %287 = vmatprep.subr.mxu0 0.0
      %288 = vmatpush2.msra.mxu0 0.0
      %289 = vmatprep.subr.mxu0 0.0
      %290 = vmatpush2.msra.mxu0 0.0
      %291 = vmatprep.subr.mxu0 0.0
      %292 = vmatpush2.msra.mxu0 0.0
      %293 = vmatprep.subr.mxu0 0.0
      %294 = vmatpush2.msra.mxu0 0.0
      %295 = vmatprep.subr.mxu0 0.0
      %296 = vmatpush2.msra.mxu0 0.0
      %297 = vmatprep.subr.mxu0 0.0
      %298 = vmatpush2.msra.mxu0 0.0
      %299 = vmatprep.subr.mxu0 0.0
      %300 = vmatpush2.msra.mxu0 0.0
      %301 = vmatprep.subr.mxu0 0.0
      %302 = vmatpush2.msra.mxu0 0.0
      %303 = vmatprep.subr.mxu0 0.0
      %304 = vmatpush2.msra.mxu0 %v219
      %305 = vmatprep.subr.mxu0 0.0
      %306 = vmatpush2.msra.mxu0 %v218
      %307 = vmatprep.mubr.f32.mxu0 %v238
      %308 = vmatmul.mubr.f32.gmra.mxu0 %v220
      %v309 = vpop.f32.mrf.mxu0
      %v310 = vadd.f32 %v229, %v309
      %v311 = vpop.f32.mrf.mxu0
      %312 = vmatprep.mubr.f32.mxu0 %v241
      %313 = vmatmul.mubr.f32.gmra.mxu0 %v222
      %v314 = vpop.f32.mrf.mxu0
      %v315 = vadd.f32 %v234, %v314
      %v316 = vpop.f32.mrf.mxu0
      %317 = vdwg.mxu0
      %v318 = vadd.f32 %v310, 3.0
      %v319 = vadd.f32 %v315, 3.0
      %v320 = vmax.f32 %v318, 0.0
      %v321 = vmax.f32 %v319, 0.0
      %v322 = vmin.f32 %v320, 6.0
      %v323 = vmin.f32 %v321, 6.0
      %v324 = vmul.f32 %v310, %v322
      %v325 = vmul.f32 %v315, %v323
      %v326 = vmul.f32 %v324, 0.16666667
      %v327 = vmul.f32 %v325, 0.16666667
      %vm328 = vcmask 523264
      %329 = vst.msk [vmem:[%s201] sm:$0xff] %vm328, %v326
      %330 = vst.msk [vmem:[%s201 + $0x8] sm:$0xff] %vm328, %v327
      %p331 = scmp.lt.s32.totalorder %s18, 1
      %s332 = scalar_select %p331, %s18, 1
      %p333 = scmp.lt.s32.totalorder %s19, 0
      %s334 = scalar_select %p333, %s19, 0
      %s335 = smul.addr %s332, 2
      %s336 = sadd.s32 %s334, %s335
      %s337 = smul.addr %s336, 8
      %s338 = scalar_lea.vmem %s3, %s337
      // Predicated region
      $region33: #{_lambda_.16} parent=31 // pred_check
        %p339 = pneg %p116
      $region34: #{_lambda_.16} parent=31 // pred_check_branch
        %341 = sbr.rel (%p339) target = $region36
      $region35: #{_lambda_.16} parent=31 // pred_region
        _
      $region36: #{_lambda_.16} parent=31 // pred_fallthru
        _
    $region32: #{_lambda_.16} parent=5 // pred_fallthru
      _
    %p342 = scmp.le.s32.totalorder 2, %s9
    // Predicated region
    $region37: #{_lambda_.16} parent=5 // pred_check
      %p343 = pneg %p342
    $region38: #{_lambda_.16} parent=5 // pred_check_branch
      %345 = sbr.rel (%p343) target = $region40
    $region39: #{_lambda_.16} parent=5 // pred_region
      %s346 = ssub.s32 %s9, 2
      // Predicated region
      $region41: #{_lambda_.16} parent=39 // pred_check
        %p347 = pneg %p122
      $region42: #{_lambda_.16} parent=39 // pred_check_branch
        %349 = sbr.rel (%p347) target = $region44
      $region43: #{_lambda_.16} parent=39 // pred_region
        %p350 = scmp.lt.s32.totalorder %s20, 1
        %s351 = scalar_select %p350, %s20, 1
        %p352 = scmp.lt.s32.totalorder %s21, 0
        %s353 = scalar_select %p352, %s21, 0
        %s354 = smul.addr %s351, 2
        %s355 = sadd.s32 %s353, %s354
        %s356 = smul.addr %s355, 8
        %s357 = scalar_lea.vmem %s3, %s356
      $region44: #{_lambda_.16} parent=39 // pred_fallthru
        _
    $region40: #{_lambda_.16} parent=5 // pred_fallthru
      _
  $region6: #{_lambda_.16} parent=0 // loop_footer
    %s13 = sadd.s32 1, %s9
  $region7: #{_lambda_.16} parent=0 // loop_footer_branch
    %8 = sbr.rel target = $region3
  $region8: #{_lambda_.16} parent=0 // loop_exit
    _

// kernel: _lambda_.17
$region0: #{_lambda_.17}
  #allocation0 [shape = 'u32[]', space=smem, size = 0x4, offset = 0x4, fixed_abs, tag = 'smem constant byte address 0x4 - core index']
  #allocation1 [shape = 'u32[144,128]{1,0:T(1,128)}', space=vmem, size = 0x12000, scoped, tag = 'internal scratch']
  %s0 = inlined_call_operand.vmem [shape: f32[2,144,16], index: 0, kind: input, shape index: {}]
  %s1 = inlined_call_operand.vmem [shape: f32[64,144], index: 1, kind: input, shape index: {}]
  %s2 = inlined_call_operand.vmem [shape: f32[64,1], index: 2, kind: input, shape index: {}]
  %s3 = inlined_call_operand.vmem [shape: f32[2,64,16], index: 3, kind: output, shape index: {}]
  %s4 = sld [smem:[#allocation0]]
  $region45: #{_lambda_.17} parent=0
    _
  %s6 = ssub.s32 1, %s4
  %s7 = scalar_select 0, %s6, %s4
  loop: start=0, step=1, limit=4
  $region2: #{_lambda_.17} parent=0 // loop_pre_header
    _
  $region3: #{_lambda_.17} parent=0 // loop_header
    %s9 = sphi 0, %s13
    %p10 = scmp.ge.s32.totalorder %s9, 4
    %s16 = sphi 0, %s28
    %s17 = sphi 0, %s24
    %s18 = sphi 0, %s16
    %s19 = sphi 0, %s17
    %s20 = sphi 0, %s18
    %s21 = sphi 0, %s19
    %s33 = sphi 0, %s35
    %s36 = sphi 0, %s33
    %s37 = sphi 0, %s36
    %s53 = sphi 0, %s37
    %s57 = sphi 0, %s57
    %s59 = sphi 0, %s57
    %s60 = sphi 0, %s59
    %s74 = sphi 0, %s60
    %s78 = sphi 0, %s78
    %s80 = sphi 0, %s78
    %s81 = sphi 0, %s80
    %s95 = sphi 0, %s81
    %s103 = sphi 0, %s105
    %s106 = sphi 0, %s103
    %s107 = sphi 0, %s106
    %s123 = sphi 0, %s107
  $region4: #{_lambda_.17} parent=0 // loop_header_branch
    %12 = sbr.rel (%p10) target = $region8
  $region5: #{_lambda_.17} parent=0 // loop_body
    %s14 = ssub.s32 %s9, 1
    %s15 = ssub.s32 %s9, 2
    %s22 = sadd.s32 1, %s17
    %p23 = scmp.ge.s32.totalorder %s22, 1
    %s24 = scalar_select %p23, 0, %s22
    %s25 = sadd.s32 1, %s16
    %s26 = scalar_select %p23, %s25, %s16
    %p27 = scmp.ge.s32.totalorder %s26, 2
    %s28 = scalar_select %p27, 0, %s26
    %s29 = ssub.s32 %s16, %s28
    %s30 = ssub.s32 %s17, %s24
    %s31 = sor.u32 %s29, %s30
    %p32 = scmp.eq.s32.totalorder %s31, 0
    %s34 = sadd.s32 %s33, 1
    %s35 = scalar_select %p32, %s33, %s34
    %p38 = pneg %p32
    %p39 = scmp.eq.s32.totalorder %s9, 1
    %p40 = por %p38, %p39
    %p41 = scmp.ne.s32.totalorder %s33, %s36
    %p42 = scmp.eq.s32.totalorder %s9, 0
    %p43 = por %p41, %p42
    %p44 = scmp.ne.s32.totalorder %s33, %s36
    %p45 = scmp.eq.s32.totalorder %s14, 1
    %p46 = por %p44, %p45
    %p47 = scmp.ne.s32.totalorder %s36, %s37
    %p48 = scmp.eq.s32.totalorder %s14, 0
    %p49 = por %p47, %p48
    %p50 = scmp.ne.s32.totalorder %s36, %s37
    %p51 = scmp.eq.s32.totalorder %s15, 1
    %p52 = por %p50, %p51
    %p54 = scmp.ne.s32.totalorder %s37, %s53
    %p55 = scmp.eq.s32.totalorder %s15, 0
    %p56 = por %p54, %p55
    %s58 = sadd.s32 %s57, 1
    %p61 = scmp.eq.s32.totalorder %s9, 1
    %p62 = scmp.ne.s32.totalorder %s57, %s59
    %p63 = scmp.eq.s32.totalorder %s9, 0
    %p64 = por %p62, %p63
    %p65 = scmp.ne.s32.totalorder %s57, %s59
    %p66 = scmp.eq.s32.totalorder %s14, 1
    %p67 = por %p65, %p66
    %p68 = scmp.ne.s32.totalorder %s59, %s60
    %p69 = scmp.eq.s32.totalorder %s14, 0
    %p70 = por %p68, %p69
    %p71 = scmp.ne.s32.totalorder %s59, %s60
    %p72 = scmp.eq.s32.totalorder %s15, 1
    %p73 = por %p71, %p72
    %p75 = scmp.ne.s32.totalorder %s60, %s74
    %p76 = scmp.eq.s32.totalorder %s15, 0
    %p77 = por %p75, %p76
    %s79 = sadd.s32 %s78, 1
    %p82 = scmp.eq.s32.totalorder %s9, 1
    %p83 = scmp.ne.s32.totalorder %s78, %s80
    %p84 = scmp.eq.s32.totalorder %s9, 0
    %p85 = por %p83, %p84
    %p86 = scmp.ne.s32.totalorder %s78, %s80
    %p87 = scmp.eq.s32.totalorder %s14, 1
    %p88 = por %p86, %p87
    %p89 = scmp.ne.s32.totalorder %s80, %s81
    %p90 = scmp.eq.s32.totalorder %s14, 0
    %p91 = por %p89, %p90
    %p92 = scmp.ne.s32.totalorder %s80, %s81
    %p93 = scmp.eq.s32.totalorder %s15, 1
    %p94 = por %p92, %p93
    %p96 = scmp.ne.s32.totalorder %s81, %s95
    %p97 = scmp.eq.s32.totalorder %s15, 0
    %p98 = por %p96, %p97
    %s99 = ssub.s32 %s16, %s28
    %s100 = ssub.s32 %s17, %s24
    %s101 = sor.u32 %s99, %s100
    %p102 = scmp.eq.s32.totalorder %s101, 0
    %s104 = sadd.s32 %s103, 1
    %s105 = scalar_select %p102, %s103, %s104
    %p108 = pneg %p102
    %p109 = scmp.eq.s32.totalorder %s9, 1
    %p110 = por %p108, %p109
    %p111 = scmp.ne.s32.totalorder %s103, %s106
    %p112 = scmp.eq.s32.totalorder %s9, 0
    %p113 = por %p111, %p112
    %p114 = scmp.ne.s32.totalorder %s103, %s106
    %p115 = scmp.eq.s32.totalorder %s14, 1
    %p116 = por %p114, %p115
    %p117 = scmp.ne.s32.totalorder %s106, %s107
    %p118 = scmp.eq.s32.totalorder %s14, 0
    %p119 = por %p117, %p118
    %p120 = scmp.ne.s32.totalorder %s106, %s107
    %p121 = scmp.eq.s32.totalorder %s15, 1
    %p122 = por %p120, %p121
    %p124 = scmp.ne.s32.totalorder %s107, %s123
    %p125 = scmp.eq.s32.totalorder %s15, 0
    %p126 = por %p124, %p125
    %p127 = scmp.le.s32.totalorder 1, %s9
    %p128 = scmp.lt.s32.totalorder %s9, 3
    %p129 = pnand %p127, %p128
    %p130 = pneg %p129
    // Predicated region
    $region9: #{_lambda_.17} parent=5 // pred_check
      _
    $region10: #{_lambda_.17} parent=5 // pred_check_branch
      %132 = sbr.rel (%p129) target = $region12
    $region11: #{_lambda_.17} parent=5 // pred_region
      %s133 = ssub.s32 %s9, 1
      // Predicated region
      $region13: #{_lambda_.17} parent=11 // pred_check
        %p134 = pneg %p70
      $region14: #{_lambda_.17} parent=11 // pred_check_branch
        %136 = sbr.rel (%p134) target = $region16
      $region15: #{_lambda_.17} parent=11 // pred_region
        _
      $region16: #{_lambda_.17} parent=11 // pred_fallthru
        _
      // Predicated region
      $region17: #{_lambda_.17} parent=11 // pred_check
        %p137 = pneg %p91
      $region18: #{_lambda_.17} parent=11 // pred_check_branch
        %139 = sbr.rel (%p137) target = $region20
      $region19: #{_lambda_.17} parent=11 // pred_region
        _
      $region20: #{_lambda_.17} parent=11 // pred_fallthru
        _
    $region12: #{_lambda_.17} parent=5 // pred_fallthru
      _
    %p140 = scmp.lt.s32.totalorder %s9, 2
    // Predicated region
    $region21: #{_lambda_.17} parent=5 // pred_check
      %p141 = pneg %p140
    $region22: #{_lambda_.17} parent=5 // pred_check_branch
      %143 = sbr.rel (%p141) target = $region24
    $region23: #{_lambda_.17} parent=5 // pred_region
      // Predicated region
      $region25: #{_lambda_.17} parent=23 // pred_check
        %p144 = pneg %p43
      $region26: #{_lambda_.17} parent=23 // pred_check_branch
        %146 = sbr.rel (%p144) target = $region28
      $region27: #{_lambda_.17} parent=23 // pred_region
        %p147 = scmp.lt.s32.totalorder %s16, 1
        %s148 = scalar_select %p147, %s16, 1
        %p149 = scmp.lt.s32.totalorder %s17, 0
        %s150 = scalar_select %p149, %s17, 0
        %s151 = smul.addr %s148, 18
        %s152 = sadd.s32 %s150, %s151
        %s153 = smul.addr %s152, 8
        %s154 = scalar_lea.vmem %s0, %s153
      $region28: #{_lambda_.17} parent=23 // pred_fallthru
        _
    $region24: #{_lambda_.17} parent=5 // pred_fallthru
      _
    %p155 = scmp.le.s32.totalorder 1, %s9
    %p156 = scmp.lt.s32.totalorder %s9, 3
    %p157 = pnand %p155, %p156
    %p158 = pneg %p157
    // Predicated region
    $region29: #{_lambda_.17} parent=5 // pred_check
      _
    $region30: #{_lambda_.17} parent=5 // pred_check_branch
      %160 = sbr.rel (%p157) target = $region32
    $region31: #{_lambda_.17} parent=5 // pred_region
      %s161 = ssub.s32 %s9, 1
      %p162 = scmp.lt.s32.totalorder %s18, 1
      %s163 = scalar_select %p162, %s18, 1
      %p164 = scmp.lt.s32.totalorder %s19, 0
      %s165 = scalar_select %p164, %s19, 0
      %s166 = smul.addr %s163, 18
      %s167 = sadd.s32 %s165, %s166
      %s168 = smul.addr %s167, 8
      %s169 = scalar_lea.vmem %s0, %s168
      %p170 = pneg %p49
      %p171 = pneg %p46
      %p172 = pneg %p70
      %p173 = pneg %p67
      %p174 = pneg %p91
      %p175 = pneg %p88
      %p176 = pneg %p119
      %p177 = pneg %p116
      %p178 = scmp.lt.s32.totalorder %s18, 1
      %s179 = scalar_select %p178, %s18, 1
      %p180 = scmp.lt.s32.totalorder %s19, 0
      %s181 = scalar_select %p180, %s19, 0
      %s182 = smul.addr %s179, 8
      %s183 = sadd.s32 %s181, %s182
      %s184 = smul.addr %s183, 8
      %s185 = scalar_lea.vmem %s3, %s184
      %p186 = scmp.lt.s32.totalorder %s18, 1
      %s187 = scalar_select %p186, %s18, 1
      %p188 = scmp.lt.s32.totalorder %s19, 0
      %s189 = scalar_select %p188, %s19, 0
      %s190 = smul.addr %s187, 18
      %s191 = sadd.s32 %s189, %s190
      %s192 = smul.addr %s191, 8
      %s193 = scalar_lea.vmem %s0, %s192
      %p194 = scmp.lt.s32.totalorder %s18, 1
      %s195 = scalar_select %p194, %s18, 1
      %p196 = scmp.lt.s32.totalorder %s19, 0
      %s197 = scalar_select %p196, %s19, 0
      %s198 = smul.addr %s195, 8
      %s199 = sadd.s32 %s197, %s198
      %s200 = smul.addr %s199, 8
      %s201 = scalar_lea.vmem %s3, %s200
      %v202 = vld [vmem:[%s193] sm:$0xff]
      %v203 = vld [vmem:[%s193 + $0x8] sm:$0xff]
      %v204 = vld [vmem:[%s193 + $0x10] sm:$0xff]
      %v205 = vld [vmem:[%s193 + $0x18] sm:$0xff]
      %v206 = vld [vmem:[%s193 + $0x20] sm:$0xff]
      %v207 = vld [vmem:[%s193 + $0x28] sm:$0xff]
      %v208 = vld [vmem:[%s193 + $0x30] sm:$0xff]
      %v209 = vld [vmem:[%s193 + $0x38] sm:$0xff]
      %v210 = vld [vmem:[%s193 + $0x40] sm:$0xff]
      %v211 = vld [vmem:[%s193 + $0x48] sm:$0xff]
      %v212 = vld [vmem:[%s193 + $0x50] sm:$0xff]
      %v213 = vld [vmem:[%s193 + $0x58] sm:$0xff]
      %v214 = vld [vmem:[%s193 + $0x60] sm:$0xff]
      %v215 = vld [vmem:[%s193 + $0x68] sm:$0xff]
      %v216 = vld [vmem:[%s193 + $0x70] sm:$0xff]
      %v217 = vld [vmem:[%s193 + $0x78] sm:$0xff]
      %v218 = vld [vmem:[%s193 + $0x80] sm:$0xff]
      %v219 = vld [vmem:[%s193 + $0x88] sm:$0xff]
      %v220 = vld [vmem:[%s1] sm:$0xff]
      %v221 = vld [vmem:[%s1 + $0x8] sm:$0xff]
      %v222 = vld [vmem:[%s1 + $0x10] sm:$0xff]
      %v223 = vld [vmem:[%s1 + $0x18] sm:$0xff]
      %v224 = vld [vmem:[%s1 + $0x20] sm:$0xff]
      %v225 = vld [vmem:[%s1 + $0x28] sm:$0xff]
      %v226 = vld [vmem:[%s1 + $0x30] sm:$0xff]
      %v227 = vld [vmem:[%s1 + $0x38] sm:$0xff]
      %v228 = vld [vmem:[%s1 + $0x40] sm:$0xff]
      %v229 = vld [vmem:[%s1 + $0x48] sm:$0xff]
      %v230 = vld [vmem:[%s1 + $0x50] sm:$0xff]
      %v231 = vld [vmem:[%s1 + $0x58] sm:$0xff]
      %v232 = vld [vmem:[%s1 + $0x60] sm:$0xff]
      %v233 = vld [vmem:[%s1 + $0x68] sm:$0xff]
      %v234 = vld [vmem:[%s1 + $0x70] sm:$0xff]
      %v235 = vld [vmem:[%s1 + $0x78] sm:$0xff]
      %v236 = vld [vmem:[%s2] sm:$0xff]
      %v237 = vld [vmem:[%s2 + $0x8] sm:$0xff]
      %v238 = vld [vmem:[%s2 + $0x10] sm:$0xff]
      %v239 = vld [vmem:[%s2 + $0x18] sm:$0xff]
      %v240 = vld [vmem:[%s2 + $0x20] sm:$0xff]
      %v241 = vld [vmem:[%s2 + $0x28] sm:$0xff]
      %v242 = vld [vmem:[%s2 + $0x30] sm:$0xff]
      %v243 = vld [vmem:[%s2 + $0x38] sm:$0xff]
      %245 = vset.pattern.permute.xlu0 0
      %246 = vperm.xlu0 %245, %v236
      %v247 = vpop.permute.xlu0 %246
      %250 = vset.pattern.permute.xlu0 0
      %251 = vperm.xlu0 %250, %v237
      %v252 = vpop.permute.xlu0 %251
      %255 = vset.pattern.permute.xlu0 0
      %256 = vperm.xlu0 %255, %v238
      %v257 = vpop.permute.xlu0 %256
      %260 = vset.pattern.permute.xlu0 0
      %261 = vperm.xlu0 %260, %v239
      %v262 = vpop.permute.xlu0 %261
      %265 = vset.pattern.permute.xlu0 0
      %266 = vperm.xlu0 %265, %v240
      %v267 = vpop.permute.xlu0 %266
      %270 = vset.pattern.permute.xlu0 0
      %271 = vperm.xlu0 %270, %v241
      %v272 = vpop.permute.xlu0 %271
      %275 = vset.pattern.permute.xlu0 0
      %276 = vperm.xlu0 %275, %v242
      %v277 = vpop.permute.xlu0 %276
      %280 = vset.pattern.permute.xlu0 0
      %281 = vperm.xlu0 %280, %v243
      %v282 = vpop.permute.xlu0 %281
      %vm284 = vcmask 130048
      %v286 = vsel %vm284, %v221, 0
      %v289 = vsel %vm284, %v223, 0
      %v292 = vsel %vm284, %v225, 0
      %v295 = vsel %vm284, %v227, 0
      %v298 = vsel %vm284, %v229, 0
      %v301 = vsel %vm284, %v231, 0
      %v304 = vsel %vm284, %v233, 0
      %v307 = vsel %vm284, %v235, 0
      %309 = vmatprep.subr.mxu0 0.0
      %310 = vmatpush1.msra.mxu0 %v217
      %311 = vmatprep.subr.mxu0 0.0
      %312 = vmatpush1.msra.mxu0 %v216
      %313 = vmatprep.subr.mxu0 0.0
      %314 = vmatpush1.msra.mxu0 %v215
      %315 = vmatprep.subr.mxu0 0.0
      %316 = vmatpush1.msra.mxu0 %v214
      %317 = vmatprep.subr.mxu0 0.0
      %318 = vmatpush1.msra.mxu0 %v213
      %319 = vmatprep.subr.mxu0 0.0
      %320 = vmatpush1.msra.mxu0 %v212
      %321 = vmatprep.subr.mxu0 0.0
      %322 = vmatpush1.msra.mxu0 %v211
      %323 = vmatprep.subr.mxu0 0.0
      %324 = vmatpush1.msra.mxu0 %v210
      %325 = vmatprep.subr.mxu0 0.0
      %326 = vmatpush1.msra.mxu0 %v209
      %327 = vmatprep.subr.mxu0 0.0
      %328 = vmatpush1.msra.mxu0 %v208
      %329 = vmatprep.subr.mxu0 0.0
      %330 = vmatpush1.msra.mxu0 %v207
      %331 = vmatprep.subr.mxu0 0.0
      %332 = vmatpush1.msra.mxu0 %v206
      %333 = vmatprep.subr.mxu0 0.0
      %334 = vmatpush1.msra.mxu0 %v205
      %335 = vmatprep.subr.mxu0 0.0
      %336 = vmatpush1.msra.mxu0 %v204
      %337 = vmatprep.subr.mxu0 0.0
      %338 = vmatpush1.msra.mxu0 %v203
      %339 = vmatprep.subr.mxu0 0.0
      %340 = vmatpush1.msra.mxu0 %v202
      %341 = vmatprep.subr.mxu0 0.0
      %342 = vmatpush2.msra.mxu0 0.0
      %343 = vmatprep.subr.mxu0 0.0
      %344 = vmatpush2.msra.mxu0 0.0
      %345 = vmatprep.subr.mxu0 0.0
      %346 = vmatpush2.msra.mxu0 0.0
      %347 = vmatprep.subr.mxu0 0.0
      %348 = vmatpush2.msra.mxu0 0.0
      %349 = vmatprep.subr.mxu0 0.0
      %350 = vmatpush2.msra.mxu0 0.0
      %351 = vmatprep.subr.mxu0 0.0
      %352 = vmatpush2.msra.mxu0 0.0
      %353 = vmatprep.subr.mxu0 0.0
      %354 = vmatpush2.msra.mxu0 0.0
      %355 = vmatprep.subr.mxu0 0.0
      %356 = vmatpush2.msra.mxu0 0.0
      %357 = vmatprep.subr.mxu0 0.0
      %358 = vmatpush2.msra.mxu0 0.0
      %359 = vmatprep.subr.mxu0 0.0
      %360 = vmatpush2.msra.mxu0 0.0
      %361 = vmatprep.subr.mxu0 0.0
      %362 = vmatpush2.msra.mxu0 0.0
      %363 = vmatprep.subr.mxu0 0.0
      %364 = vmatpush2.msra.mxu0 0.0
      %365 = vmatprep.subr.mxu0 0.0
      %366 = vmatpush2.msra.mxu0 0.0
      %367 = vmatprep.subr.mxu0 0.0
      %368 = vmatpush2.msra.mxu0 0.0
      %369 = vmatprep.subr.mxu0 0.0
      %370 = vmatpush2.msra.mxu0 %v219
      %371 = vmatprep.subr.mxu0 0.0
      %372 = vmatpush2.msra.mxu0 %v218
      %373 = vmatprep.mubr.f32.mxu0 %v286
      %374 = vmatmul.mubr.f32.gmra.mxu0 %v220
      %v375 = vpop.f32.mrf.mxu0
      %v376 = vadd.f32 %v247, %v375
      %v377 = vpop.f32.mrf.mxu0
      %378 = vmatprep.mubr.f32.mxu0 %v289
      %379 = vmatmul.mubr.f32.gmra.mxu0 %v222
      %v380 = vpop.f32.mrf.mxu0
      %v381 = vadd.f32 %v252, %v380
      %v382 = vpop.f32.mrf.mxu0
      %383 = vmatprep.mubr.f32.mxu0 %v292
      %384 = vmatmul.mubr.f32.gmra.mxu0 %v224
      %v385 = vpop.f32.mrf.mxu0
      %v386 = vadd.f32 %v257, %v385
      %v387 = vpop.f32.mrf.mxu0
      %388 = vmatprep.mubr.f32.mxu0 %v295
      %389 = vmatmul.mubr.f32.gmra.mxu0 %v226
      %v390 = vpop.f32.mrf.mxu0
      %v391 = vadd.f32 %v262, %v390
      %v392 = vpop.f32.mrf.mxu0
      %393 = vmatprep.mubr.f32.mxu0 %v298
      %394 = vmatmul.mubr.f32.gmra.mxu0 %v228
      %v395 = vpop.f32.mrf.mxu0
      %v396 = vadd.f32 %v267, %v395
      %v397 = vpop.f32.mrf.mxu0
      %398 = vmatprep.mubr.f32.mxu0 %v301
      %399 = vmatmul.mubr.f32.gmra.mxu0 %v230
      %v400 = vpop.f32.mrf.mxu0
      %v401 = vadd.f32 %v272, %v400
      %v402 = vpop.f32.mrf.mxu0
      %403 = vmatprep.mubr.f32.mxu0 %v304
      %404 = vmatmul.mubr.f32.gmra.mxu0 %v232
      %v405 = vpop.f32.mrf.mxu0
      %v406 = vadd.f32 %v277, %v405
      %v407 = vpop.f32.mrf.mxu0
      %408 = vmatprep.mubr.f32.mxu0 %v307
      %409 = vmatmul.mubr.f32.gmra.mxu0 %v234
      %v410 = vpop.f32.mrf.mxu0
      %v411 = vadd.f32 %v282, %v410
      %v412 = vpop.f32.mrf.mxu0
      %413 = vdwg.mxu0
      %414 = vst.msk [vmem:[%s201] sm:$0xff] %vm284, %v376
      %415 = vst.msk [vmem:[%s201 + $0x8] sm:$0xff] %vm284, %v381
      %416 = vst.msk [vmem:[%s201 + $0x10] sm:$0xff] %vm284, %v386
      %417 = vst.msk [vmem:[%s201 + $0x18] sm:$0xff] %vm284, %v391
      %418 = vst.msk [vmem:[%s201 + $0x20] sm:$0xff] %vm284, %v396
      %419 = vst.msk [vmem:[%s201 + $0x28] sm:$0xff] %vm284, %v401
      %420 = vst.msk [vmem:[%s201 + $0x30] sm:$0xff] %vm284, %v406
      %421 = vst.msk [vmem:[%s201 + $0x38] sm:$0xff] %vm284, %v411
      %p422 = scmp.lt.s32.totalorder %s18, 1
      %s423 = scalar_select %p422, %s18, 1
      %p424 = scmp.lt.s32.totalorder %s19, 0
      %s425 = scalar_select %p424, %s19, 0
      %s426 = smul.addr %s423, 8
      %s427 = sadd.s32 %s425, %s426
      %s428 = smul.addr %s427, 8
      %s429 = scalar_lea.vmem %s3, %s428
      // Predicated region
      $region33: #{_lambda_.17} parent=31 // pred_check
        %p430 = pneg %p116
      $region34: #{_lambda_.17} parent=31 // pred_check_branch
        %432 = sbr.rel (%p430) target = $region36
      $region35: #{_lambda_.17} parent=31 // pred_region
        _
      $region36: #{_lambda_.17} parent=31 // pred_fallthru
        _
    $region32: #{_lambda_.17} parent=5 // pred_fallthru
      _
    %p433 = scmp.le.s32.totalorder 2, %s9
    // Predicated region
    $region37: #{_lambda_.17} parent=5 // pred_check
      %p434 = pneg %p433
    $region38: #{_lambda_.17} parent=5 // pred_check_branch
      %436 = sbr.rel (%p434) target = $region40
    $region39: #{_lambda_.17} parent=5 // pred_region
      %s437 = ssub.s32 %s9, 2
      // Predicated region
      $region41: #{_lambda_.17} parent=39 // pred_check
        %p438 = pneg %p122
      $region42: #{_lambda_.17} parent=39 // pred_check_branch
        %440 = sbr.rel (%p438) target = $region44
      $region43: #{_lambda_.17} parent=39 // pred_region
        %p441 = scmp.lt.s32.totalorder %s20, 1
        %s442 = scalar_select %p441, %s20, 1
        %p443 = scmp.lt.s32.totalorder %s21, 0
        %s444 = scalar_select %p443, %s21, 0
        %s445 = smul.addr %s442, 8
        %s446 = sadd.s32 %s444, %s445
        %s447 = smul.addr %s446, 8
        %s448 = scalar_lea.vmem %s3, %s447
      $region44: #{_lambda_.17} parent=39 // pred_fallthru
        _
    $region40: #{_lambda_.17} parent=5 // pred_fallthru
      _
  $region6: #{_lambda_.17} parent=0 // loop_footer
    %s13 = sadd.s32 1, %s9
  $region7: #{_lambda_.17} parent=0 // loop_footer_branch
    %8 = sbr.rel target = $region3
  $region8: #{_lambda_.17} parent=0 // loop_exit
    _

// kernel: _lambda_.18
$region0: #{_lambda_.18}
  #allocation0 [shape = 'u32[]', space=smem, size = 0x4, offset = 0x4, fixed_abs, tag = 'smem constant byte address 0x4 - core index']
  #allocation1 [shape = 'u32[144,128]{1,0:T(1,128)}', space=vmem, size = 0x12000, scoped, tag = 'internal scratch']
  %s0 = inlined_call_operand.vmem [shape: f32[2,288,16], index: 0, kind: input, shape index: {}]
  %s1 = inlined_call_operand.vmem [shape: f32[64,288], index: 1, kind: input, shape index: {}]
  %s2 = inlined_call_operand.vmem [shape: f32[64,1], index: 2, kind: input, shape index: {}]
  %s3 = inlined_call_operand.vmem [shape: f32[2,64,16], index: 3, kind: output, shape index: {}]
  %s4 = sld [smem:[#allocation0]]
  $region45: #{_lambda_.18} parent=0
    _
  %s6 = ssub.s32 1, %s4
  %s7 = scalar_select 0, %s6, %s4
  loop: start=0, step=1, limit=4
  $region2: #{_lambda_.18} parent=0 // loop_pre_header
    _
  $region3: #{_lambda_.18} parent=0 // loop_header
    %s9 = sphi 0, %s13
    %p10 = scmp.ge.s32.totalorder %s9, 4
    %s16 = sphi 0, %s28
    %s17 = sphi 0, %s24
    %s18 = sphi 0, %s16
    %s19 = sphi 0, %s17
    %s20 = sphi 0, %s18
    %s21 = sphi 0, %s19
    %s33 = sphi 0, %s35
    %s36 = sphi 0, %s33
    %s37 = sphi 0, %s36
    %s53 = sphi 0, %s37
    %s57 = sphi 0, %s57
    %s59 = sphi 0, %s57
    %s60 = sphi 0, %s59
    %s74 = sphi 0, %s60
    %s78 = sphi 0, %s78
    %s80 = sphi 0, %s78
    %s81 = sphi 0, %s80
    %s95 = sphi 0, %s81
    %s103 = sphi 0, %s105
    %s106 = sphi 0, %s103
    %s107 = sphi 0, %s106
    %s123 = sphi 0, %s107
  $region4: #{_lambda_.18} parent=0 // loop_header_branch
    %12 = sbr.rel (%p10) target = $region8
  $region5: #{_lambda_.18} parent=0 // loop_body
    %s14 = ssub.s32 %s9, 1
    %s15 = ssub.s32 %s9, 2
    %s22 = sadd.s32 1, %s17
    %p23 = scmp.ge.s32.totalorder %s22, 1
    %s24 = scalar_select %p23, 0, %s22
    %s25 = sadd.s32 1, %s16
    %s26 = scalar_select %p23, %s25, %s16
    %p27 = scmp.ge.s32.totalorder %s26, 2
    %s28 = scalar_select %p27, 0, %s26
    %s29 = ssub.s32 %s16, %s28
    %s30 = ssub.s32 %s17, %s24
    %s31 = sor.u32 %s29, %s30
    %p32 = scmp.eq.s32.totalorder %s31, 0
    %s34 = sadd.s32 %s33, 1
    %s35 = scalar_select %p32, %s33, %s34
    %p38 = pneg %p32
    %p39 = scmp.eq.s32.totalorder %s9, 1
    %p40 = por %p38, %p39
    %p41 = scmp.ne.s32.totalorder %s33, %s36
    %p42 = scmp.eq.s32.totalorder %s9, 0
    %p43 = por %p41, %p42
    %p44 = scmp.ne.s32.totalorder %s33, %s36
    %p45 = scmp.eq.s32.totalorder %s14, 1
    %p46 = por %p44, %p45
    %p47 = scmp.ne.s32.totalorder %s36, %s37
    %p48 = scmp.eq.s32.totalorder %s14, 0
    %p49 = por %p47, %p48
    %p50 = scmp.ne.s32.totalorder %s36, %s37
    %p51 = scmp.eq.s32.totalorder %s15, 1
    %p52 = por %p50, %p51
    %p54 = scmp.ne.s32.totalorder %s37, %s53
    %p55 = scmp.eq.s32.totalorder %s15, 0
    %p56 = por %p54, %p55
    %s58 = sadd.s32 %s57, 1
    %p61 = scmp.eq.s32.totalorder %s9, 1
    %p62 = scmp.ne.s32.totalorder %s57, %s59
    %p63 = scmp.eq.s32.totalorder %s9, 0
    %p64 = por %p62, %p63
    %p65 = scmp.ne.s32.totalorder %s57, %s59
    %p66 = scmp.eq.s32.totalorder %s14, 1
    %p67 = por %p65, %p66
    %p68 = scmp.ne.s32.totalorder %s59, %s60
    %p69 = scmp.eq.s32.totalorder %s14, 0
    %p70 = por %p68, %p69
    %p71 = scmp.ne.s32.totalorder %s59, %s60
    %p72 = scmp.eq.s32.totalorder %s15, 1
    %p73 = por %p71, %p72
    %p75 = scmp.ne.s32.totalorder %s60, %s74
    %p76 = scmp.eq.s32.totalorder %s15, 0
    %p77 = por %p75, %p76
    %s79 = sadd.s32 %s78, 1
    %p82 = scmp.eq.s32.totalorder %s9, 1
    %p83 = scmp.ne.s32.totalorder %s78, %s80
    %p84 = scmp.eq.s32.totalorder %s9, 0
    %p85 = por %p83, %p84
    %p86 = scmp.ne.s32.totalorder %s78, %s80
    %p87 = scmp.eq.s32.totalorder %s14, 1
    %p88 = por %p86, %p87
    %p89 = scmp.ne.s32.totalorder %s80, %s81
    %p90 = scmp.eq.s32.totalorder %s14, 0
    %p91 = por %p89, %p90
    %p92 = scmp.ne.s32.totalorder %s80, %s81
    %p93 = scmp.eq.s32.totalorder %s15, 1
    %p94 = por %p92, %p93
    %p96 = scmp.ne.s32.totalorder %s81, %s95
    %p97 = scmp.eq.s32.totalorder %s15, 0
    %p98 = por %p96, %p97
    %s99 = ssub.s32 %s16, %s28
    %s100 = ssub.s32 %s17, %s24
    %s101 = sor.u32 %s99, %s100
    %p102 = scmp.eq.s32.totalorder %s101, 0
    %s104 = sadd.s32 %s103, 1
    %s105 = scalar_select %p102, %s103, %s104
    %p108 = pneg %p102
    %p109 = scmp.eq.s32.totalorder %s9, 1
    %p110 = por %p108, %p109
    %p111 = scmp.ne.s32.totalorder %s103, %s106
    %p112 = scmp.eq.s32.totalorder %s9, 0
    %p113 = por %p111, %p112
    %p114 = scmp.ne.s32.totalorder %s103, %s106
    %p115 = scmp.eq.s32.totalorder %s14, 1
    %p116 = por %p114, %p115
    %p117 = scmp.ne.s32.totalorder %s106, %s107
    %p118 = scmp.eq.s32.totalorder %s14, 0
    %p119 = por %p117, %p118
    %p120 = scmp.ne.s32.totalorder %s106, %s107
    %p121 = scmp.eq.s32.totalorder %s15, 1
    %p122 = por %p120, %p121
    %p124 = scmp.ne.s32.totalorder %s107, %s123
    %p125 = scmp.eq.s32.totalorder %s15, 0
    %p126 = por %p124, %p125
    %p127 = scmp.le.s32.totalorder 1, %s9
    %p128 = scmp.lt.s32.totalorder %s9, 3
    %p129 = pnand %p127, %p128
    %p130 = pneg %p129
    // Predicated region
    $region9: #{_lambda_.18} parent=5 // pred_check
      _
    $region10: #{_lambda_.18} parent=5 // pred_check_branch
      %132 = sbr.rel (%p129) target = $region12
    $region11: #{_lambda_.18} parent=5 // pred_region
      %s133 = ssub.s32 %s9, 1
      // Predicated region
      $region13: #{_lambda_.18} parent=11 // pred_check
        %p134 = pneg %p70
      $region14: #{_lambda_.18} parent=11 // pred_check_branch
        %136 = sbr.rel (%p134) target = $region16
      $region15: #{_lambda_.18} parent=11 // pred_region
        _
      $region16: #{_lambda_.18} parent=11 // pred_fallthru
        _
      // Predicated region
      $region17: #{_lambda_.18} parent=11 // pred_check
        %p137 = pneg %p91
      $region18: #{_lambda_.18} parent=11 // pred_check_branch
        %139 = sbr.rel (%p137) target = $region20
      $region19: #{_lambda_.18} parent=11 // pred_region
        _
      $region20: #{_lambda_.18} parent=11 // pred_fallthru
        _
    $region12: #{_lambda_.18} parent=5 // pred_fallthru
      _
    %p140 = scmp.lt.s32.totalorder %s9, 2
    // Predicated region
    $region21: #{_lambda_.18} parent=5 // pred_check
      %p141 = pneg %p140
    $region22: #{_lambda_.18} parent=5 // pred_check_branch
      %143 = sbr.rel (%p141) target = $region24
    $region23: #{_lambda_.18} parent=5 // pred_region
      // Predicated region
      $region25: #{_lambda_.18} parent=23 // pred_check
        %p144 = pneg %p43
      $region26: #{_lambda_.18} parent=23 // pred_check_branch
        %146 = sbr.rel (%p144) target = $region28
      $region27: #{_lambda_.18} parent=23 // pred_region
        %p147 = scmp.lt.s32.totalorder %s16, 1
        %s148 = scalar_select %p147, %s16, 1
        %p149 = scmp.lt.s32.totalorder %s17, 0
        %s150 = scalar_select %p149, %s17, 0
        %s151 = smul.addr %s148, 36
        %s152 = sadd.s32 %s150, %s151
        %s153 = smul.addr %s152, 8
        %s154 = scalar_lea.vmem %s0, %s153
      $region28: #{_lambda_.18} parent=23 // pred_fallthru
        _
    $region24: #{_lambda_.18} parent=5 // pred_fallthru
      _
    %p155 = scmp.le.s32.totalorder 1, %s9
    %p156 = scmp.lt.s32.totalorder %s9, 3
    %p157 = pnand %p155, %p156
    %p158 = pneg %p157
    // Predicated region
    $region29: #{_lambda_.18} parent=5 // pred_check
      _
    $region30: #{_lambda_.18} parent=5 // pred_check_branch
      %160 = sbr.rel (%p157) target = $region32
    $region31: #{_lambda_.18} parent=5 // pred_region
      %s161 = ssub.s32 %s9, 1
      %p162 = scmp.lt.s32.totalorder %s18, 1
      %s163 = scalar_select %p162, %s18, 1
      %p164 = scmp.lt.s32.totalorder %s19, 0
      %s165 = scalar_select %p164, %s19, 0
      %s166 = smul.addr %s163, 36
      %s167 = sadd.s32 %s165, %s166
      %s168 = smul.addr %s167, 8
      %s169 = scalar_lea.vmem %s0, %s168
      %p170 = pneg %p49
      %p171 = pneg %p46
      %p172 = pneg %p70
      %p173 = pneg %p67
      %p174 = pneg %p91
      %p175 = pneg %p88
      %p176 = pneg %p119
      %p177 = pneg %p116
      %p178 = scmp.lt.s32.totalorder %s18, 1
      %s179 = scalar_select %p178, %s18, 1
      %p180 = scmp.lt.s32.totalorder %s19, 0
      %s181 = scalar_select %p180, %s19, 0
      %s182 = smul.addr %s179, 8
      %s183 = sadd.s32 %s181, %s182
      %s184 = smul.addr %s183, 8
      %s185 = scalar_lea.vmem %s3, %s184
      %p186 = scmp.lt.s32.totalorder %s18, 1
      %s187 = scalar_select %p186, %s18, 1
      %p188 = scmp.lt.s32.totalorder %s19, 0
      %s189 = scalar_select %p188, %s19, 0
      %s190 = smul.addr %s187, 36
      %s191 = sadd.s32 %s189, %s190
      %s192 = smul.addr %s191, 8
      %s193 = scalar_lea.vmem %s0, %s192
      %p194 = scmp.lt.s32.totalorder %s18, 1
      %s195 = scalar_select %p194, %s18, 1
      %p196 = scmp.lt.s32.totalorder %s19, 0
      %s197 = scalar_select %p196, %s19, 0
      %s198 = smul.addr %s195, 8
      %s199 = sadd.s32 %s197, %s198
      %s200 = smul.addr %s199, 8
      %s201 = scalar_lea.vmem %s3, %s200
      %v202 = vld [vmem:[%s193] sm:$0xff]
      %v203 = vld [vmem:[%s193 + $0x8] sm:$0xff]
      %v204 = vld [vmem:[%s193 + $0x10] sm:$0xff]
      %v205 = vld [vmem:[%s193 + $0x18] sm:$0xff]
      %v206 = vld [vmem:[%s193 + $0x20] sm:$0xff]
      %v207 = vld [vmem:[%s193 + $0x28] sm:$0xff]
      %v208 = vld [vmem:[%s193 + $0x30] sm:$0xff]
      %v209 = vld [vmem:[%s193 + $0x38] sm:$0xff]
      %v210 = vld [vmem:[%s193 + $0x40] sm:$0xff]
      %v211 = vld [vmem:[%s193 + $0x48] sm:$0xff]
      %v212 = vld [vmem:[%s193 + $0x50] sm:$0xff]
      %v213 = vld [vmem:[%s193 + $0x58] sm:$0xff]
      %v214 = vld [vmem:[%s193 + $0x60] sm:$0xff]
      %v215 = vld [vmem:[%s193 + $0x68] sm:$0xff]
      %v216 = vld [vmem:[%s193 + $0x70] sm:$0xff]
      %v217 = vld [vmem:[%s193 + $0x78] sm:$0xff]
      %v218 = vld [vmem:[%s193 + $0x80] sm:$0xff]
      %v219 = vld [vmem:[%s193 + $0x88] sm:$0xff]
      %v220 = vld [vmem:[%s193 + $0x90] sm:$0xff]
      %v221 = vld [vmem:[%s193 + $0x98] sm:$0xff]
      %v222 = vld [vmem:[%s193 + $0xa0] sm:$0xff]
      %v223 = vld [vmem:[%s193 + $0xa8] sm:$0xff]
      %v224 = vld [vmem:[%s193 + $0xb0] sm:$0xff]
      %v225 = vld [vmem:[%s193 + $0xb8] sm:$0xff]
      %v226 = vld [vmem:[%s193 + $0xc0] sm:$0xff]
      %v227 = vld [vmem:[%s193 + $0xc8] sm:$0xff]
      %v228 = vld [vmem:[%s193 + $0xd0] sm:$0xff]
      %v229 = vld [vmem:[%s193 + $0xd8] sm:$0xff]
      %v230 = vld [vmem:[%s193 + $0xe0] sm:$0xff]
      %v231 = vld [vmem:[%s193 + $0xe8] sm:$0xff]
      %v232 = vld [vmem:[%s193 + $0xf0] sm:$0xff]
      %v233 = vld [vmem:[%s193 + $0xf8] sm:$0xff]
      %v234 = vld [vmem:[%s193 + $0x100] sm:$0xff]
      %v235 = vld [vmem:[%s193 + $0x108] sm:$0xff]
      %v236 = vld [vmem:[%s193 + $0x110] sm:$0xff]
      %v237 = vld [vmem:[%s193 + $0x118] sm:$0xff]
      %v238 = vld [vmem:[%s1] sm:$0xff]
      %v239 = vld [vmem:[%s1 + $0x8] sm:$0xff]
      %v240 = vld [vmem:[%s1 + $0x10] sm:$0xff]
      %v241 = vld [vmem:[%s1 + $0x18] sm:$0xff]
      %v242 = vld [vmem:[%s1 + $0x20] sm:$0xff]
      %v243 = vld [vmem:[%s1 + $0x28] sm:$0xff]
      %v244 = vld [vmem:[%s1 + $0x30] sm:$0xff]
      %v245 = vld [vmem:[%s1 + $0x38] sm:$0xff]
      %v246 = vld [vmem:[%s1 + $0x40] sm:$0xff]
      %v247 = vld [vmem:[%s1 + $0x48] sm:$0xff]
      %v248 = vld [vmem:[%s1 + $0x50] sm:$0xff]
      %v249 = vld [vmem:[%s1 + $0x58] sm:$0xff]
      %v250 = vld [vmem:[%s1 + $0x60] sm:$0xff]
      %v251 = vld [vmem:[%s1 + $0x68] sm:$0xff]
      %v252 = vld [vmem:[%s1 + $0x70] sm:$0xff]
      %v253 = vld [vmem:[%s1 + $0x78] sm:$0xff]
      %v254 = vld [vmem:[%s1 + $0x80] sm:$0xff]
      %v255 = vld [vmem:[%s1 + $0x88] sm:$0xff]
      %v256 = vld [vmem:[%s1 + $0x90] sm:$0xff]
      %v257 = vld [vmem:[%s1 + $0x98] sm:$0xff]
      %v258 = vld [vmem:[%s1 + $0xa0] sm:$0xff]
      %v259 = vld [vmem:[%s1 + $0xa8] sm:$0xff]
      %v260 = vld [vmem:[%s1 + $0xb0] sm:$0xff]
      %v261 = vld [vmem:[%s1 + $0xb8] sm:$0xff]
      %v262 = vld [vmem:[%s2] sm:$0xff]
      %v263 = vld [vmem:[%s2 + $0x8] sm:$0xff]
      %v264 = vld [vmem:[%s2 + $0x10] sm:$0xff]
      %v265 = vld [vmem:[%s2 + $0x18] sm:$0xff]
      %v266 = vld [vmem:[%s2 + $0x20] sm:$0xff]
      %v267 = vld [vmem:[%s2 + $0x28] sm:$0xff]
      %v268 = vld [vmem:[%s2 + $0x30] sm:$0xff]
      %v269 = vld [vmem:[%s2 + $0x38] sm:$0xff]
      %271 = vset.pattern.permute.xlu0 0
      %272 = vperm.xlu0 %271, %v262
      %v273 = vpop.permute.xlu0 %272
      %276 = vset.pattern.permute.xlu0 0
      %277 = vperm.xlu0 %276, %v263
      %v278 = vpop.permute.xlu0 %277
      %281 = vset.pattern.permute.xlu0 0
      %282 = vperm.xlu0 %281, %v264
      %v283 = vpop.permute.xlu0 %282
      %286 = vset.pattern.permute.xlu0 0
      %287 = vperm.xlu0 %286, %v265
      %v288 = vpop.permute.xlu0 %287
      %291 = vset.pattern.permute.xlu0 0
      %292 = vperm.xlu0 %291, %v266
      %v293 = vpop.permute.xlu0 %292
      %296 = vset.pattern.permute.xlu0 0
      %297 = vperm.xlu0 %296, %v267
      %v298 = vpop.permute.xlu0 %297
      %301 = vset.pattern.permute.xlu0 0
      %302 = vperm.xlu0 %301, %v268
      %v303 = vpop.permute.xlu0 %302
      %306 = vset.pattern.permute.xlu0 0
      %307 = vperm.xlu0 %306, %v269
      %v308 = vpop.permute.xlu0 %307
      %vm310 = vcmask 261120
      %v312 = vsel %vm310, %v240, 0
      %v315 = vsel %vm310, %v243, 0
      %v318 = vsel %vm310, %v246, 0
      %v321 = vsel %vm310, %v249, 0
      %v324 = vsel %vm310, %v252, 0
      %v327 = vsel %vm310, %v255, 0
      %v330 = vsel %vm310, %v258, 0
      %v333 = vsel %vm310, %v261, 0
      %335 = vmatprep.subr.mxu0 0.0
      %336 = vmatpush1.msra.mxu0 %v217
      %337 = vmatprep.subr.mxu0 0.0
      %338 = vmatpush1.msra.mxu0 %v216
      %339 = vmatprep.subr.mxu0 0.0
      %340 = vmatpush1.msra.mxu0 %v215
      %341 = vmatprep.subr.mxu0 0.0
      %342 = vmatpush1.msra.mxu0 %v214
      %343 = vmatprep.subr.mxu0 0.0
      %344 = vmatpush1.msra.mxu0 %v213
      %345 = vmatprep.subr.mxu0 0.0
      %346 = vmatpush1.msra.mxu0 %v212
      %347 = vmatprep.subr.mxu0 0.0
      %348 = vmatpush1.msra.mxu0 %v211
      %349 = vmatprep.subr.mxu0 0.0
      %350 = vmatpush1.msra.mxu0 %v210
      %351 = vmatprep.subr.mxu0 0.0
      %352 = vmatpush1.msra.mxu0 %v209
      %353 = vmatprep.subr.mxu0 0.0
      %354 = vmatpush1.msra.mxu0 %v208
      %355 = vmatprep.subr.mxu0 0.0
      %356 = vmatpush1.msra.mxu0 %v207
      %357 = vmatprep.subr.mxu0 0.0
      %358 = vmatpush1.msra.mxu0 %v206
      %359 = vmatprep.subr.mxu0 0.0
      %360 = vmatpush1.msra.mxu0 %v205
      %361 = vmatprep.subr.mxu0 0.0
      %362 = vmatpush1.msra.mxu0 %v204
      %363 = vmatprep.subr.mxu0 0.0
      %364 = vmatpush1.msra.mxu0 %v203
      %365 = vmatprep.subr.mxu0 0.0
      %366 = vmatpush1.msra.mxu0 %v202
      %367 = vmatprep.subr.mxu0 0.0
      %368 = vmatpush2.msra.mxu0 %v233
      %369 = vmatprep.subr.mxu0 0.0
      %370 = vmatpush2.msra.mxu0 %v232
      %371 = vmatprep.subr.mxu0 0.0
      %372 = vmatpush2.msra.mxu0 %v231
      %373 = vmatprep.subr.mxu0 0.0
      %374 = vmatpush2.msra.mxu0 %v230
      %375 = vmatprep.subr.mxu0 0.0
      %376 = vmatpush2.msra.mxu0 %v229
      %377 = vmatprep.subr.mxu0 0.0
      %378 = vmatpush2.msra.mxu0 %v228
      %379 = vmatprep.subr.mxu0 0.0
      %380 = vmatpush2.msra.mxu0 %v227
      %381 = vmatprep.subr.mxu0 0.0
      %382 = vmatpush2.msra.mxu0 %v226
      %383 = vmatprep.subr.mxu0 0.0
      %384 = vmatpush2.msra.mxu0 %v225
      %385 = vmatprep.subr.mxu0 0.0
      %386 = vmatpush2.msra.mxu0 %v224
      %387 = vmatprep.subr.mxu0 0.0
      %388 = vmatpush2.msra.mxu0 %v223
      %389 = vmatprep.subr.mxu0 0.0
      %390 = vmatpush2.msra.mxu0 %v222
      %391 = vmatprep.subr.mxu0 0.0
      %392 = vmatpush2.msra.mxu0 %v221
      %393 = vmatprep.subr.mxu0 0.0
      %394 = vmatpush2.msra.mxu0 %v220
      %395 = vmatprep.subr.mxu0 0.0
      %396 = vmatpush2.msra.mxu0 %v219
      %397 = vmatprep.subr.mxu0 0.0
      %398 = vmatpush2.msra.mxu0 %v218
      %399 = vmatprep.mubr.f32.mxu0 %v239
      %400 = vmatmul.mubr.f32.gmra.mxu0 %v238
      %v401 = vpop.f32.mrf.mxu0
      %v402 = vadd.f32 %v273, %v401
      %v403 = vpop.f32.mrf.mxu0
      %404 = vmatprep.mubr.f32.mxu0 %v242
      %405 = vmatmul.mubr.f32.gmra.mxu0 %v241
      %v406 = vpop.f32.mrf.mxu0
      %v407 = vadd.f32 %v278, %v406
      %v408 = vpop.f32.mrf.mxu0
      %409 = vmatprep.mubr.f32.mxu0 %v245
      %410 = vmatmul.mubr.f32.gmra.mxu0 %v244
      %v411 = vpop.f32.mrf.mxu0
      %v412 = vadd.f32 %v283, %v411
      %v413 = vpop.f32.mrf.mxu0
      %414 = vmatprep.mubr.f32.mxu0 %v248
      %415 = vmatmul.mubr.f32.gmra.mxu0 %v247
      %v416 = vpop.f32.mrf.mxu0
      %v417 = vadd.f32 %v288, %v416
      %v418 = vpop.f32.mrf.mxu0
      %419 = vmatprep.mubr.f32.mxu0 %v251
      %420 = vmatmul.mubr.f32.gmra.mxu0 %v250
      %v421 = vpop.f32.mrf.mxu0
      %v422 = vadd.f32 %v293, %v421
      %v423 = vpop.f32.mrf.mxu0
      %424 = vmatprep.mubr.f32.mxu0 %v254
      %425 = vmatmul.mubr.f32.gmra.mxu0 %v253
      %v426 = vpop.f32.mrf.mxu0
      %v427 = vadd.f32 %v298, %v426
      %v428 = vpop.f32.mrf.mxu0
      %429 = vmatprep.mubr.f32.mxu0 %v257
      %430 = vmatmul.mubr.f32.gmra.mxu0 %v256
      %v431 = vpop.f32.mrf.mxu0
      %v432 = vadd.f32 %v303, %v431
      %v433 = vpop.f32.mrf.mxu0
      %434 = vmatprep.mubr.f32.mxu0 %v260
      %435 = vmatmul.mubr.f32.gmra.mxu0 %v259
      %v436 = vpop.f32.mrf.mxu0
      %v437 = vadd.f32 %v308, %v436
      %v438 = vpop.f32.mrf.mxu0
      %439 = vdwg.mxu0
      %440 = vmatprep.subr.mxu0 0.0
      %441 = vmatpush1.msra.mxu0 0.0
      %442 = vmatprep.subr.mxu0 0.0
      %443 = vmatpush1.msra.mxu0 0.0
      %444 = vmatprep.subr.mxu0 0.0
      %445 = vmatpush1.msra.mxu0 0.0
      %446 = vmatprep.subr.mxu0 0.0
      %447 = vmatpush1.msra.mxu0 0.0
      %448 = vmatprep.subr.mxu0 0.0
      %449 = vmatpush1.msra.mxu0 0.0
      %450 = vmatprep.subr.mxu0 0.0
      %451 = vmatpush1.msra.mxu0 0.0
      %452 = vmatprep.subr.mxu0 0.0
      %453 = vmatpush1.msra.mxu0 0.0
      %454 = vmatprep.subr.mxu0 0.0
      %455 = vmatpush1.msra.mxu0 0.0
      %456 = vmatprep.subr.mxu0 0.0
      %457 = vmatpush1.msra.mxu0 0.0
      %458 = vmatprep.subr.mxu0 0.0
      %459 = vmatpush1.msra.mxu0 0.0
      %460 = vmatprep.subr.mxu0 0.0
      %461 = vmatpush1.msra.mxu0 0.0
      %462 = vmatprep.subr.mxu0 0.0
      %463 = vmatpush1.msra.mxu0 0.0
      %464 = vmatprep.subr.mxu0 0.0
      %465 = vmatpush1.msra.mxu0 %v237
      %466 = vmatprep.subr.mxu0 0.0
      %467 = vmatpush1.msra.mxu0 %v236
      %468 = vmatprep.subr.mxu0 0.0
      %469 = vmatpush1.msra.mxu0 %v235
      %470 = vmatprep.subr.mxu0 0.0
      %471 = vmatpush1.msra.mxu0 %v234
      %472 = vmatprep.subr.mxu0 0.0
      %473 = vmatpush2.msra.mxu0 0.0
      %474 = vmatprep.subr.mxu0 0.0
      %475 = vmatpush2.msra.mxu0 0.0
      %476 = vmatprep.subr.mxu0 0.0
      %477 = vmatpush2.msra.mxu0 0.0
      %478 = vmatprep.subr.mxu0 0.0
      %479 = vmatpush2.msra.mxu0 0.0
      %480 = vmatprep.subr.mxu0 0.0
      %481 = vmatpush2.msra.mxu0 0.0
      %482 = vmatprep.subr.mxu0 0.0
      %483 = vmatpush2.msra.mxu0 0.0
      %484 = vmatprep.subr.mxu0 0.0
      %485 = vmatpush2.msra.mxu0 0.0
      %486 = vmatprep.subr.mxu0 0.0
      %487 = vmatpush2.msra.mxu0 0.0
      %488 = vmatprep.subr.mxu0 0.0
      %489 = vmatpush2.msra.mxu0 0.0
      %490 = vmatprep.subr.mxu0 0.0
      %491 = vmatpush2.msra.mxu0 0.0
      %492 = vmatprep.subr.mxu0 0.0
      %493 = vmatpush2.msra.mxu0 0.0
      %494 = vmatprep.subr.mxu0 0.0
      %495 = vmatpush2.msra.mxu0 0.0
      %496 = vmatprep.subr.mxu0 0.0
      %497 = vmatpush2.msra.mxu0 0.0
      %498 = vmatprep.subr.mxu0 0.0
      %499 = vmatpush2.msra.mxu0 0.0
      %500 = vmatprep.subr.mxu0 0.0
      %501 = vmatpush2.msra.mxu0 0.0
      %502 = vmatprep.subr.mxu0 0.0
      %503 = vmatpush2.msra.mxu0 0.0
      %504 = vmatprep.mubr.f32.mxu0 0.0
      %505 = vmatmul.mubr.f32.gmra.mxu0 %v312
      %v506 = vpop.f32.mrf.mxu0
      %v507 = vadd.f32 %v402, %v506
      %v508 = vpop.f32.mrf.mxu0
      %509 = vmatprep.mubr.f32.mxu0 0.0
      %510 = vmatmul.mubr.f32.gmra.mxu0 %v315
      %v511 = vpop.f32.mrf.mxu0
      %v512 = vadd.f32 %v407, %v511
      %v513 = vpop.f32.mrf.mxu0
      %514 = vmatprep.mubr.f32.mxu0 0.0
      %515 = vmatmul.mubr.f32.gmra.mxu0 %v318
      %v516 = vpop.f32.mrf.mxu0
      %v517 = vadd.f32 %v412, %v516
      %v518 = vpop.f32.mrf.mxu0
      %519 = vmatprep.mubr.f32.mxu0 0.0
      %520 = vmatmul.mubr.f32.gmra.mxu0 %v321
      %v521 = vpop.f32.mrf.mxu0
      %v522 = vadd.f32 %v417, %v521
      %v523 = vpop.f32.mrf.mxu0
      %524 = vmatprep.mubr.f32.mxu0 0.0
      %525 = vmatmul.mubr.f32.gmra.mxu0 %v324
      %v526 = vpop.f32.mrf.mxu0
      %v527 = vadd.f32 %v422, %v526
      %v528 = vpop.f32.mrf.mxu0
      %529 = vmatprep.mubr.f32.mxu0 0.0
      %530 = vmatmul.mubr.f32.gmra.mxu0 %v327
      %v531 = vpop.f32.mrf.mxu0
      %v532 = vadd.f32 %v427, %v531
      %v533 = vpop.f32.mrf.mxu0
      %534 = vmatprep.mubr.f32.mxu0 0.0
      %535 = vmatmul.mubr.f32.gmra.mxu0 %v330
      %v536 = vpop.f32.mrf.mxu0
      %v537 = vadd.f32 %v432, %v536
      %v538 = vpop.f32.mrf.mxu0
      %539 = vmatprep.mubr.f32.mxu0 0.0
      %540 = vmatmul.mubr.f32.gmra.mxu0 %v333
      %v541 = vpop.f32.mrf.mxu0
      %v542 = vadd.f32 %v437, %v541
      %v543 = vpop.f32.mrf.mxu0
      %544 = vdwg.mxu0
      %vm545 = vcmask 130048
      %546 = vst.msk [vmem:[%s201] sm:$0xff] %vm545, %v507
      %547 = vst.msk [vmem:[%s201 + $0x8] sm:$0xff] %vm545, %v512
      %548 = vst.msk [vmem:[%s201 + $0x10] sm:$0xff] %vm545, %v517
      %549 = vst.msk [vmem:[%s201 + $0x18] sm:$0xff] %vm545, %v522
      %550 = vst.msk [vmem:[%s201 + $0x20] sm:$0xff] %vm545, %v527
      %551 = vst.msk [vmem:[%s201 + $0x28] sm:$0xff] %vm545, %v532
      %552 = vst.msk [vmem:[%s201 + $0x30] sm:$0xff] %vm545, %v537
      %553 = vst.msk [vmem:[%s201 + $0x38] sm:$0xff] %vm545, %v542
      %p554 = scmp.lt.s32.totalorder %s18, 1
      %s555 = scalar_select %p554, %s18, 1
      %p556 = scmp.lt.s32.totalorder %s19, 0
      %s557 = scalar_select %p556, %s19, 0
      %s558 = smul.addr %s555, 8
      %s559 = sadd.s32 %s557, %s558
      %s560 = smul.addr %s559, 8
      %s561 = scalar_lea.vmem %s3, %s560
      // Predicated region
      $region33: #{_lambda_.18} parent=31 // pred_check
        %p562 = pneg %p116
      $region34: #{_lambda_.18} parent=31 // pred_check_branch
        %564 = sbr.rel (%p562) target = $region36
      $region35: #{_lambda_.18} parent=31 // pred_region
        _
      $region36: #{_lambda_.18} parent=31 // pred_fallthru
        _
    $region32: #{_lambda_.18} parent=5 // pred_fallthru
      _
    %p565 = scmp.le.s32.totalorder 2, %s9
    // Predicated region
    $region37: #{_lambda_.18} parent=5 // pred_check
      %p566 = pneg %p565
    $region38: #{_lambda_.18} parent=5 // pred_check_branch
      %568 = sbr.rel (%p566) target = $region40
    $region39: #{_lambda_.18} parent=5 // pred_region
      %s569 = ssub.s32 %s9, 2
      // Predicated region
      $region41: #{_lambda_.18} parent=39 // pred_check
        %p570 = pneg %p122
      $region42: #{_lambda_.18} parent=39 // pred_check_branch
        %572 = sbr.rel (%p570) target = $region44
      $region43: #{_lambda_.18} parent=39 // pred_region
        %p573 = scmp.lt.s32.totalorder %s20, 1
        %s574 = scalar_select %p573, %s20, 1
        %p575 = scmp.lt.s32.totalorder %s21, 0
        %s576 = scalar_select %p575, %s21, 0
        %s577 = smul.addr %s574, 8
        %s578 = sadd.s32 %s576, %s577
        %s579 = smul.addr %s578, 8
        %s580 = scalar_lea.vmem %s3, %s579
      $region44: #{_lambda_.18} parent=39 // pred_fallthru
        _
    $region40: #{_lambda_.18} parent=5 // pred_fallthru
      _
  $region6: #{_lambda_.18} parent=0 // loop_footer
    %s13 = sadd.s32 1, %s9
  $region7: #{_lambda_.18} parent=0 // loop_footer_branch
    %8 = sbr.rel target = $region3
  $region8: #{_lambda_.18} parent=0 // loop_exit
    _

// kernel: _lambda_.19
$region0: #{_lambda_.19}
  #allocation0 [shape = 'u32[]', space=smem, size = 0x4, offset = 0x4, fixed_abs, tag = 'smem constant byte address 0x4 - core index']
  #allocation1 [shape = 'u32[144,128]{1,0:T(1,128)}', space=vmem, size = 0x12000, scoped, tag = 'internal scratch']
  %s0 = inlined_call_operand.vmem [shape: f32[3,2,64,16], index: 0, kind: input, shape index: {}]
  %s1 = inlined_call_operand.vmem [shape: f32[2,64,16], index: 1, kind: output, shape index: {}]
  %s2 = sld [smem:[#allocation0]]
  $region75: #{_lambda_.19} parent=0
    _
  %s4 = ssub.s32 1, %s2
  %s5 = scalar_select 0, %s4, %s2
  $region1: #{_lambda_.19} parent=0
    #allocation2 [shape = 'u8[196608]{0}', space=vmem, size = 0x30000, scoped, tag = 'input window, operand 0']
    loop: start=0, step=1, limit=4
    $region2: #{_lambda_.19} parent=1 // loop_pre_header
      _
    $region3: #{_lambda_.19} parent=1 // loop_header
      %s7 = sphi 0, %s11
      %p8 = scmp.ge.s32.totalorder %s7, 4
      %s14 = sphi 0, %s26
      %s15 = sphi 0, %s22
      %s16 = sphi 0, %s14
      %s17 = sphi 0, %s15
      %s18 = sphi 0, %s16
      %s19 = sphi 0, %s17
      %s31 = sphi 0, %s33
      %s34 = sphi 0, %s31
      %s35 = sphi 0, %s34
      %s51 = sphi 0, %s35
      %s59 = sphi 0, %s61
      %s62 = sphi 0, %s59
      %s63 = sphi 0, %s62
      %s79 = sphi 0, %s63
    $region4: #{_lambda_.19} parent=1 // loop_header_branch
      %10 = sbr.rel (%p8) target = $region8
    $region5: #{_lambda_.19} parent=1 // loop_body
      %s12 = ssub.s32 %s7, 1
      %s13 = ssub.s32 %s7, 2
      %s20 = sadd.s32 1, %s15
      %p21 = scmp.ge.s32.totalorder %s20, 1
      %s22 = scalar_select %p21, 0, %s20
      %s23 = sadd.s32 1, %s14
      %s24 = scalar_select %p21, %s23, %s14
      %p25 = scmp.ge.s32.totalorder %s24, 2
      %s26 = scalar_select %p25, 0, %s24
      %s27 = ssub.s32 %s14, %s26
      %s28 = ssub.s32 %s15, %s22
      %s29 = sor.u32 %s27, %s28
      %p30 = scmp.eq.s32.totalorder %s29, 0
      %s32 = sadd.s32 %s31, 1
      %s33 = scalar_select %p30, %s31, %s32
      %p36 = pneg %p30
      %p37 = scmp.eq.s32.totalorder %s7, 1
      %p38 = por %p36, %p37
      %p39 = scmp.ne.s32.totalorder %s31, %s34
      %p40 = scmp.eq.s32.totalorder %s7, 0
      %p41 = por %p39, %p40
      %p42 = scmp.ne.s32.totalorder %s31, %s34
      %p43 = scmp.eq.s32.totalorder %s12, 1
      %p44 = por %p42, %p43
      %p45 = scmp.ne.s32.totalorder %s34, %s35
      %p46 = scmp.eq.s32.totalorder %s12, 0
      %p47 = por %p45, %p46
      %p48 = scmp.ne.s32.totalorder %s34, %s35
      %p49 = scmp.eq.s32.totalorder %s13, 1
      %p50 = por %p48, %p49
      %p52 = scmp.ne.s32.totalorder %s35, %s51
      %p53 = scmp.eq.s32.totalorder %s13, 0
      %p54 = por %p52, %p53
      %s55 = ssub.s32 %s14, %s26
      %s56 = ssub.s32 %s15, %s22
      %s57 = sor.u32 %s55, %s56
      %p58 = scmp.eq.s32.totalorder %s57, 0
      %s60 = sadd.s32 %s59, 1
      %s61 = scalar_select %p58, %s59, %s60
      %p64 = pneg %p58
      %p65 = scmp.eq.s32.totalorder %s7, 1
      %p66 = por %p64, %p65
      %p67 = scmp.ne.s32.totalorder %s59, %s62
      %p68 = scmp.eq.s32.totalorder %s7, 0
      %p69 = por %p67, %p68
      %p70 = scmp.ne.s32.totalorder %s59, %s62
      %p71 = scmp.eq.s32.totalorder %s12, 1
      %p72 = por %p70, %p71
      %p73 = scmp.ne.s32.totalorder %s62, %s63
      %p74 = scmp.eq.s32.totalorder %s12, 0
      %p75 = por %p73, %p74
      %p76 = scmp.ne.s32.totalorder %s62, %s63
      %p77 = scmp.eq.s32.totalorder %s13, 1
      %p78 = por %p76, %p77
      %p80 = scmp.ne.s32.totalorder %s63, %s79
      %p81 = scmp.eq.s32.totalorder %s13, 0
      %p82 = por %p80, %p81
      %p83 = scmp.le.s32.totalorder 1, %s7
      %p84 = scmp.lt.s32.totalorder %s7, 3
      %p85 = pnand %p83, %p84
      %p86 = pneg %p85
      // Predicated region
      $region9: #{_lambda_.19} parent=5 // pred_check
        _
      $region10: #{_lambda_.19} parent=5 // pred_check_branch
        %88 = sbr.rel (%p85) target = $region12
      $region11: #{_lambda_.19} parent=5 // pred_region
        %s89 = ssub.s32 %s7, 1
      $region12: #{_lambda_.19} parent=5 // pred_fallthru
        _
      %p90 = scmp.lt.s32.totalorder %s7, 2
      // Predicated region
      $region13: #{_lambda_.19} parent=5 // pred_check
        %p91 = pneg %p90
      $region14: #{_lambda_.19} parent=5 // pred_check_branch
        %93 = sbr.rel (%p91) target = $region16
      $region15: #{_lambda_.19} parent=5 // pred_region
        // Predicated region
        $region17: #{_lambda_.19} parent=15 // pred_check
          %p94 = pneg %p41
        $region18: #{_lambda_.19} parent=15 // pred_check_branch
          %96 = sbr.rel (%p94) target = $region20
        $region19: #{_lambda_.19} parent=15 // pred_region
          %s97 = sand.u32 %s31, 1
          %s98 = sand.u32 %s31, 1
          %s99 = smul.addr %s98, 192
          %s100 = scalar_lea.vmem [#allocation2], %s99
          %s101 = smul.addr %s14, 8
          %s102 = sadd.s32 %s15, %s101
          %s103 = smul.addr %s102, 8
          %s104 = scalar_lea.vmem %s0, %s103
          // Predicated region
          $region21: #{_lambda_.19} parent=19 // pred_check
            _
          $region22: #{_lambda_.19} parent=19 // pred_check_branch
            %106 = sbr.rel (0) target = $region24
          $region23: #{_lambda_.19} parent=19 // pred_region
            // Predicated region
            $region25: #{_lambda_.19} parent=23 // pred_check
              _
            $region26: #{_lambda_.19} parent=23 // pred_check_branch
              %108 = sbr.rel (0) target = $region28
            $region27: #{_lambda_.19} parent=23 // pred_region
              // Predicated region
              $region40: #{_lambda_.19} parent=27 // pred_check
                _
              $region41: #{_lambda_.19} parent=27 // pred_check_branch
                %170 = sbr.rel (0) target = $region43
              $region42: #{_lambda_.19} parent=27 // pred_region
                loop: start=0, step=1, limit=1
                $region44: #{_lambda_.19} parent=42 // loop_pre_header
                  _
                $region45: #{_lambda_.19} parent=42 // loop_header
                  %s172 = sphi 0, %s176
                  %p173 = scmp.ge.s32.totalorder %s172, 1
                  %s177 = sphi %s104, %s104
                  %s178 = sphi %s100, %s100
                $region46: #{_lambda_.19} parent=42 // loop_header_branch
                  %175 = sbr.rel (%p173) target = $region50
                $region47: #{_lambda_.19} parent=42 // loop_body
                  %v179 = vld [vmem:[%s177] sm:$0xff]
                  %180 = vst [vmem:[%s178] sm:$0xff] %v179
                  %v181 = vld [vmem:[%s177 + $0x8] sm:$0xff]
                  %182 = vst [vmem:[%s178 + $0x8] sm:$0xff] %v181
                  %v183 = vld [vmem:[%s177 + $0x10] sm:$0xff]
                  %184 = vst [vmem:[%s178 + $0x10] sm:$0xff] %v183
                  %v185 = vld [vmem:[%s177 + $0x18] sm:$0xff]
                  %186 = vst [vmem:[%s178 + $0x18] sm:$0xff] %v185
                  %v187 = vld [vmem:[%s177 + $0x20] sm:$0xff]
                  %188 = vst [vmem:[%s178 + $0x20] sm:$0xff] %v187
                  %v189 = vld [vmem:[%s177 + $0x28] sm:$0xff]
                  %190 = vst [vmem:[%s178 + $0x28] sm:$0xff] %v189
                  %v191 = vld [vmem:[%s177 + $0x30] sm:$0xff]
                  %192 = vst [vmem:[%s178 + $0x30] sm:$0xff] %v191
                  %v193 = vld [vmem:[%s177 + $0x38] sm:$0xff]
                  %194 = vst [vmem:[%s178 + $0x38] sm:$0xff] %v193
                  %v195 = vld [vmem:[%s177 + $0x80] sm:$0xff]
                  %196 = vst [vmem:[%s178 + $0x40] sm:$0xff] %v195
                  %v197 = vld [vmem:[%s177 + $0x88] sm:$0xff]
                  %198 = vst [vmem:[%s178 + $0x48] sm:$0xff] %v197
                  %v199 = vld [vmem:[%s177 + $0x90] sm:$0xff]
                  %200 = vst [vmem:[%s178 + $0x50] sm:$0xff] %v199
                  %v201 = vld [vmem:[%s177 + $0x98] sm:$0xff]
                  %202 = vst [vmem:[%s178 + $0x58] sm:$0xff] %v201
                  %v203 = vld [vmem:[%s177 + $0xa0] sm:$0xff]
                  %204 = vst [vmem:[%s178 + $0x60] sm:$0xff] %v203
                  %v205 = vld [vmem:[%s177 + $0xa8] sm:$0xff]
                  %206 = vst [vmem:[%s178 + $0x68] sm:$0xff] %v205
                  %v207 = vld [vmem:[%s177 + $0xb0] sm:$0xff]
                  %208 = vst [vmem:[%s178 + $0x70] sm:$0xff] %v207
                  %v209 = vld [vmem:[%s177 + $0xb8] sm:$0xff]
                  %210 = vst [vmem:[%s178 + $0x78] sm:$0xff] %v209
                  %v211 = vld [vmem:[%s177 + $0x100] sm:$0xff]
                  %212 = vst [vmem:[%s178 + $0x80] sm:$0xff] %v211
                  %v213 = vld [vmem:[%s177 + $0x108] sm:$0xff]
                  %214 = vst [vmem:[%s178 + $0x88] sm:$0xff] %v213
                  %v215 = vld [vmem:[%s177 + $0x110] sm:$0xff]
                  %216 = vst [vmem:[%s178 + $0x90] sm:$0xff] %v215
                  %v217 = vld [vmem:[%s177 + $0x118] sm:$0xff]
                  %218 = vst [vmem:[%s178 + $0x98] sm:$0xff] %v217
                  %v219 = vld [vmem:[%s177 + $0x120] sm:$0xff]
                  %220 = vst [vmem:[%s178 + $0xa0] sm:$0xff] %v219
                  %v221 = vld [vmem:[%s177 + $0x128] sm:$0xff]
                  %222 = vst [vmem:[%s178 + $0xa8] sm:$0xff] %v221
                  %v223 = vld [vmem:[%s177 + $0x130] sm:$0xff]
                  %224 = vst [vmem:[%s178 + $0xb0] sm:$0xff] %v223
                  %v225 = vld [vmem:[%s177 + $0x138] sm:$0xff]
                  %226 = vst [vmem:[%s178 + $0xb8] sm:$0xff] %v225
                $region48: #{_lambda_.19} parent=42 // loop_footer
                  %s176 = sadd.s32 1, %s172
                $region49: #{_lambda_.19} parent=42 // loop_footer_branch
                  %171 = sbr.rel target = $region45
                $region50: #{_lambda_.19} parent=42 // loop_exit
                  _
              $region43: #{_lambda_.19} parent=27 // pred_fallthru
                _
              // Predicated region
              $region51: #{_lambda_.19} parent=27 // pred_check
                _
              $region52: #{_lambda_.19} parent=27 // pred_check_branch
                %228 = sbr.rel target = $region54
              $region53: #{_lambda_.19} parent=27 // pred_region
                _
              $region54: #{_lambda_.19} parent=27 // pred_fallthru
                _
            $region28: #{_lambda_.19} parent=23 // pred_fallthru
              _
            // Predicated region
            $region29: #{_lambda_.19} parent=23 // pred_check
              _
            $region30: #{_lambda_.19} parent=23 // pred_check_branch
              %110 = sbr.rel target = $region32
            $region31: #{_lambda_.19} parent=23 // pred_region
              %s112 = ssub.s32 256, 1
              loop: start=0, step=1, limit=1
              $region33: #{_lambda_.19} parent=31 // loop_pre_header
                _
              $region34: #{_lambda_.19} parent=31 // loop_header
                %s114 = sphi 0, %s118
                %p115 = scmp.ge.s32.totalorder %s114, 1
                %s119 = sphi %s104, %s104
                %s120 = sphi %s100, %s100
              $region35: #{_lambda_.19} parent=31 // loop_header_branch
                %117 = sbr.rel (%p115) target = $region39
              $region36: #{_lambda_.19} parent=31 // loop_body
                %v121 = vld [vmem:[%s119] sm:%s112]
                %122 = vst [vmem:[%s120] sm:%s112] %v121
                %v123 = vld [vmem:[%s119 + $0x8] sm:%s112]
                %124 = vst [vmem:[%s120 + $0x8] sm:%s112] %v123
                %v125 = vld [vmem:[%s119 + $0x10] sm:%s112]
                %126 = vst [vmem:[%s120 + $0x10] sm:%s112] %v125
                %v127 = vld [vmem:[%s119 + $0x18] sm:%s112]
                %128 = vst [vmem:[%s120 + $0x18] sm:%s112] %v127
                %v129 = vld [vmem:[%s119 + $0x20] sm:%s112]
                %130 = vst [vmem:[%s120 + $0x20] sm:%s112] %v129
                %v131 = vld [vmem:[%s119 + $0x28] sm:%s112]
                %132 = vst [vmem:[%s120 + $0x28] sm:%s112] %v131
                %v133 = vld [vmem:[%s119 + $0x30] sm:%s112]
                %134 = vst [vmem:[%s120 + $0x30] sm:%s112] %v133
                %v135 = vld [vmem:[%s119 + $0x38] sm:%s112]
                %136 = vst [vmem:[%s120 + $0x38] sm:%s112] %v135
                %v137 = vld [vmem:[%s119 + $0x80] sm:%s112]
                %138 = vst [vmem:[%s120 + $0x40] sm:%s112] %v137
                %v139 = vld [vmem:[%s119 + $0x88] sm:%s112]
                %140 = vst [vmem:[%s120 + $0x48] sm:%s112] %v139
                %v141 = vld [vmem:[%s119 + $0x90] sm:%s112]
                %142 = vst [vmem:[%s120 + $0x50] sm:%s112] %v141
                %v143 = vld [vmem:[%s119 + $0x98] sm:%s112]
                %144 = vst [vmem:[%s120 + $0x58] sm:%s112] %v143
                %v145 = vld [vmem:[%s119 + $0xa0] sm:%s112]
                %146 = vst [vmem:[%s120 + $0x60] sm:%s112] %v145
                %v147 = vld [vmem:[%s119 + $0xa8] sm:%s112]
                %148 = vst [vmem:[%s120 + $0x68] sm:%s112] %v147
                %v149 = vld [vmem:[%s119 + $0xb0] sm:%s112]
                %150 = vst [vmem:[%s120 + $0x70] sm:%s112] %v149
                %v151 = vld [vmem:[%s119 + $0xb8] sm:%s112]
                %152 = vst [vmem:[%s120 + $0x78] sm:%s112] %v151
                %v153 = vld [vmem:[%s119 + $0x100] sm:%s112]
                %154 = vst [vmem:[%s120 + $0x80] sm:%s112] %v153
                %v155 = vld [vmem:[%s119 + $0x108] sm:%s112]
                %156 = vst [vmem:[%s120 + $0x88] sm:%s112] %v155
                %v157 = vld [vmem:[%s119 + $0x110] sm:%s112]
                %158 = vst [vmem:[%s120 + $0x90] sm:%s112] %v157
                %v159 = vld [vmem:[%s119 + $0x118] sm:%s112]
                %160 = vst [vmem:[%s120 + $0x98] sm:%s112] %v159
                %v161 = vld [vmem:[%s119 + $0x120] sm:%s112]
                %162 = vst [vmem:[%s120 + $0xa0] sm:%s112] %v161
                %v163 = vld [vmem:[%s119 + $0x128] sm:%s112]
                %164 = vst [vmem:[%s120 + $0xa8] sm:%s112] %v163
                %v165 = vld [vmem:[%s119 + $0x130] sm:%s112]
                %166 = vst [vmem:[%s120 + $0xb0] sm:%s112] %v165
                %v167 = vld [vmem:[%s119 + $0x138] sm:%s112]
                %168 = vst [vmem:[%s120 + $0xb8] sm:%s112] %v167
              $region37: #{_lambda_.19} parent=31 // loop_footer
                %s118 = sadd.s32 1, %s114
              $region38: #{_lambda_.19} parent=31 // loop_footer_branch
                %113 = sbr.rel target = $region34
              $region39: #{_lambda_.19} parent=31 // loop_exit
                _
            $region32: #{_lambda_.19} parent=23 // pred_fallthru
              _
          $region24: #{_lambda_.19} parent=19 // pred_fallthru
            _
          %229 = vnop
        $region20: #{_lambda_.19} parent=15 // pred_fallthru
          _
      $region16: #{_lambda_.19} parent=5 // pred_fallthru
        _
      %p230 = scmp.le.s32.totalorder 1, %s7
      %p231 = scmp.lt.s32.totalorder %s7, 3
      %p232 = pnand %p230, %p231
      %p233 = pneg %p232
      // Predicated region
      $region55: #{_lambda_.19} parent=5 // pred_check
        _
      $region56: #{_lambda_.19} parent=5 // pred_check_branch
        %235 = sbr.rel (%p232) target = $region58
      $region57: #{_lambda_.19} parent=5 // pred_region
        %s236 = ssub.s32 %s7, 1
        %s237 = sand.u32 %s34, 1
        %s238 = sand.u32 %s34, 1
        %s239 = smul.addr %s238, 192
        %s240 = scalar_lea.vmem [#allocation2], %s239
        // Predicated region
        $region59: #{_lambda_.19} parent=57 // pred_check
          %p241 = pneg %p47
        $region60: #{_lambda_.19} parent=57 // pred_check_branch
          %243 = sbr.rel (%p241) target = $region62
        $region61: #{_lambda_.19} parent=57 // pred_region
          _
        $region62: #{_lambda_.19} parent=57 // pred_fallthru
          _
        %s244 = sand.u32 %s34, 1
        %s245 = sand.u32 %s34, 1
        %s246 = smul.addr %s245, 192
        %s247 = scalar_lea.vmem [#allocation2], %s246
        %p248 = pneg %p47
        %p249 = pneg %p44
        %p250 = pneg %p75
        %p251 = pneg %p72
        %p252 = scmp.lt.s32.totalorder %s16, 1
        %s253 = scalar_select %p252, %s16, 1
        %p254 = scmp.lt.s32.totalorder %s17, 0
        %s255 = scalar_select %p254, %s17, 0
        %s256 = smul.addr %s253, 8
        %s257 = sadd.s32 %s255, %s256
        %s258 = smul.addr %s257, 8
        %s259 = scalar_lea.vmem %s1, %s258
        %p260 = scmp.lt.s32.totalorder %s16, 1
        %s261 = scalar_select %p260, %s16, 1
        %p262 = scmp.lt.s32.totalorder %s17, 0
        %s263 = scalar_select %p262, %s17, 0
        %s264 = smul.addr %s261, 8
        %s265 = sadd.s32 %s263, %s264
        %s266 = smul.addr %s265, 8
        %s267 = scalar_lea.vmem %s1, %s266
        %v268 = vld [vmem:[%s240] sm:$0xff]
        %v269 = vld [vmem:[%s240 + $0x8] sm:$0xff]
        %v270 = vld [vmem:[%s240 + $0x10] sm:$0xff]
        %v271 = vld [vmem:[%s240 + $0x18] sm:$0xff]
        %v272 = vld [vmem:[%s240 + $0x20] sm:$0xff]
        %v273 = vld [vmem:[%s240 + $0x28] sm:$0xff]
        %v274 = vld [vmem:[%s240 + $0x30] sm:$0xff]
        %v275 = vld [vmem:[%s240 + $0x38] sm:$0xff]
        %v276 = vld [vmem:[%s240 + $0x40] sm:$0xff]
        %v277 = vld [vmem:[%s240 + $0x48] sm:$0xff]
        %v278 = vld [vmem:[%s240 + $0x50] sm:$0xff]
        %v279 = vld [vmem:[%s240 + $0x58] sm:$0xff]
        %v280 = vld [vmem:[%s240 + $0x60] sm:$0xff]
        %v281 = vld [vmem:[%s240 + $0x68] sm:$0xff]
        %v282 = vld [vmem:[%s240 + $0x70] sm:$0xff]
        %v283 = vld [vmem:[%s240 + $0x78] sm:$0xff]
        %v284 = vld [vmem:[%s240 + $0x80] sm:$0xff]
        %v285 = vld [vmem:[%s240 + $0x88] sm:$0xff]
        %v286 = vld [vmem:[%s240 + $0x90] sm:$0xff]
        %v287 = vld [vmem:[%s240 + $0x98] sm:$0xff]
        %v288 = vld [vmem:[%s240 + $0xa0] sm:$0xff]
        %v289 = vld [vmem:[%s240 + $0xa8] sm:$0xff]
        %v290 = vld [vmem:[%s240 + $0xb0] sm:$0xff]
        %v291 = vld [vmem:[%s240 + $0xb8] sm:$0xff]
        %vm292 = vcmask 130048
        %v293 = vsel %vm292, %v268, 0.0
        %v294 = vsel %vm292, %v276, 0.0
        %v295 = vadd.f32 %v293, %v294
        %v296 = vsel %vm292, %v284, 0.0
        %v297 = vadd.f32 %v295, %v296
        %v298 = vsel %vm292, %v269, 0.0
        %v299 = vsel %vm292, %v277, 0.0
        %v300 = vadd.f32 %v298, %v299
        %v301 = vsel %vm292, %v285, 0.0
        %v302 = vadd.f32 %v300, %v301
        %v303 = vsel %vm292, %v270, 0.0
        %v304 = vsel %vm292, %v278, 0.0
        %v305 = vadd.f32 %v303, %v304
        %v306 = vsel %vm292, %v286, 0.0
        %v307 = vadd.f32 %v305, %v306
        %v308 = vsel %vm292, %v271, 0.0
        %v309 = vsel %vm292, %v279, 0.0
        %v310 = vadd.f32 %v308, %v309
        %v311 = vsel %vm292, %v287, 0.0
        %v312 = vadd.f32 %v310, %v311
        %v313 = vsel %vm292, %v272, 0.0
        %v314 = vsel %vm292, %v280, 0.0
        %v315 = vadd.f32 %v313, %v314
        %v316 = vsel %vm292, %v288, 0.0
        %v317 = vadd.f32 %v315, %v316
        %v318 = vsel %vm292, %v273, 0.0
        %v319 = vsel %vm292, %v281, 0.0
        %v320 = vadd.f32 %v318, %v319
        %v321 = vsel %vm292, %v289, 0.0
        %v322 = vadd.f32 %v320, %v321
        %v323 = vsel %vm292, %v274, 0.0
        %v324 = vsel %vm292, %v282, 0.0
        %v325 = vadd.f32 %v323, %v324
        %v326 = vsel %vm292, %v290, 0.0
        %v327 = vadd.f32 %v325, %v326
        %v328 = vsel %vm292, %v275, 0.0
        %v329 = vsel %vm292, %v283, 0.0
        %v330 = vadd.f32 %v328, %v329
        %v331 = vsel %vm292, %v291, 0.0
        %v332 = vadd.f32 %v330, %v331
        %v333 = vadd.f32 %v297, 3.0
        %v334 = vadd.f32 %v302, 3.0
        %v335 = vadd.f32 %v307, 3.0
        %v336 = vadd.f32 %v312, 3.0
        %v337 = vadd.f32 %v317, 3.0
        %v338 = vadd.f32 %v322, 3.0
        %v339 = vadd.f32 %v327, 3.0
        %v340 = vadd.f32 %v332, 3.0
        %v341 = vmax.f32 %v333, 0.0
        %v342 = vmax.f32 %v334, 0.0
        %v343 = vmax.f32 %v335, 0.0
        %v344 = vmax.f32 %v336, 0.0
        %v345 = vmax.f32 %v337, 0.0
        %v346 = vmax.f32 %v338, 0.0
        %v347 = vmax.f32 %v339, 0.0
        %v348 = vmax.f32 %v340, 0.0
        %v349 = vmin.f32 %v341, 6.0
        %v350 = vmin.f32 %v342, 6.0
        %v351 = vmin.f32 %v343, 6.0
        %v352 = vmin.f32 %v344, 6.0
        %v353 = vmin.f32 %v345, 6.0
        %v354 = vmin.f32 %v346, 6.0
        %v355 = vmin.f32 %v347, 6.0
        %v356 = vmin.f32 %v348, 6.0
        %v357 = vmul.f32 %v297, %v349
        %v358 = vmul.f32 %v302, %v350
        %v359 = vmul.f32 %v307, %v351
        %v360 = vmul.f32 %v312, %v352
        %v361 = vmul.f32 %v317, %v353
        %v362 = vmul.f32 %v322, %v354
        %v363 = vmul.f32 %v327, %v355
        %v364 = vmul.f32 %v332, %v356
        %v365 = vmul.f32 %v357, 0.16666667
        %v366 = vmul.f32 %v358, 0.16666667
        %v367 = vmul.f32 %v359, 0.16666667
        %v368 = vmul.f32 %v360, 0.16666667
        %v369 = vmul.f32 %v361, 0.16666667
        %v370 = vmul.f32 %v362, 0.16666667
        %v371 = vmul.f32 %v363, 0.16666667
        %v372 = vmul.f32 %v364, 0.16666667
        %373 = vst.msk [vmem:[%s267] sm:$0xff] %vm292, %v365
        %374 = vst.msk [vmem:[%s267 + $0x8] sm:$0xff] %vm292, %v366
        %375 = vst.msk [vmem:[%s267 + $0x10] sm:$0xff] %vm292, %v367
        %376 = vst.msk [vmem:[%s267 + $0x18] sm:$0xff] %vm292, %v368
        %377 = vst.msk [vmem:[%s267 + $0x20] sm:$0xff] %vm292, %v369
        %378 = vst.msk [vmem:[%s267 + $0x28] sm:$0xff] %vm292, %v370
        %379 = vst.msk [vmem:[%s267 + $0x30] sm:$0xff] %vm292, %v371
        %380 = vst.msk [vmem:[%s267 + $0x38] sm:$0xff] %vm292, %v372
        %p381 = scmp.lt.s32.totalorder %s16, 1
        %s382 = scalar_select %p381, %s16, 1
        %p383 = scmp.lt.s32.totalorder %s17, 0
        %s384 = scalar_select %p383, %s17, 0
        %s385 = smul.addr %s382, 8
        %s386 = sadd.s32 %s384, %s385
        %s387 = smul.addr %s386, 8
        %s388 = scalar_lea.vmem %s1, %s387
        // Predicated region
        $region63: #{_lambda_.19} parent=57 // pred_check
          %p389 = pneg %p72
        $region64: #{_lambda_.19} parent=57 // pred_check_branch
          %391 = sbr.rel (%p389) target = $region66
        $region65: #{_lambda_.19} parent=57 // pred_region
          _
        $region66: #{_lambda_.19} parent=57 // pred_fallthru
          _
      $region58: #{_lambda_.19} parent=5 // pred_fallthru
        _
      %p392 = scmp.le.s32.totalorder 2, %s7
      // Predicated region
      $region67: #{_lambda_.19} parent=5 // pred_check
        %p393 = pneg %p392
      $region68: #{_lambda_.19} parent=5 // pred_check_branch
        %395 = sbr.rel (%p393) target = $region70
      $region69: #{_lambda_.19} parent=5 // pred_region
        %s396 = ssub.s32 %s7, 2
        // Predicated region
        $region71: #{_lambda_.19} parent=69 // pred_check
          %p397 = pneg %p78
        $region72: #{_lambda_.19} parent=69 // pred_check_branch
          %399 = sbr.rel (%p397) target = $region74
        $region73: #{_lambda_.19} parent=69 // pred_region
          %p400 = scmp.lt.s32.totalorder %s18, 1
          %s401 = scalar_select %p400, %s18, 1
          %p402 = scmp.lt.s32.totalorder %s19, 0
          %s403 = scalar_select %p402, %s19, 0
          %s404 = smul.addr %s401, 8
          %s405 = sadd.s32 %s403, %s404
          %s406 = smul.addr %s405, 8
          %s407 = scalar_lea.vmem %s1, %s406
        $region74: #{_lambda_.19} parent=69 // pred_fallthru
          _
      $region70: #{_lambda_.19} parent=5 // pred_fallthru
        _
    $region6: #{_lambda_.19} parent=1 // loop_footer
      %s11 = sadd.s32 1, %s7
    $region7: #{_lambda_.19} parent=1 // loop_footer_branch
      %6 = sbr.rel target = $region3
    $region8: #{_lambda_.19} parent=1 // loop_exit
      _

// kernel: _lambda_.13
$region0: #{_lambda_.13}
  #allocation0 [shape = 'u32[]', space=smem, size = 0x4, offset = 0x4, fixed_abs, tag = 'smem constant byte address 0x4 - core index']
  #allocation1 [shape = 'u32[144,128]{1,0:T(1,128)}', space=vmem, size = 0x12000, scoped, tag = 'internal scratch']
  %s0 = inlined_call_operand.vmem [shape: f32[2,144,64], index: 0, kind: input, shape index: {}]
  %s1 = inlined_call_operand.vmem [shape: f32[32,144], index: 1, kind: input, shape index: {}]
  %s2 = inlined_call_operand.vmem [shape: f32[32,1], index: 2, kind: input, shape index: {}]
  %s3 = inlined_call_operand.vmem [shape: f32[2,32,64], index: 3, kind: output, shape index: {}]
  %s4 = sld [smem:[#allocation0]]
  $region45: #{_lambda_.13} parent=0
    _
  %s6 = ssub.s32 1, %s4
  %s7 = scalar_select 0, %s6, %s4
  loop: start=0, step=1, limit=4
  $region2: #{_lambda_.13} parent=0 // loop_pre_header
    _
  $region3: #{_lambda_.13} parent=0 // loop_header
    %s9 = sphi 0, %s13
    %p10 = scmp.ge.s32.totalorder %s9, 4
    %s16 = sphi 0, %s28
    %s17 = sphi 0, %s24
    %s18 = sphi 0, %s16
    %s19 = sphi 0, %s17
    %s20 = sphi 0, %s18
    %s21 = sphi 0, %s19
    %s33 = sphi 0, %s35
    %s36 = sphi 0, %s33
    %s37 = sphi 0, %s36
    %s53 = sphi 0, %s37
    %s57 = sphi 0, %s57
    %s59 = sphi 0, %s57
    %s60 = sphi 0, %s59
    %s74 = sphi 0, %s60
    %s78 = sphi 0, %s78
    %s80 = sphi 0, %s78
    %s81 = sphi 0, %s80
    %s95 = sphi 0, %s81
    %s103 = sphi 0, %s105
    %s106 = sphi 0, %s103
    %s107 = sphi 0, %s106
    %s123 = sphi 0, %s107
  $region4: #{_lambda_.13} parent=0 // loop_header_branch
    %12 = sbr.rel (%p10) target = $region8
  $region5: #{_lambda_.13} parent=0 // loop_body
    %s14 = ssub.s32 %s9, 1
    %s15 = ssub.s32 %s9, 2
    %s22 = sadd.s32 1, %s17
    %p23 = scmp.ge.s32.totalorder %s22, 1
    %s24 = scalar_select %p23, 0, %s22
    %s25 = sadd.s32 1, %s16
    %s26 = scalar_select %p23, %s25, %s16
    %p27 = scmp.ge.s32.totalorder %s26, 2
    %s28 = scalar_select %p27, 0, %s26
    %s29 = ssub.s32 %s16, %s28
    %s30 = ssub.s32 %s17, %s24
    %s31 = sor.u32 %s29, %s30
    %p32 = scmp.eq.s32.totalorder %s31, 0
    %s34 = sadd.s32 %s33, 1
    %s35 = scalar_select %p32, %s33, %s34
    %p38 = pneg %p32
    %p39 = scmp.eq.s32.totalorder %s9, 1
    %p40 = por %p38, %p39
    %p41 = scmp.ne.s32.totalorder %s33, %s36
    %p42 = scmp.eq.s32.totalorder %s9, 0
    %p43 = por %p41, %p42
    %p44 = scmp.ne.s32.totalorder %s33, %s36
    %p45 = scmp.eq.s32.totalorder %s14, 1
    %p46 = por %p44, %p45
    %p47 = scmp.ne.s32.totalorder %s36, %s37
    %p48 = scmp.eq.s32.totalorder %s14, 0
    %p49 = por %p47, %p48
    %p50 = scmp.ne.s32.totalorder %s36, %s37
    %p51 = scmp.eq.s32.totalorder %s15, 1
    %p52 = por %p50, %p51
    %p54 = scmp.ne.s32.totalorder %s37, %s53
    %p55 = scmp.eq.s32.totalorder %s15, 0
    %p56 = por %p54, %p55
    %s58 = sadd.s32 %s57, 1
    %p61 = scmp.eq.s32.totalorder %s9, 1
    %p62 = scmp.ne.s32.totalorder %s57, %s59
    %p63 = scmp.eq.s32.totalorder %s9, 0
    %p64 = por %p62, %p63
    %p65 = scmp.ne.s32.totalorder %s57, %s59
    %p66 = scmp.eq.s32.totalorder %s14, 1
    %p67 = por %p65, %p66
    %p68 = scmp.ne.s32.totalorder %s59, %s60
    %p69 = scmp.eq.s32.totalorder %s14, 0
    %p70 = por %p68, %p69
    %p71 = scmp.ne.s32.totalorder %s59, %s60
    %p72 = scmp.eq.s32.totalorder %s15, 1
    %p73 = por %p71, %p72
    %p75 = scmp.ne.s32.totalorder %s60, %s74
    %p76 = scmp.eq.s32.totalorder %s15, 0
    %p77 = por %p75, %p76
    %s79 = sadd.s32 %s78, 1
    %p82 = scmp.eq.s32.totalorder %s9, 1
    %p83 = scmp.ne.s32.totalorder %s78, %s80
    %p84 = scmp.eq.s32.totalorder %s9, 0
    %p85 = por %p83, %p84
    %p86 = scmp.ne.s32.totalorder %s78, %s80
    %p87 = scmp.eq.s32.totalorder %s14, 1
    %p88 = por %p86, %p87
    %p89 = scmp.ne.s32.totalorder %s80, %s81
    %p90 = scmp.eq.s32.totalorder %s14, 0
    %p91 = por %p89, %p90
    %p92 = scmp.ne.s32.totalorder %s80, %s81
    %p93 = scmp.eq.s32.totalorder %s15, 1
    %p94 = por %p92, %p93
    %p96 = scmp.ne.s32.totalorder %s81, %s95
    %p97 = scmp.eq.s32.totalorder %s15, 0
    %p98 = por %p96, %p97
    %s99 = ssub.s32 %s16, %s28
    %s100 = ssub.s32 %s17, %s24
    %s101 = sor.u32 %s99, %s100
    %p102 = scmp.eq.s32.totalorder %s101, 0
    %s104 = sadd.s32 %s103, 1
    %s105 = scalar_select %p102, %s103, %s104
    %p108 = pneg %p102
    %p109 = scmp.eq.s32.totalorder %s9, 1
    %p110 = por %p108, %p109
    %p111 = scmp.ne.s32.totalorder %s103, %s106
    %p112 = scmp.eq.s32.totalorder %s9, 0
    %p113 = por %p111, %p112
    %p114 = scmp.ne.s32.totalorder %s103, %s106
    %p115 = scmp.eq.s32.totalorder %s14, 1
    %p116 = por %p114, %p115
    %p117 = scmp.ne.s32.totalorder %s106, %s107
    %p118 = scmp.eq.s32.totalorder %s14, 0
    %p119 = por %p117, %p118
    %p120 = scmp.ne.s32.totalorder %s106, %s107
    %p121 = scmp.eq.s32.totalorder %s15, 1
    %p122 = por %p120, %p121
    %p124 = scmp.ne.s32.totalorder %s107, %s123
    %p125 = scmp.eq.s32.totalorder %s15, 0
    %p126 = por %p124, %p125
    %p127 = scmp.le.s32.totalorder 1, %s9
    %p128 = scmp.lt.s32.totalorder %s9, 3
    %p129 = pnand %p127, %p128
    %p130 = pneg %p129
    // Predicated region
    $region9: #{_lambda_.13} parent=5 // pred_check
      _
    $region10: #{_lambda_.13} parent=5 // pred_check_branch
      %132 = sbr.rel (%p129) target = $region12
    $region11: #{_lambda_.13} parent=5 // pred_region
      %s133 = ssub.s32 %s9, 1
      // Predicated region
      $region13: #{_lambda_.13} parent=11 // pred_check
        %p134 = pneg %p70
      $region14: #{_lambda_.13} parent=11 // pred_check_branch
        %136 = sbr.rel (%p134) target = $region16
      $region15: #{_lambda_.13} parent=11 // pred_region
        _
      $region16: #{_lambda_.13} parent=11 // pred_fallthru
        _
      // Predicated region
      $region17: #{_lambda_.13} parent=11 // pred_check
        %p137 = pneg %p91
      $region18: #{_lambda_.13} parent=11 // pred_check_branch
        %139 = sbr.rel (%p137) target = $region20
      $region19: #{_lambda_.13} parent=11 // pred_region
        _
      $region20: #{_lambda_.13} parent=11 // pred_fallthru
        _
    $region12: #{_lambda_.13} parent=5 // pred_fallthru
      _
    %p140 = scmp.lt.s32.totalorder %s9, 2
    // Predicated region
    $region21: #{_lambda_.13} parent=5 // pred_check
      %p141 = pneg %p140
    $region22: #{_lambda_.13} parent=5 // pred_check_branch
      %143 = sbr.rel (%p141) target = $region24
    $region23: #{_lambda_.13} parent=5 // pred_region
      // Predicated region
      $region25: #{_lambda_.13} parent=23 // pred_check
        %p144 = pneg %p43
      $region26: #{_lambda_.13} parent=23 // pred_check_branch
        %146 = sbr.rel (%p144) target = $region28
      $region27: #{_lambda_.13} parent=23 // pred_region
        %p147 = scmp.lt.s32.totalorder %s16, 1
        %s148 = scalar_select %p147, %s16, 1
        %p149 = scmp.lt.s32.totalorder %s17, 0
        %s150 = scalar_select %p149, %s17, 0
        %s151 = smul.addr %s148, 18
        %s152 = sadd.s32 %s150, %s151
        %s153 = smul.addr %s152, 8
        %s154 = scalar_lea.vmem %s0, %s153
      $region28: #{_lambda_.13} parent=23 // pred_fallthru
        _
    $region24: #{_lambda_.13} parent=5 // pred_fallthru
      _
    %p155 = scmp.le.s32.totalorder 1, %s9
    %p156 = scmp.lt.s32.totalorder %s9, 3
    %p157 = pnand %p155, %p156
    %p158 = pneg %p157
    // Predicated region
    $region29: #{_lambda_.13} parent=5 // pred_check
      _
    $region30: #{_lambda_.13} parent=5 // pred_check_branch
      %160 = sbr.rel (%p157) target = $region32
    $region31: #{_lambda_.13} parent=5 // pred_region
      %s161 = ssub.s32 %s9, 1
      %p162 = scmp.lt.s32.totalorder %s18, 1
      %s163 = scalar_select %p162, %s18, 1
      %p164 = scmp.lt.s32.totalorder %s19, 0
      %s165 = scalar_select %p164, %s19, 0
      %s166 = smul.addr %s163, 18
      %s167 = sadd.s32 %s165, %s166
      %s168 = smul.addr %s167, 8
      %s169 = scalar_lea.vmem %s0, %s168
      %p170 = pneg %p49
      %p171 = pneg %p46
      %p172 = pneg %p70
      %p173 = pneg %p67
      %p174 = pneg %p91
      %p175 = pneg %p88
      %p176 = pneg %p119
      %p177 = pneg %p116
      %p178 = scmp.lt.s32.totalorder %s18, 1
      %s179 = scalar_select %p178, %s18, 1
      %p180 = scmp.lt.s32.totalorder %s19, 0
      %s181 = scalar_select %p180, %s19, 0
      %s182 = smul.addr %s179, 4
      %s183 = sadd.s32 %s181, %s182
      %s184 = smul.addr %s183, 8
      %s185 = scalar_lea.vmem %s3, %s184
      %p186 = scmp.lt.s32.totalorder %s18, 1
      %s187 = scalar_select %p186, %s18, 1
      %p188 = scmp.lt.s32.totalorder %s19, 0
      %s189 = scalar_select %p188, %s19, 0
      %s190 = smul.addr %s187, 18
      %s191 = sadd.s32 %s189, %s190
      %s192 = smul.addr %s191, 8
      %s193 = scalar_lea.vmem %s0, %s192
      %p194 = scmp.lt.s32.totalorder %s18, 1
      %s195 = scalar_select %p194, %s18, 1
      %p196 = scmp.lt.s32.totalorder %s19, 0
      %s197 = scalar_select %p196, %s19, 0
      %s198 = smul.addr %s195, 4
      %s199 = sadd.s32 %s197, %s198
      %s200 = smul.addr %s199, 8
      %s201 = scalar_lea.vmem %s3, %s200
      %v202 = vld [vmem:[%s193] sm:$0xff]
      %v203 = vld [vmem:[%s193 + $0x8] sm:$0xff]
      %v204 = vld [vmem:[%s193 + $0x10] sm:$0xff]
      %v205 = vld [vmem:[%s193 + $0x18] sm:$0xff]
      %v206 = vld [vmem:[%s193 + $0x20] sm:$0xff]
      %v207 = vld [vmem:[%s193 + $0x28] sm:$0xff]
      %v208 = vld [vmem:[%s193 + $0x30] sm:$0xff]
      %v209 = vld [vmem:[%s193 + $0x38] sm:$0xff]
      %v210 = vld [vmem:[%s193 + $0x40] sm:$0xff]
      %v211 = vld [vmem:[%s193 + $0x48] sm:$0xff]
      %v212 = vld [vmem:[%s193 + $0x50] sm:$0xff]
      %v213 = vld [vmem:[%s193 + $0x58] sm:$0xff]
      %v214 = vld [vmem:[%s193 + $0x60] sm:$0xff]
      %v215 = vld [vmem:[%s193 + $0x68] sm:$0xff]
      %v216 = vld [vmem:[%s193 + $0x70] sm:$0xff]
      %v217 = vld [vmem:[%s193 + $0x78] sm:$0xff]
      %v218 = vld [vmem:[%s193 + $0x80] sm:$0xff]
      %v219 = vld [vmem:[%s193 + $0x88] sm:$0xff]
      %v220 = vld [vmem:[%s1] sm:$0xff]
      %v221 = vld [vmem:[%s1 + $0x8] sm:$0xff]
      %v222 = vld [vmem:[%s1 + $0x10] sm:$0xff]
      %v223 = vld [vmem:[%s1 + $0x18] sm:$0xff]
      %v224 = vld [vmem:[%s1 + $0x20] sm:$0xff]
      %v225 = vld [vmem:[%s1 + $0x28] sm:$0xff]
      %v226 = vld [vmem:[%s1 + $0x30] sm:$0xff]
      %v227 = vld [vmem:[%s1 + $0x38] sm:$0xff]
      %v228 = vld [vmem:[%s2] sm:$0xff]
      %v229 = vld [vmem:[%s2 + $0x8] sm:$0xff]
      %v230 = vld [vmem:[%s2 + $0x10] sm:$0xff]
      %v231 = vld [vmem:[%s2 + $0x18] sm:$0xff]
      %233 = vset.pattern.permute.xlu0 0
      %234 = vperm.xlu0 %233, %v228
      %v235 = vpop.permute.xlu0 %234
      %238 = vset.pattern.permute.xlu0 0
      %239 = vperm.xlu0 %238, %v229
      %v240 = vpop.permute.xlu0 %239
      %243 = vset.pattern.permute.xlu0 0
      %244 = vperm.xlu0 %243, %v230
      %v245 = vpop.permute.xlu0 %244
      %248 = vset.pattern.permute.xlu0 0
      %249 = vperm.xlu0 %248, %v231
      %v250 = vpop.permute.xlu0 %249
      %vm252 = vcmask 130048
      %v254 = vsel %vm252, %v221, 0
      %v257 = vsel %vm252, %v223, 0
      %v260 = vsel %vm252, %v225, 0
      %v263 = vsel %vm252, %v227, 0
      %265 = vmatprep.subr.mxu0 0.0
      %266 = vmatpush1.msra.mxu0 %v217
      %267 = vmatprep.subr.mxu0 0.0
      %268 = vmatpush1.msra.mxu0 %v216
      %269 = vmatprep.subr.mxu0 0.0
      %270 = vmatpush1.msra.mxu0 %v215
      %271 = vmatprep.subr.mxu0 0.0
      %272 = vmatpush1.msra.mxu0 %v214
      %273 = vmatprep.subr.mxu0 0.0
      %274 = vmatpush1.msra.mxu0 %v213
      %275 = vmatprep.subr.mxu0 0.0
      %276 = vmatpush1.msra.mxu0 %v212
      %277 = vmatprep.subr.mxu0 0.0
      %278 = vmatpush1.msra.mxu0 %v211
      %279 = vmatprep.subr.mxu0 0.0
      %280 = vmatpush1.msra.mxu0 %v210
      %281 = vmatprep.subr.mxu0 0.0
      %282 = vmatpush1.msra.mxu0 %v209
      %283 = vmatprep.subr.mxu0 0.0
      %284 = vmatpush1.msra.mxu0 %v208
      %285 = vmatprep.subr.mxu0 0.0
      %286 = vmatpush1.msra.mxu0 %v207
      %287 = vmatprep.subr.mxu0 0.0
      %288 = vmatpush1.msra.mxu0 %v206
      %289 = vmatprep.subr.mxu0 0.0
      %290 = vmatpush1.msra.mxu0 %v205
      %291 = vmatprep.subr.mxu0 0.0
      %292 = vmatpush1.msra.mxu0 %v204
      %293 = vmatprep.subr.mxu0 0.0
      %294 = vmatpush1.msra.mxu0 %v203
      %295 = vmatprep.subr.mxu0 0.0
      %296 = vmatpush1.msra.mxu0 %v202
      %297 = vmatprep.subr.mxu0 0.0
      %298 = vmatpush2.msra.mxu0 0.0
      %299 = vmatprep.subr.mxu0 0.0
      %300 = vmatpush2.msra.mxu0 0.0
      %301 = vmatprep.subr.mxu0 0.0
      %302 = vmatpush2.msra.mxu0 0.0
      %303 = vmatprep.subr.mxu0 0.0
      %304 = vmatpush2.msra.mxu0 0.0
      %305 = vmatprep.subr.mxu0 0.0
      %306 = vmatpush2.msra.mxu0 0.0
      %307 = vmatprep.subr.mxu0 0.0
      %308 = vmatpush2.msra.mxu0 0.0
      %309 = vmatprep.subr.mxu0 0.0
      %310 = vmatpush2.msra.mxu0 0.0
      %311 = vmatprep.subr.mxu0 0.0
      %312 = vmatpush2.msra.mxu0 0.0
      %313 = vmatprep.subr.mxu0 0.0
      %314 = vmatpush2.msra.mxu0 0.0
      %315 = vmatprep.subr.mxu0 0.0
      %316 = vmatpush2.msra.mxu0 0.0
      %317 = vmatprep.subr.mxu0 0.0
      %318 = vmatpush2.msra.mxu0 0.0
      %319 = vmatprep.subr.mxu0 0.0
      %320 = vmatpush2.msra.mxu0 0.0
      %321 = vmatprep.subr.mxu0 0.0
      %322 = vmatpush2.msra.mxu0 0.0
      %323 = vmatprep.subr.mxu0 0.0
      %324 = vmatpush2.msra.mxu0 0.0
      %325 = vmatprep.subr.mxu0 0.0
      %326 = vmatpush2.msra.mxu0 %v219
      %327 = vmatprep.subr.mxu0 0.0
      %328 = vmatpush2.msra.mxu0 %v218
      %329 = vmatprep.mubr.f32.mxu0 %v254
      %330 = vmatmul.mubr.f32.gmra.mxu0 %v220
      %v331 = vpop.f32.mrf.mxu0
      %v332 = vadd.f32 %v235, %v331
      %v333 = vpop.f32.mrf.mxu0
      %334 = vmatprep.mubr.f32.mxu0 %v257
      %335 = vmatmul.mubr.f32.gmra.mxu0 %v222
      %v336 = vpop.f32.mrf.mxu0
      %v337 = vadd.f32 %v240, %v336
      %v338 = vpop.f32.mrf.mxu0
      %339 = vmatprep.mubr.f32.mxu0 %v260
      %340 = vmatmul.mubr.f32.gmra.mxu0 %v224
      %v341 = vpop.f32.mrf.mxu0
      %v342 = vadd.f32 %v245, %v341
      %v343 = vpop.f32.mrf.mxu0
      %344 = vmatprep.mubr.f32.mxu0 %v263
      %345 = vmatmul.mubr.f32.gmra.mxu0 %v226
      %v346 = vpop.f32.mrf.mxu0
      %v347 = vadd.f32 %v250, %v346
      %v348 = vpop.f32.mrf.mxu0
      %349 = vdwg.mxu0
      %vm350 = vcmask 523264
      %351 = vst.msk [vmem:[%s201] sm:$0xff] %vm350, %v332
      %352 = vst.msk [vmem:[%s201 + $0x8] sm:$0xff] %vm350, %v337
      %353 = vst.msk [vmem:[%s201 + $0x10] sm:$0xff] %vm350, %v342
      %354 = vst.msk [vmem:[%s201 + $0x18] sm:$0xff] %vm350, %v347
      %p355 = scmp.lt.s32.totalorder %s18, 1
      %s356 = scalar_select %p355, %s18, 1
      %p357 = scmp.lt.s32.totalorder %s19, 0
      %s358 = scalar_select %p357, %s19, 0
      %s359 = smul.addr %s356, 4
      %s360 = sadd.s32 %s358, %s359
      %s361 = smul.addr %s360, 8
      %s362 = scalar_lea.vmem %s3, %s361
      // Predicated region
      $region33: #{_lambda_.13} parent=31 // pred_check
        %p363 = pneg %p116
      $region34: #{_lambda_.13} parent=31 // pred_check_branch
        %365 = sbr.rel (%p363) target = $region36
      $region35: #{_lambda_.13} parent=31 // pred_region
        _
      $region36: #{_lambda_.13} parent=31 // pred_fallthru
        _
    $region32: #{_lambda_.13} parent=5 // pred_fallthru
      _
    %p366 = scmp.le.s32.totalorder 2, %s9
    // Predicated region
    $region37: #{_lambda_.13} parent=5 // pred_check
      %p367 = pneg %p366
    $region38: #{_lambda_.13} parent=5 // pred_check_branch
      %369 = sbr.rel (%p367) target = $region40
    $region39: #{_lambda_.13} parent=5 // pred_region
      %s370 = ssub.s32 %s9, 2
      // Predicated region
      $region41: #{_lambda_.13} parent=39 // pred_check
        %p371 = pneg %p122
      $region42: #{_lambda_.13} parent=39 // pred_check_branch
        %373 = sbr.rel (%p371) target = $region44
      $region43: #{_lambda_.13} parent=39 // pred_region
        %p374 = scmp.lt.s32.totalorder %s20, 1
        %s375 = scalar_select %p374, %s20, 1
        %p376 = scmp.lt.s32.totalorder %s21, 0
        %s377 = scalar_select %p376, %s21, 0
        %s378 = smul.addr %s375, 4
        %s379 = sadd.s32 %s377, %s378
        %s380 = smul.addr %s379, 8
        %s381 = scalar_lea.vmem %s3, %s380
      $region44: #{_lambda_.13} parent=39 // pred_fallthru
        _
    $region40: #{_lambda_.13} parent=5 // pred_fallthru
      _
  $region6: #{_lambda_.13} parent=0 // loop_footer
    %s13 = sadd.s32 1, %s9
  $region7: #{_lambda_.13} parent=0 // loop_footer_branch
    %8 = sbr.rel target = $region3
  $region8: #{_lambda_.13} parent=0 // loop_exit
    _

// kernel: _lambda_.14
$region0: #{_lambda_.14}
  #allocation0 [shape = 'u32[]', space=smem, size = 0x4, offset = 0x4, fixed_abs, tag = 'smem constant byte address 0x4 - core index']
  #allocation1 [shape = 'u32[144,128]{1,0:T(1,128)}', space=vmem, size = 0x12000, scoped, tag = 'internal scratch']
  %s0 = inlined_call_operand.vmem [shape: f32[2,64,16], index: 0, kind: input, shape index: {}]
  %s1 = inlined_call_operand.vmem [shape: f32[32,64], index: 1, kind: input, shape index: {}]
  %s2 = inlined_call_operand.vmem [shape: f32[32,1], index: 2, kind: input, shape index: {}]
  %s3 = inlined_call_operand.vmem [shape: f32[2,32,16], index: 3, kind: output, shape index: {}]
  %s4 = sld [smem:[#allocation0]]
  $region45: #{_lambda_.14} parent=0
    _
  %s6 = ssub.s32 1, %s4
  %s7 = scalar_select 0, %s6, %s4
  loop: start=0, step=1, limit=4
  $region2: #{_lambda_.14} parent=0 // loop_pre_header
    _
  $region3: #{_lambda_.14} parent=0 // loop_header
    %s9 = sphi 0, %s13
    %p10 = scmp.ge.s32.totalorder %s9, 4
    %s16 = sphi 0, %s28
    %s17 = sphi 0, %s24
    %s18 = sphi 0, %s16
    %s19 = sphi 0, %s17
    %s20 = sphi 0, %s18
    %s21 = sphi 0, %s19
    %s33 = sphi 0, %s35
    %s36 = sphi 0, %s33
    %s37 = sphi 0, %s36
    %s53 = sphi 0, %s37
    %s57 = sphi 0, %s57
    %s59 = sphi 0, %s57
    %s60 = sphi 0, %s59
    %s74 = sphi 0, %s60
    %s78 = sphi 0, %s78
    %s80 = sphi 0, %s78
    %s81 = sphi 0, %s80
    %s95 = sphi 0, %s81
    %s103 = sphi 0, %s105
    %s106 = sphi 0, %s103
    %s107 = sphi 0, %s106
    %s123 = sphi 0, %s107
  $region4: #{_lambda_.14} parent=0 // loop_header_branch
    %12 = sbr.rel (%p10) target = $region8
  $region5: #{_lambda_.14} parent=0 // loop_body
    %s14 = ssub.s32 %s9, 1
    %s15 = ssub.s32 %s9, 2
    %s22 = sadd.s32 1, %s17
    %p23 = scmp.ge.s32.totalorder %s22, 1
    %s24 = scalar_select %p23, 0, %s22
    %s25 = sadd.s32 1, %s16
    %s26 = scalar_select %p23, %s25, %s16
    %p27 = scmp.ge.s32.totalorder %s26, 2
    %s28 = scalar_select %p27, 0, %s26
    %s29 = ssub.s32 %s16, %s28
    %s30 = ssub.s32 %s17, %s24
    %s31 = sor.u32 %s29, %s30
    %p32 = scmp.eq.s32.totalorder %s31, 0
    %s34 = sadd.s32 %s33, 1
    %s35 = scalar_select %p32, %s33, %s34
    %p38 = pneg %p32
    %p39 = scmp.eq.s32.totalorder %s9, 1
    %p40 = por %p38, %p39
    %p41 = scmp.ne.s32.totalorder %s33, %s36
    %p42 = scmp.eq.s32.totalorder %s9, 0
    %p43 = por %p41, %p42
    %p44 = scmp.ne.s32.totalorder %s33, %s36
    %p45 = scmp.eq.s32.totalorder %s14, 1
    %p46 = por %p44, %p45
    %p47 = scmp.ne.s32.totalorder %s36, %s37
    %p48 = scmp.eq.s32.totalorder %s14, 0
    %p49 = por %p47, %p48
    %p50 = scmp.ne.s32.totalorder %s36, %s37
    %p51 = scmp.eq.s32.totalorder %s15, 1
    %p52 = por %p50, %p51
    %p54 = scmp.ne.s32.totalorder %s37, %s53
    %p55 = scmp.eq.s32.totalorder %s15, 0
    %p56 = por %p54, %p55
    %s58 = sadd.s32 %s57, 1
    %p61 = scmp.eq.s32.totalorder %s9, 1
    %p62 = scmp.ne.s32.totalorder %s57, %s59
    %p63 = scmp.eq.s32.totalorder %s9, 0
    %p64 = por %p62, %p63
    %p65 = scmp.ne.s32.totalorder %s57, %s59
    %p66 = scmp.eq.s32.totalorder %s14, 1
    %p67 = por %p65, %p66
    %p68 = scmp.ne.s32.totalorder %s59, %s60
    %p69 = scmp.eq.s32.totalorder %s14, 0
    %p70 = por %p68, %p69
    %p71 = scmp.ne.s32.totalorder %s59, %s60
    %p72 = scmp.eq.s32.totalorder %s15, 1
    %p73 = por %p71, %p72
    %p75 = scmp.ne.s32.totalorder %s60, %s74
    %p76 = scmp.eq.s32.totalorder %s15, 0
    %p77 = por %p75, %p76
    %s79 = sadd.s32 %s78, 1
    %p82 = scmp.eq.s32.totalorder %s9, 1
    %p83 = scmp.ne.s32.totalorder %s78, %s80
    %p84 = scmp.eq.s32.totalorder %s9, 0
    %p85 = por %p83, %p84
    %p86 = scmp.ne.s32.totalorder %s78, %s80
    %p87 = scmp.eq.s32.totalorder %s14, 1
    %p88 = por %p86, %p87
    %p89 = scmp.ne.s32.totalorder %s80, %s81
    %p90 = scmp.eq.s32.totalorder %s14, 0
    %p91 = por %p89, %p90
    %p92 = scmp.ne.s32.totalorder %s80, %s81
    %p93 = scmp.eq.s32.totalorder %s15, 1
    %p94 = por %p92, %p93
    %p96 = scmp.ne.s32.totalorder %s81, %s95
    %p97 = scmp.eq.s32.totalorder %s15, 0
    %p98 = por %p96, %p97
    %s99 = ssub.s32 %s16, %s28
    %s100 = ssub.s32 %s17, %s24
    %s101 = sor.u32 %s99, %s100
    %p102 = scmp.eq.s32.totalorder %s101, 0
    %s104 = sadd.s32 %s103, 1
    %s105 = scalar_select %p102, %s103, %s104
    %p108 = pneg %p102
    %p109 = scmp.eq.s32.totalorder %s9, 1
    %p110 = por %p108, %p109
    %p111 = scmp.ne.s32.totalorder %s103, %s106
    %p112 = scmp.eq.s32.totalorder %s9, 0
    %p113 = por %p111, %p112
    %p114 = scmp.ne.s32.totalorder %s103, %s106
    %p115 = scmp.eq.s32.totalorder %s14, 1
    %p116 = por %p114, %p115
    %p117 = scmp.ne.s32.totalorder %s106, %s107
    %p118 = scmp.eq.s32.totalorder %s14, 0
    %p119 = por %p117, %p118
    %p120 = scmp.ne.s32.totalorder %s106, %s107
    %p121 = scmp.eq.s32.totalorder %s15, 1
    %p122 = por %p120, %p121
    %p124 = scmp.ne.s32.totalorder %s107, %s123
    %p125 = scmp.eq.s32.totalorder %s15, 0
    %p126 = por %p124, %p125
    %p127 = scmp.le.s32.totalorder 1, %s9
    %p128 = scmp.lt.s32.totalorder %s9, 3
    %p129 = pnand %p127, %p128
    %p130 = pneg %p129
    // Predicated region
    $region9: #{_lambda_.14} parent=5 // pred_check
      _
    $region10: #{_lambda_.14} parent=5 // pred_check_branch
      %132 = sbr.rel (%p129) target = $region12
    $region11: #{_lambda_.14} parent=5 // pred_region
      %s133 = ssub.s32 %s9, 1
      // Predicated region
      $region13: #{_lambda_.14} parent=11 // pred_check
        %p134 = pneg %p70
      $region14: #{_lambda_.14} parent=11 // pred_check_branch
        %136 = sbr.rel (%p134) target = $region16
      $region15: #{_lambda_.14} parent=11 // pred_region
        _
      $region16: #{_lambda_.14} parent=11 // pred_fallthru
        _
      // Predicated region
      $region17: #{_lambda_.14} parent=11 // pred_check
        %p137 = pneg %p91
      $region18: #{_lambda_.14} parent=11 // pred_check_branch
        %139 = sbr.rel (%p137) target = $region20
      $region19: #{_lambda_.14} parent=11 // pred_region
        _
      $region20: #{_lambda_.14} parent=11 // pred_fallthru
        _
    $region12: #{_lambda_.14} parent=5 // pred_fallthru
      _
    %p140 = scmp.lt.s32.totalorder %s9, 2
    // Predicated region
    $region21: #{_lambda_.14} parent=5 // pred_check
      %p141 = pneg %p140
    $region22: #{_lambda_.14} parent=5 // pred_check_branch
      %143 = sbr.rel (%p141) target = $region24
    $region23: #{_lambda_.14} parent=5 // pred_region
      // Predicated region
      $region25: #{_lambda_.14} parent=23 // pred_check
        %p144 = pneg %p43
      $region26: #{_lambda_.14} parent=23 // pred_check_branch
        %146 = sbr.rel (%p144) target = $region28
      $region27: #{_lambda_.14} parent=23 // pred_region
        %p147 = scmp.lt.s32.totalorder %s16, 1
        %s148 = scalar_select %p147, %s16, 1
        %p149 = scmp.lt.s32.totalorder %s17, 0
        %s150 = scalar_select %p149, %s17, 0
        %s151 = smul.addr %s148, 8
        %s152 = sadd.s32 %s150, %s151
        %s153 = smul.addr %s152, 8
        %s154 = scalar_lea.vmem %s0, %s153
      $region28: #{_lambda_.14} parent=23 // pred_fallthru
        _
    $region24: #{_lambda_.14} parent=5 // pred_fallthru
      _
    %p155 = scmp.le.s32.totalorder 1, %s9
    %p156 = scmp.lt.s32.totalorder %s9, 3
    %p157 = pnand %p155, %p156
    %p158 = pneg %p157
    // Predicated region
    $region29: #{_lambda_.14} parent=5 // pred_check
      _
    $region30: #{_lambda_.14} parent=5 // pred_check_branch
      %160 = sbr.rel (%p157) target = $region32
    $region31: #{_lambda_.14} parent=5 // pred_region
      %s161 = ssub.s32 %s9, 1
      %p162 = scmp.lt.s32.totalorder %s18, 1
      %s163 = scalar_select %p162, %s18, 1
      %p164 = scmp.lt.s32.totalorder %s19, 0
      %s165 = scalar_select %p164, %s19, 0
      %s166 = smul.addr %s163, 8
      %s167 = sadd.s32 %s165, %s166
      %s168 = smul.addr %s167, 8
      %s169 = scalar_lea.vmem %s0, %s168
      %p170 = pneg %p49
      %p171 = pneg %p46
      %p172 = pneg %p70
      %p173 = pneg %p67
      %p174 = pneg %p91
      %p175 = pneg %p88
      %p176 = pneg %p119
      %p177 = pneg %p116
      %p178 = scmp.lt.s32.totalorder %s18, 1
      %s179 = scalar_select %p178, %s18, 1
      %p180 = scmp.lt.s32.totalorder %s19, 0
      %s181 = scalar_select %p180, %s19, 0
      %s182 = smul.addr %s179, 4
      %s183 = sadd.s32 %s181, %s182
      %s184 = smul.addr %s183, 8
      %s185 = scalar_lea.vmem %s3, %s184
      %p186 = scmp.lt.s32.totalorder %s18, 1
      %s187 = scalar_select %p186, %s18, 1
      %p188 = scmp.lt.s32.totalorder %s19, 0
      %s189 = scalar_select %p188, %s19, 0
      %s190 = smul.addr %s187, 8
      %s191 = sadd.s32 %s189, %s190
      %s192 = smul.addr %s191, 8
      %s193 = scalar_lea.vmem %s0, %s192
      %p194 = scmp.lt.s32.totalorder %s18, 1
      %s195 = scalar_select %p194, %s18, 1
      %p196 = scmp.lt.s32.totalorder %s19, 0
      %s197 = scalar_select %p196, %s19, 0
      %s198 = smul.addr %s195, 4
      %s199 = sadd.s32 %s197, %s198
      %s200 = smul.addr %s199, 8
      %s201 = scalar_lea.vmem %s3, %s200
      %v202 = vld [vmem:[%s193] sm:$0xff]
      %v203 = vld [vmem:[%s193 + $0x8] sm:$0xff]
      %v204 = vld [vmem:[%s193 + $0x10] sm:$0xff]
      %v205 = vld [vmem:[%s193 + $0x18] sm:$0xff]
      %v206 = vld [vmem:[%s193 + $0x20] sm:$0xff]
      %v207 = vld [vmem:[%s193 + $0x28] sm:$0xff]
      %v208 = vld [vmem:[%s193 + $0x30] sm:$0xff]
      %v209 = vld [vmem:[%s193 + $0x38] sm:$0xff]
      %v210 = vld [vmem:[%s1] sm:$0xff]
      %v211 = vld [vmem:[%s1 + $0x8] sm:$0xff]
      %v212 = vld [vmem:[%s1 + $0x10] sm:$0xff]
      %v213 = vld [vmem:[%s1 + $0x18] sm:$0xff]
      %v214 = vld [vmem:[%s2] sm:$0xff]
      %v215 = vld [vmem:[%s2 + $0x8] sm:$0xff]
      %v216 = vld [vmem:[%s2 + $0x10] sm:$0xff]
      %v217 = vld [vmem:[%s2 + $0x18] sm:$0xff]
      %219 = vset.pattern.permute.xlu0 0
      %220 = vperm.xlu0 %219, %v214
      %v221 = vpop.permute.xlu0 %220
      %224 = vset.pattern.permute.xlu0 0
      %225 = vperm.xlu0 %224, %v215
      %v226 = vpop.permute.xlu0 %225
      %229 = vset.pattern.permute.xlu0 0
      %230 = vperm.xlu0 %229, %v216
      %v231 = vpop.permute.xlu0 %230
      %234 = vset.pattern.permute.xlu0 0
      %235 = vperm.xlu0 %234, %v217
      %v236 = vpop.permute.xlu0 %235
      %vm238 = vcmask 523264
      %v240 = vsel %vm238, %v210, 0
      %v243 = vsel %vm238, %v211, 0
      %v246 = vsel %vm238, %v212, 0
      %v249 = vsel %vm238, %v213, 0
      %251 = vmatprep.subr.mxu0 0.0
      %252 = vmatpush1.msra.mxu0 0.0
      %253 = vmatprep.subr.mxu0 0.0
      %254 = vmatpush1.msra.mxu0 0.0
      %255 = vmatprep.subr.mxu0 0.0
      %256 = vmatpush1.msra.mxu0 0.0
      %257 = vmatprep.subr.mxu0 0.0
      %258 = vmatpush1.msra.mxu0 0.0
      %259 = vmatprep.subr.mxu0 0.0
      %260 = vmatpush1.msra.mxu0 0.0
      %261 = vmatprep.subr.mxu0 0.0
      %262 = vmatpush1.msra.mxu0 0.0
      %263 = vmatprep.subr.mxu0 0.0
      %264 = vmatpush1.msra.mxu0 0.0
      %265 = vmatprep.subr.mxu0 0.0
      %266 = vmatpush1.msra.mxu0 0.0
      %267 = vmatprep.subr.mxu0 0.0
      %268 = vmatpush1.msra.mxu0 %v209
      %269 = vmatprep.subr.mxu0 0.0
      %270 = vmatpush1.msra.mxu0 %v208
      %271 = vmatprep.subr.mxu0 0.0
      %272 = vmatpush1.msra.mxu0 %v207
      %273 = vmatprep.subr.mxu0 0.0
      %274 = vmatpush1.msra.mxu0 %v206
      %275 = vmatprep.subr.mxu0 0.0
      %276 = vmatpush1.msra.mxu0 %v205
      %277 = vmatprep.subr.mxu0 0.0
      %278 = vmatpush1.msra.mxu0 %v204
      %279 = vmatprep.subr.mxu0 0.0
      %280 = vmatpush1.msra.mxu0 %v203
      %281 = vmatprep.subr.mxu0 0.0
      %282 = vmatpush1.msra.mxu0 %v202
      %283 = vmatprep.subr.mxu0 0.0
      %284 = vmatpush2.msra.mxu0 0.0
      %285 = vmatprep.subr.mxu0 0.0
      %286 = vmatpush2.msra.mxu0 0.0
      %287 = vmatprep.subr.mxu0 0.0
      %288 = vmatpush2.msra.mxu0 0.0
      %289 = vmatprep.subr.mxu0 0.0
      %290 = vmatpush2.msra.mxu0 0.0
      %291 = vmatprep.subr.mxu0 0.0
      %292 = vmatpush2.msra.mxu0 0.0
      %293 = vmatprep.subr.mxu0 0.0
      %294 = vmatpush2.msra.mxu0 0.0
      %295 = vmatprep.subr.mxu0 0.0
      %296 = vmatpush2.msra.mxu0 0.0
      %297 = vmatprep.subr.mxu0 0.0
      %298 = vmatpush2.msra.mxu0 0.0
      %299 = vmatprep.subr.mxu0 0.0
      %300 = vmatpush2.msra.mxu0 0.0
      %301 = vmatprep.subr.mxu0 0.0
      %302 = vmatpush2.msra.mxu0 0.0
      %303 = vmatprep.subr.mxu0 0.0
      %304 = vmatpush2.msra.mxu0 0.0
      %305 = vmatprep.subr.mxu0 0.0
      %306 = vmatpush2.msra.mxu0 0.0
      %307 = vmatprep.subr.mxu0 0.0
      %308 = vmatpush2.msra.mxu0 0.0
      %309 = vmatprep.subr.mxu0 0.0
      %310 = vmatpush2.msra.mxu0 0.0
      %311 = vmatprep.subr.mxu0 0.0
      %312 = vmatpush2.msra.mxu0 0.0
      %313 = vmatprep.subr.mxu0 0.0
      %314 = vmatpush2.msra.mxu0 0.0
      %315 = vmatprep.mubr.f32.mxu0 0.0
      %316 = vmatmul.mubr.f32.gmra.mxu0 %v240
      %v317 = vpop.f32.mrf.mxu0
      %v318 = vadd.f32 %v221, %v317
      %v319 = vpop.f32.mrf.mxu0
      %320 = vmatprep.mubr.f32.mxu0 0.0
      %321 = vmatmul.mubr.f32.gmra.mxu0 %v243
      %v322 = vpop.f32.mrf.mxu0
      %v323 = vadd.f32 %v226, %v322
      %v324 = vpop.f32.mrf.mxu0
      %325 = vmatprep.mubr.f32.mxu0 0.0
      %326 = vmatmul.mubr.f32.gmra.mxu0 %v246
      %v327 = vpop.f32.mrf.mxu0
      %v328 = vadd.f32 %v231, %v327
      %v329 = vpop.f32.mrf.mxu0
      %330 = vmatprep.mubr.f32.mxu0 0.0
      %331 = vmatmul.mubr.f32.gmra.mxu0 %v249
      %v332 = vpop.f32.mrf.mxu0
      %v333 = vadd.f32 %v236, %v332
      %v334 = vpop.f32.mrf.mxu0
      %335 = vdwg.mxu0
      %vm336 = vcmask 130048
      %337 = vst.msk [vmem:[%s201] sm:$0xff] %vm336, %v318
      %338 = vst.msk [vmem:[%s201 + $0x8] sm:$0xff] %vm336, %v323
      %339 = vst.msk [vmem:[%s201 + $0x10] sm:$0xff] %vm336, %v328
      %340 = vst.msk [vmem:[%s201 + $0x18] sm:$0xff] %vm336, %v333
      %p341 = scmp.lt.s32.totalorder %s18, 1
      %s342 = scalar_select %p341, %s18, 1
      %p343 = scmp.lt.s32.totalorder %s19, 0
      %s344 = scalar_select %p343, %s19, 0
      %s345 = smul.addr %s342, 4
      %s346 = sadd.s32 %s344, %s345
      %s347 = smul.addr %s346, 8
      %s348 = scalar_lea.vmem %s3, %s347
      // Predicated region
      $region33: #{_lambda_.14} parent=31 // pred_check
        %p349 = pneg %p116
      $region34: #{_lambda_.14} parent=31 // pred_check_branch
        %351 = sbr.rel (%p349) target = $region36
      $region35: #{_lambda_.14} parent=31 // pred_region
        _
      $region36: #{_lambda_.14} parent=31 // pred_fallthru
        _
    $region32: #{_lambda_.14} parent=5 // pred_fallthru
      _
    %p352 = scmp.le.s32.totalorder 2, %s9
    // Predicated region
    $region37: #{_lambda_.14} parent=5 // pred_check
      %p353 = pneg %p352
    $region38: #{_lambda_.14} parent=5 // pred_check_branch
      %355 = sbr.rel (%p353) target = $region40
    $region39: #{_lambda_.14} parent=5 // pred_region
      %s356 = ssub.s32 %s9, 2
      // Predicated region
      $region41: #{_lambda_.14} parent=39 // pred_check
        %p357 = pneg %p122
      $region42: #{_lambda_.14} parent=39 // pred_check_branch
        %359 = sbr.rel (%p357) target = $region44
      $region43: #{_lambda_.14} parent=39 // pred_region
        %p360 = scmp.lt.s32.totalorder %s20, 1
        %s361 = scalar_select %p360, %s20, 1
        %p362 = scmp.lt.s32.totalorder %s21, 0
        %s363 = scalar_select %p362, %s21, 0
        %s364 = smul.addr %s361, 4
        %s365 = sadd.s32 %s363, %s364
        %s366 = smul.addr %s365, 8
        %s367 = scalar_lea.vmem %s3, %s366
      $region44: #{_lambda_.14} parent=39 // pred_fallthru
        _
    $region40: #{_lambda_.14} parent=5 // pred_fallthru
      _
  $region6: #{_lambda_.14} parent=0 // loop_footer
    %s13 = sadd.s32 1, %s9
  $region7: #{_lambda_.14} parent=0 // loop_footer_branch
    %8 = sbr.rel target = $region3
  $region8: #{_lambda_.14} parent=0 // loop_exit
    _

// kernel: _lambda_.15
$region0: #{_lambda_.15}
  #allocation0 [shape = 'u32[]', space=smem, size = 0x4, offset = 0x4, fixed_abs, tag = 'smem constant byte address 0x4 - core index']
  #allocation1 [shape = 'u32[144,128]{1,0:T(1,128)}', space=vmem, size = 0x12000, scoped, tag = 'internal scratch']
  %s0 = inlined_call_operand.vmem [shape: f32[3,2,32,64], index: 0, kind: input, shape index: {}]
  %s1 = inlined_call_operand.vmem [shape: f32[2,32,64], index: 1, kind: output, shape index: {}]
  %s2 = sld [smem:[#allocation0]]
  $region75: #{_lambda_.15} parent=0
    _
  %s4 = ssub.s32 1, %s2
  %s5 = scalar_select 0, %s4, %s2
  $region1: #{_lambda_.15} parent=0
    #allocation2 [shape = 'u8[98304]{0}', space=vmem, size = 0x18000, scoped, tag = 'input window, operand 0']
    loop: start=0, step=1, limit=4
    $region2: #{_lambda_.15} parent=1 // loop_pre_header
      _
    $region3: #{_lambda_.15} parent=1 // loop_header
      %s7 = sphi 0, %s11
      %p8 = scmp.ge.s32.totalorder %s7, 4
      %s14 = sphi 0, %s26
      %s15 = sphi 0, %s22
      %s16 = sphi 0, %s14
      %s17 = sphi 0, %s15
      %s18 = sphi 0, %s16
      %s19 = sphi 0, %s17
      %s31 = sphi 0, %s33
      %s34 = sphi 0, %s31
      %s35 = sphi 0, %s34
      %s51 = sphi 0, %s35
      %s59 = sphi 0, %s61
      %s62 = sphi 0, %s59
      %s63 = sphi 0, %s62
      %s79 = sphi 0, %s63
    $region4: #{_lambda_.15} parent=1 // loop_header_branch
      %10 = sbr.rel (%p8) target = $region8
    $region5: #{_lambda_.15} parent=1 // loop_body
      %s12 = ssub.s32 %s7, 1
      %s13 = ssub.s32 %s7, 2
      %s20 = sadd.s32 1, %s15
      %p21 = scmp.ge.s32.totalorder %s20, 1
      %s22 = scalar_select %p21, 0, %s20
      %s23 = sadd.s32 1, %s14
      %s24 = scalar_select %p21, %s23, %s14
      %p25 = scmp.ge.s32.totalorder %s24, 2
      %s26 = scalar_select %p25, 0, %s24
      %s27 = ssub.s32 %s14, %s26
      %s28 = ssub.s32 %s15, %s22
      %s29 = sor.u32 %s27, %s28
      %p30 = scmp.eq.s32.totalorder %s29, 0
      %s32 = sadd.s32 %s31, 1
      %s33 = scalar_select %p30, %s31, %s32
      %p36 = pneg %p30
      %p37 = scmp.eq.s32.totalorder %s7, 1
      %p38 = por %p36, %p37
      %p39 = scmp.ne.s32.totalorder %s31, %s34
      %p40 = scmp.eq.s32.totalorder %s7, 0
      %p41 = por %p39, %p40
      %p42 = scmp.ne.s32.totalorder %s31, %s34
      %p43 = scmp.eq.s32.totalorder %s12, 1
      %p44 = por %p42, %p43
      %p45 = scmp.ne.s32.totalorder %s34, %s35
      %p46 = scmp.eq.s32.totalorder %s12, 0
      %p47 = por %p45, %p46
      %p48 = scmp.ne.s32.totalorder %s34, %s35
      %p49 = scmp.eq.s32.totalorder %s13, 1
      %p50 = por %p48, %p49
      %p52 = scmp.ne.s32.totalorder %s35, %s51
      %p53 = scmp.eq.s32.totalorder %s13, 0
      %p54 = por %p52, %p53
      %s55 = ssub.s32 %s14, %s26
      %s56 = ssub.s32 %s15, %s22
      %s57 = sor.u32 %s55, %s56
      %p58 = scmp.eq.s32.totalorder %s57, 0
      %s60 = sadd.s32 %s59, 1
      %s61 = scalar_select %p58, %s59, %s60
      %p64 = pneg %p58
      %p65 = scmp.eq.s32.totalorder %s7, 1
      %p66 = por %p64, %p65
      %p67 = scmp.ne.s32.totalorder %s59, %s62
      %p68 = scmp.eq.s32.totalorder %s7, 0
      %p69 = por %p67, %p68
      %p70 = scmp.ne.s32.totalorder %s59, %s62
      %p71 = scmp.eq.s32.totalorder %s12, 1
      %p72 = por %p70, %p71
      %p73 = scmp.ne.s32.totalorder %s62, %s63
      %p74 = scmp.eq.s32.totalorder %s12, 0
      %p75 = por %p73, %p74
      %p76 = scmp.ne.s32.totalorder %s62, %s63
      %p77 = scmp.eq.s32.totalorder %s13, 1
      %p78 = por %p76, %p77
      %p80 = scmp.ne.s32.totalorder %s63, %s79
      %p81 = scmp.eq.s32.totalorder %s13, 0
      %p82 = por %p80, %p81
      %p83 = scmp.le.s32.totalorder 1, %s7
      %p84 = scmp.lt.s32.totalorder %s7, 3
      %p85 = pnand %p83, %p84
      %p86 = pneg %p85
      // Predicated region
      $region9: #{_lambda_.15} parent=5 // pred_check
        _
      $region10: #{_lambda_.15} parent=5 // pred_check_branch
        %88 = sbr.rel (%p85) target = $region12
      $region11: #{_lambda_.15} parent=5 // pred_region
        %s89 = ssub.s32 %s7, 1
      $region12: #{_lambda_.15} parent=5 // pred_fallthru
        _
      %p90 = scmp.lt.s32.totalorder %s7, 2
      // Predicated region
      $region13: #{_lambda_.15} parent=5 // pred_check
        %p91 = pneg %p90
      $region14: #{_lambda_.15} parent=5 // pred_check_branch
        %93 = sbr.rel (%p91) target = $region16
      $region15: #{_lambda_.15} parent=5 // pred_region
        // Predicated region
        $region17: #{_lambda_.15} parent=15 // pred_check
          %p94 = pneg %p41
        $region18: #{_lambda_.15} parent=15 // pred_check_branch
          %96 = sbr.rel (%p94) target = $region20
        $region19: #{_lambda_.15} parent=15 // pred_region
          %s97 = sand.u32 %s31, 1
          %s98 = sand.u32 %s31, 1
          %s99 = smul.addr %s98, 96
          %s100 = scalar_lea.vmem [#allocation2], %s99
          %s101 = smul.addr %s14, 4
          %s102 = sadd.s32 %s15, %s101
          %s103 = smul.addr %s102, 8
          %s104 = scalar_lea.vmem %s0, %s103
          // Predicated region
          $region21: #{_lambda_.15} parent=19 // pred_check
            _
          $region22: #{_lambda_.15} parent=19 // pred_check_branch
            %106 = sbr.rel (0) target = $region24
          $region23: #{_lambda_.15} parent=19 // pred_region
            // Predicated region
            $region25: #{_lambda_.15} parent=23 // pred_check
              _
            $region26: #{_lambda_.15} parent=23 // pred_check_branch
              %108 = sbr.rel (0) target = $region28
            $region27: #{_lambda_.15} parent=23 // pred_region
              // Predicated region
              $region40: #{_lambda_.15} parent=27 // pred_check
                _
              $region41: #{_lambda_.15} parent=27 // pred_check_branch
                %146 = sbr.rel (0) target = $region43
              $region42: #{_lambda_.15} parent=27 // pred_region
                loop: start=0, step=1, limit=1
                $region44: #{_lambda_.15} parent=42 // loop_pre_header
                  _
                $region45: #{_lambda_.15} parent=42 // loop_header
                  %s148 = sphi 0, %s152
                  %p149 = scmp.ge.s32.totalorder %s148, 1
                  %s153 = sphi %s104, %s104
                  %s154 = sphi %s100, %s100
                $region46: #{_lambda_.15} parent=42 // loop_header_branch
                  %151 = sbr.rel (%p149) target = $region50
                $region47: #{_lambda_.15} parent=42 // loop_body
                  %v155 = vld [vmem:[%s153] sm:$0xff]
                  %156 = vst [vmem:[%s154] sm:$0xff] %v155
                  %v157 = vld [vmem:[%s153 + $0x8] sm:$0xff]
                  %158 = vst [vmem:[%s154 + $0x8] sm:$0xff] %v157
                  %v159 = vld [vmem:[%s153 + $0x10] sm:$0xff]
                  %160 = vst [vmem:[%s154 + $0x10] sm:$0xff] %v159
                  %v161 = vld [vmem:[%s153 + $0x18] sm:$0xff]
                  %162 = vst [vmem:[%s154 + $0x18] sm:$0xff] %v161
                  %v163 = vld [vmem:[%s153 + $0x40] sm:$0xff]
                  %164 = vst [vmem:[%s154 + $0x20] sm:$0xff] %v163
                  %v165 = vld [vmem:[%s153 + $0x48] sm:$0xff]
                  %166 = vst [vmem:[%s154 + $0x28] sm:$0xff] %v165
                  %v167 = vld [vmem:[%s153 + $0x50] sm:$0xff]
                  %168 = vst [vmem:[%s154 + $0x30] sm:$0xff] %v167
                  %v169 = vld [vmem:[%s153 + $0x58] sm:$0xff]
                  %170 = vst [vmem:[%s154 + $0x38] sm:$0xff] %v169
                  %v171 = vld [vmem:[%s153 + $0x80] sm:$0xff]
                  %172 = vst [vmem:[%s154 + $0x40] sm:$0xff] %v171
                  %v173 = vld [vmem:[%s153 + $0x88] sm:$0xff]
                  %174 = vst [vmem:[%s154 + $0x48] sm:$0xff] %v173
                  %v175 = vld [vmem:[%s153 + $0x90] sm:$0xff]
                  %176 = vst [vmem:[%s154 + $0x50] sm:$0xff] %v175
                  %v177 = vld [vmem:[%s153 + $0x98] sm:$0xff]
                  %178 = vst [vmem:[%s154 + $0x58] sm:$0xff] %v177
                $region48: #{_lambda_.15} parent=42 // loop_footer
                  %s152 = sadd.s32 1, %s148
                $region49: #{_lambda_.15} parent=42 // loop_footer_branch
                  %147 = sbr.rel target = $region45
                $region50: #{_lambda_.15} parent=42 // loop_exit
                  _
              $region43: #{_lambda_.15} parent=27 // pred_fallthru
                _
              // Predicated region
              $region51: #{_lambda_.15} parent=27 // pred_check
                _
              $region52: #{_lambda_.15} parent=27 // pred_check_branch
                %180 = sbr.rel target = $region54
              $region53: #{_lambda_.15} parent=27 // pred_region
                _
              $region54: #{_lambda_.15} parent=27 // pred_fallthru
                _
            $region28: #{_lambda_.15} parent=23 // pred_fallthru
              _
            // Predicated region
            $region29: #{_lambda_.15} parent=23 // pred_check
              _
            $region30: #{_lambda_.15} parent=23 // pred_check_branch
              %110 = sbr.rel target = $region32
            $region31: #{_lambda_.15} parent=23 // pred_region
              %s112 = ssub.s32 256, 1
              loop: start=0, step=1, limit=1
              $region33: #{_lambda_.15} parent=31 // loop_pre_header
                _
              $region34: #{_lambda_.15} parent=31 // loop_header
                %s114 = sphi 0, %s118
                %p115 = scmp.ge.s32.totalorder %s114, 1
                %s119 = sphi %s104, %s104
                %s120 = sphi %s100, %s100
              $region35: #{_lambda_.15} parent=31 // loop_header_branch
                %117 = sbr.rel (%p115) target = $region39
              $region36: #{_lambda_.15} parent=31 // loop_body
                %v121 = vld [vmem:[%s119] sm:%s112]
                %122 = vst [vmem:[%s120] sm:%s112] %v121
                %v123 = vld [vmem:[%s119 + $0x8] sm:%s112]
                %124 = vst [vmem:[%s120 + $0x8] sm:%s112] %v123
                %v125 = vld [vmem:[%s119 + $0x10] sm:%s112]
                %126 = vst [vmem:[%s120 + $0x10] sm:%s112] %v125
                %v127 = vld [vmem:[%s119 + $0x18] sm:%s112]
                %128 = vst [vmem:[%s120 + $0x18] sm:%s112] %v127
                %v129 = vld [vmem:[%s119 + $0x40] sm:%s112]
                %130 = vst [vmem:[%s120 + $0x20] sm:%s112] %v129
                %v131 = vld [vmem:[%s119 + $0x48] sm:%s112]
                %132 = vst [vmem:[%s120 + $0x28] sm:%s112] %v131
                %v133 = vld [vmem:[%s119 + $0x50] sm:%s112]
                %134 = vst [vmem:[%s120 + $0x30] sm:%s112] %v133
                %v135 = vld [vmem:[%s119 + $0x58] sm:%s112]
                %136 = vst [vmem:[%s120 + $0x38] sm:%s112] %v135
                %v137 = vld [vmem:[%s119 + $0x80] sm:%s112]
                %138 = vst [vmem:[%s120 + $0x40] sm:%s112] %v137
                %v139 = vld [vmem:[%s119 + $0x88] sm:%s112]
                %140 = vst [vmem:[%s120 + $0x48] sm:%s112] %v139
                %v141 = vld [vmem:[%s119 + $0x90] sm:%s112]
                %142 = vst [vmem:[%s120 + $0x50] sm:%s112] %v141
                %v143 = vld [vmem:[%s119 + $0x98] sm:%s112]
                %144 = vst [vmem:[%s120 + $0x58] sm:%s112] %v143
              $region37: #{_lambda_.15} parent=31 // loop_footer
                %s118 = sadd.s32 1, %s114
              $region38: #{_lambda_.15} parent=31 // loop_footer_branch
                %113 = sbr.rel target = $region34
              $region39: #{_lambda_.15} parent=31 // loop_exit
                _
            $region32: #{_lambda_.15} parent=23 // pred_fallthru
              _
          $region24: #{_lambda_.15} parent=19 // pred_fallthru
            _
          %181 = vnop
        $region20: #{_lambda_.15} parent=15 // pred_fallthru
          _
      $region16: #{_lambda_.15} parent=5 // pred_fallthru
        _
      %p182 = scmp.le.s32.totalorder 1, %s7
      %p183 = scmp.lt.s32.totalorder %s7, 3
      %p184 = pnand %p182, %p183
      %p185 = pneg %p184
      // Predicated region
      $region55: #{_lambda_.15} parent=5 // pred_check
        _
      $region56: #{_lambda_.15} parent=5 // pred_check_branch
        %187 = sbr.rel (%p184) target = $region58
      $region57: #{_lambda_.15} parent=5 // pred_region
        %s188 = ssub.s32 %s7, 1
        %s189 = sand.u32 %s34, 1
        %s190 = sand.u32 %s34, 1
        %s191 = smul.addr %s190, 96
        %s192 = scalar_lea.vmem [#allocation2], %s191
        // Predicated region
        $region59: #{_lambda_.15} parent=57 // pred_check
          %p193 = pneg %p47
        $region60: #{_lambda_.15} parent=57 // pred_check_branch
          %195 = sbr.rel (%p193) target = $region62
        $region61: #{_lambda_.15} parent=57 // pred_region
          _
        $region62: #{_lambda_.15} parent=57 // pred_fallthru
          _
        %s196 = sand.u32 %s34, 1
        %s197 = sand.u32 %s34, 1
        %s198 = smul.addr %s197, 96
        %s199 = scalar_lea.vmem [#allocation2], %s198
        %p200 = pneg %p47
        %p201 = pneg %p44
        %p202 = pneg %p75
        %p203 = pneg %p72
        %p204 = scmp.lt.s32.totalorder %s16, 1
        %s205 = scalar_select %p204, %s16, 1
        %p206 = scmp.lt.s32.totalorder %s17, 0
        %s207 = scalar_select %p206, %s17, 0
        %s208 = smul.addr %s205, 4
        %s209 = sadd.s32 %s207, %s208
        %s210 = smul.addr %s209, 8
        %s211 = scalar_lea.vmem %s1, %s210
        %p212 = scmp.lt.s32.totalorder %s16, 1
        %s213 = scalar_select %p212, %s16, 1
        %p214 = scmp.lt.s32.totalorder %s17, 0
        %s215 = scalar_select %p214, %s17, 0
        %s216 = smul.addr %s213, 4
        %s217 = sadd.s32 %s215, %s216
        %s218 = smul.addr %s217, 8
        %s219 = scalar_lea.vmem %s1, %s218
        %v220 = vld [vmem:[%s192] sm:$0xff]
        %v221 = vld [vmem:[%s192 + $0x8] sm:$0xff]
        %v222 = vld [vmem:[%s192 + $0x10] sm:$0xff]
        %v223 = vld [vmem:[%s192 + $0x18] sm:$0xff]
        %v224 = vld [vmem:[%s192 + $0x20] sm:$0xff]
        %v225 = vld [vmem:[%s192 + $0x28] sm:$0xff]
        %v226 = vld [vmem:[%s192 + $0x30] sm:$0xff]
        %v227 = vld [vmem:[%s192 + $0x38] sm:$0xff]
        %v228 = vld [vmem:[%s192 + $0x40] sm:$0xff]
        %v229 = vld [vmem:[%s192 + $0x48] sm:$0xff]
        %v230 = vld [vmem:[%s192 + $0x50] sm:$0xff]
        %v231 = vld [vmem:[%s192 + $0x58] sm:$0xff]
        %vm232 = vcmask 523264
        %v233 = vsel %vm232, %v220, 0.0
        %v234 = vsel %vm232, %v224, 0.0
        %v235 = vadd.f32 %v233, %v234
        %v236 = vsel %vm232, %v228, 0.0
        %v237 = vadd.f32 %v235, %v236
        %v238 = vsel %vm232, %v221, 0.0
        %v239 = vsel %vm232, %v225, 0.0
        %v240 = vadd.f32 %v238, %v239
        %v241 = vsel %vm232, %v229, 0.0
        %v242 = vadd.f32 %v240, %v241
        %v243 = vsel %vm232, %v222, 0.0
        %v244 = vsel %vm232, %v226, 0.0
        %v245 = vadd.f32 %v243, %v244
        %v246 = vsel %vm232, %v230, 0.0
        %v247 = vadd.f32 %v245, %v246
        %v248 = vsel %vm232, %v223, 0.0
        %v249 = vsel %vm232, %v227, 0.0
        %v250 = vadd.f32 %v248, %v249
        %v251 = vsel %vm232, %v231, 0.0
        %v252 = vadd.f32 %v250, %v251
        %v253 = vadd.f32 %v237, 3.0
        %v254 = vadd.f32 %v242, 3.0
        %v255 = vadd.f32 %v247, 3.0
        %v256 = vadd.f32 %v252, 3.0
        %v257 = vmax.f32 %v253, 0.0
        %v258 = vmax.f32 %v254, 0.0
        %v259 = vmax.f32 %v255, 0.0
        %v260 = vmax.f32 %v256, 0.0
        %v261 = vmin.f32 %v257, 6.0
        %v262 = vmin.f32 %v258, 6.0
        %v263 = vmin.f32 %v259, 6.0
        %v264 = vmin.f32 %v260, 6.0
        %v265 = vmul.f32 %v237, %v261
        %v266 = vmul.f32 %v242, %v262
        %v267 = vmul.f32 %v247, %v263
        %v268 = vmul.f32 %v252, %v264
        %v269 = vmul.f32 %v265, 0.16666667
        %v270 = vmul.f32 %v266, 0.16666667
        %v271 = vmul.f32 %v267, 0.16666667
        %v272 = vmul.f32 %v268, 0.16666667
        %273 = vst.msk [vmem:[%s219] sm:$0xff] %vm232, %v269
        %274 = vst.msk [vmem:[%s219 + $0x8] sm:$0xff] %vm232, %v270
        %275 = vst.msk [vmem:[%s219 + $0x10] sm:$0xff] %vm232, %v271
        %276 = vst.msk [vmem:[%s219 + $0x18] sm:$0xff] %vm232, %v272
        %p277 = scmp.lt.s32.totalorder %s16, 1
        %s278 = scalar_select %p277, %s16, 1
        %p279 = scmp.lt.s32.totalorder %s17, 0
        %s280 = scalar_select %p279, %s17, 0
        %s281 = smul.addr %s278, 4
        %s282 = sadd.s32 %s280, %s281
        %s283 = smul.addr %s282, 8
        %s284 = scalar_lea.vmem %s1, %s283
        // Predicated region
        $region63: #{_lambda_.15} parent=57 // pred_check
          %p285 = pneg %p72
        $region64: #{_lambda_.15} parent=57 // pred_check_branch
          %287 = sbr.rel (%p285) target = $region66
        $region65: #{_lambda_.15} parent=57 // pred_region
          _
        $region66: #{_lambda_.15} parent=57 // pred_fallthru
          _
      $region58: #{_lambda_.15} parent=5 // pred_fallthru
        _
      %p288 = scmp.le.s32.totalorder 2, %s7
      // Predicated region
      $region67: #{_lambda_.15} parent=5 // pred_check
        %p289 = pneg %p288
      $region68: #{_lambda_.15} parent=5 // pred_check_branch
        %291 = sbr.rel (%p289) target = $region70
      $region69: #{_lambda_.15} parent=5 // pred_region
        %s292 = ssub.s32 %s7, 2
        // Predicated region
        $region71: #{_lambda_.15} parent=69 // pred_check
          %p293 = pneg %p78
        $region72: #{_lambda_.15} parent=69 // pred_check_branch
          %295 = sbr.rel (%p293) target = $region74
        $region73: #{_lambda_.15} parent=69 // pred_region
          %p296 = scmp.lt.s32.totalorder %s18, 1
          %s297 = scalar_select %p296, %s18, 1
          %p298 = scmp.lt.s32.totalorder %s19, 0
          %s299 = scalar_select %p298, %s19, 0
          %s300 = smul.addr %s297, 4
          %s301 = sadd.s32 %s299, %s300
          %s302 = smul.addr %s301, 8
          %s303 = scalar_lea.vmem %s1, %s302
        $region74: #{_lambda_.15} parent=69 // pred_fallthru
          _
      $region70: #{_lambda_.15} parent=5 // pred_fallthru
        _
    $region6: #{_lambda_.15} parent=1 // loop_footer
      %s11 = sadd.s32 1, %s7
    $region7: #{_lambda_.15} parent=1 // loop_footer_branch
      %6 = sbr.rel target = $region3
    $region8: #{_lambda_.15} parent=1 // loop_exit
      _

// kernel: _lambda_.11
$region0: #{_lambda_.11}
  #allocation0 [shape = 'u32[]', space=smem, size = 0x4, offset = 0x4, fixed_abs, tag = 'smem constant byte address 0x4 - core index']
  #allocation1 [shape = 'u32[144,128]{1,0:T(1,128)}', space=vmem, size = 0x12000, scoped, tag = 'internal scratch']
  %s0 = inlined_call_operand.vmem [shape: f32[2,64,16], index: 0, kind: input, shape index: {}]
  %s1 = inlined_call_operand.vmem [shape: f32[16,64], index: 1, kind: input, shape index: {}]
  %s2 = inlined_call_operand.vmem [shape: f32[16,1], index: 2, kind: input, shape index: {}]
  %s3 = inlined_call_operand.vmem [shape: f32[2,16,16], index: 3, kind: output, shape index: {}]
  %s4 = sld [smem:[#allocation0]]
  $region45: #{_lambda_.11} parent=0
    _
  %s6 = ssub.s32 1, %s4
  %s7 = scalar_select 0, %s6, %s4
  loop: start=0, step=1, limit=4
  $region2: #{_lambda_.11} parent=0 // loop_pre_header
    _
  $region3: #{_lambda_.11} parent=0 // loop_header
    %s9 = sphi 0, %s13
    %p10 = scmp.ge.s32.totalorder %s9, 4
    %s16 = sphi 0, %s28
    %s17 = sphi 0, %s24
    %s18 = sphi 0, %s16
    %s19 = sphi 0, %s17
    %s20 = sphi 0, %s18
    %s21 = sphi 0, %s19
    %s33 = sphi 0, %s35
    %s36 = sphi 0, %s33
    %s37 = sphi 0, %s36
    %s53 = sphi 0, %s37
    %s57 = sphi 0, %s57
    %s59 = sphi 0, %s57
    %s60 = sphi 0, %s59
    %s74 = sphi 0, %s60
    %s78 = sphi 0, %s78
    %s80 = sphi 0, %s78
    %s81 = sphi 0, %s80
    %s95 = sphi 0, %s81
    %s103 = sphi 0, %s105
    %s106 = sphi 0, %s103
    %s107 = sphi 0, %s106
    %s123 = sphi 0, %s107
  $region4: #{_lambda_.11} parent=0 // loop_header_branch
    %12 = sbr.rel (%p10) target = $region8
  $region5: #{_lambda_.11} parent=0 // loop_body
    %s14 = ssub.s32 %s9, 1
    %s15 = ssub.s32 %s9, 2
    %s22 = sadd.s32 1, %s17
    %p23 = scmp.ge.s32.totalorder %s22, 1
    %s24 = scalar_select %p23, 0, %s22
    %s25 = sadd.s32 1, %s16
    %s26 = scalar_select %p23, %s25, %s16
    %p27 = scmp.ge.s32.totalorder %s26, 2
    %s28 = scalar_select %p27, 0, %s26
    %s29 = ssub.s32 %s16, %s28
    %s30 = ssub.s32 %s17, %s24
    %s31 = sor.u32 %s29, %s30
    %p32 = scmp.eq.s32.totalorder %s31, 0
    %s34 = sadd.s32 %s33, 1
    %s35 = scalar_select %p32, %s33, %s34
    %p38 = pneg %p32
    %p39 = scmp.eq.s32.totalorder %s9, 1
    %p40 = por %p38, %p39
    %p41 = scmp.ne.s32.totalorder %s33, %s36
    %p42 = scmp.eq.s32.totalorder %s9, 0
    %p43 = por %p41, %p42
    %p44 = scmp.ne.s32.totalorder %s33, %s36
    %p45 = scmp.eq.s32.totalorder %s14, 1
    %p46 = por %p44, %p45
    %p47 = scmp.ne.s32.totalorder %s36, %s37
    %p48 = scmp.eq.s32.totalorder %s14, 0
    %p49 = por %p47, %p48
    %p50 = scmp.ne.s32.totalorder %s36, %s37
    %p51 = scmp.eq.s32.totalorder %s15, 1
    %p52 = por %p50, %p51
    %p54 = scmp.ne.s32.totalorder %s37, %s53
    %p55 = scmp.eq.s32.totalorder %s15, 0
    %p56 = por %p54, %p55
    %s58 = sadd.s32 %s57, 1
    %p61 = scmp.eq.s32.totalorder %s9, 1
    %p62 = scmp.ne.s32.totalorder %s57, %s59
    %p63 = scmp.eq.s32.totalorder %s9, 0
    %p64 = por %p62, %p63
    %p65 = scmp.ne.s32.totalorder %s57, %s59
    %p66 = scmp.eq.s32.totalorder %s14, 1
    %p67 = por %p65, %p66
    %p68 = scmp.ne.s32.totalorder %s59, %s60
    %p69 = scmp.eq.s32.totalorder %s14, 0
    %p70 = por %p68, %p69
    %p71 = scmp.ne.s32.totalorder %s59, %s60
    %p72 = scmp.eq.s32.totalorder %s15, 1
    %p73 = por %p71, %p72
    %p75 = scmp.ne.s32.totalorder %s60, %s74
    %p76 = scmp.eq.s32.totalorder %s15, 0
    %p77 = por %p75, %p76
    %s79 = sadd.s32 %s78, 1
    %p82 = scmp.eq.s32.totalorder %s9, 1
    %p83 = scmp.ne.s32.totalorder %s78, %s80
    %p84 = scmp.eq.s32.totalorder %s9, 0
    %p85 = por %p83, %p84
    %p86 = scmp.ne.s32.totalorder %s78, %s80
    %p87 = scmp.eq.s32.totalorder %s14, 1
    %p88 = por %p86, %p87
    %p89 = scmp.ne.s32.totalorder %s80, %s81
    %p90 = scmp.eq.s32.totalorder %s14, 0
    %p91 = por %p89, %p90
    %p92 = scmp.ne.s32.totalorder %s80, %s81
    %p93 = scmp.eq.s32.totalorder %s15, 1
    %p94 = por %p92, %p93
    %p96 = scmp.ne.s32.totalorder %s81, %s95
    %p97 = scmp.eq.s32.totalorder %s15, 0
    %p98 = por %p96, %p97
    %s99 = ssub.s32 %s16, %s28
    %s100 = ssub.s32 %s17, %s24
    %s101 = sor.u32 %s99, %s100
    %p102 = scmp.eq.s32.totalorder %s101, 0
    %s104 = sadd.s32 %s103, 1
    %s105 = scalar_select %p102, %s103, %s104
    %p108 = pneg %p102
    %p109 = scmp.eq.s32.totalorder %s9, 1
    %p110 = por %p108, %p109
    %p111 = scmp.ne.s32.totalorder %s103, %s106
    %p112 = scmp.eq.s32.totalorder %s9, 0
    %p113 = por %p111, %p112
    %p114 = scmp.ne.s32.totalorder %s103, %s106
    %p115 = scmp.eq.s32.totalorder %s14, 1
    %p116 = por %p114, %p115
    %p117 = scmp.ne.s32.totalorder %s106, %s107
    %p118 = scmp.eq.s32.totalorder %s14, 0
    %p119 = por %p117, %p118
    %p120 = scmp.ne.s32.totalorder %s106, %s107
    %p121 = scmp.eq.s32.totalorder %s15, 1
    %p122 = por %p120, %p121
    %p124 = scmp.ne.s32.totalorder %s107, %s123
    %p125 = scmp.eq.s32.totalorder %s15, 0
    %p126 = por %p124, %p125
    %p127 = scmp.le.s32.totalorder 1, %s9
    %p128 = scmp.lt.s32.totalorder %s9, 3
    %p129 = pnand %p127, %p128
    %p130 = pneg %p129
    // Predicated region
    $region9: #{_lambda_.11} parent=5 // pred_check
      _
    $region10: #{_lambda_.11} parent=5 // pred_check_branch
      %132 = sbr.rel (%p129) target = $region12
    $region11: #{_lambda_.11} parent=5 // pred_region
      %s133 = ssub.s32 %s9, 1
      // Predicated region
      $region13: #{_lambda_.11} parent=11 // pred_check
        %p134 = pneg %p70
      $region14: #{_lambda_.11} parent=11 // pred_check_branch
        %136 = sbr.rel (%p134) target = $region16
      $region15: #{_lambda_.11} parent=11 // pred_region
        _
      $region16: #{_lambda_.11} parent=11 // pred_fallthru
        _
      // Predicated region
      $region17: #{_lambda_.11} parent=11 // pred_check
        %p137 = pneg %p91
      $region18: #{_lambda_.11} parent=11 // pred_check_branch
        %139 = sbr.rel (%p137) target = $region20
      $region19: #{_lambda_.11} parent=11 // pred_region
        _
      $region20: #{_lambda_.11} parent=11 // pred_fallthru
        _
    $region12: #{_lambda_.11} parent=5 // pred_fallthru
      _
    %p140 = scmp.lt.s32.totalorder %s9, 2
    // Predicated region
    $region21: #{_lambda_.11} parent=5 // pred_check
      %p141 = pneg %p140
    $region22: #{_lambda_.11} parent=5 // pred_check_branch
      %143 = sbr.rel (%p141) target = $region24
    $region23: #{_lambda_.11} parent=5 // pred_region
      // Predicated region
      $region25: #{_lambda_.11} parent=23 // pred_check
        %p144 = pneg %p43
      $region26: #{_lambda_.11} parent=23 // pred_check_branch
        %146 = sbr.rel (%p144) target = $region28
      $region27: #{_lambda_.11} parent=23 // pred_region
        %p147 = scmp.lt.s32.totalorder %s16, 1
        %s148 = scalar_select %p147, %s16, 1
        %p149 = scmp.lt.s32.totalorder %s17, 0
        %s150 = scalar_select %p149, %s17, 0
        %s151 = smul.addr %s148, 8
        %s152 = sadd.s32 %s150, %s151
        %s153 = smul.addr %s152, 8
        %s154 = scalar_lea.vmem %s0, %s153
      $region28: #{_lambda_.11} parent=23 // pred_fallthru
        _
    $region24: #{_lambda_.11} parent=5 // pred_fallthru
      _
    %p155 = scmp.le.s32.totalorder 1, %s9
    %p156 = scmp.lt.s32.totalorder %s9, 3
    %p157 = pnand %p155, %p156
    %p158 = pneg %p157
    // Predicated region
    $region29: #{_lambda_.11} parent=5 // pred_check
      _
    $region30: #{_lambda_.11} parent=5 // pred_check_branch
      %160 = sbr.rel (%p157) target = $region32
    $region31: #{_lambda_.11} parent=5 // pred_region
      %s161 = ssub.s32 %s9, 1
      %p162 = scmp.lt.s32.totalorder %s18, 1
      %s163 = scalar_select %p162, %s18, 1
      %p164 = scmp.lt.s32.totalorder %s19, 0
      %s165 = scalar_select %p164, %s19, 0
      %s166 = smul.addr %s163, 8
      %s167 = sadd.s32 %s165, %s166
      %s168 = smul.addr %s167, 8
      %s169 = scalar_lea.vmem %s0, %s168
      %p170 = pneg %p49
      %p171 = pneg %p46
      %p172 = pneg %p70
      %p173 = pneg %p67
      %p174 = pneg %p91
      %p175 = pneg %p88
      %p176 = pneg %p119
      %p177 = pneg %p116
      %p178 = scmp.lt.s32.totalorder %s18, 1
      %s179 = scalar_select %p178, %s18, 1
      %p180 = scmp.lt.s32.totalorder %s19, 0
      %s181 = scalar_select %p180, %s19, 0
      %s182 = smul.addr %s179, 2
      %s183 = sadd.s32 %s181, %s182
      %s184 = smul.addr %s183, 8
      %s185 = scalar_lea.vmem %s3, %s184
      %p186 = scmp.lt.s32.totalorder %s18, 1
      %s187 = scalar_select %p186, %s18, 1
      %p188 = scmp.lt.s32.totalorder %s19, 0
      %s189 = scalar_select %p188, %s19, 0
      %s190 = smul.addr %s187, 8
      %s191 = sadd.s32 %s189, %s190
      %s192 = smul.addr %s191, 8
      %s193 = scalar_lea.vmem %s0, %s192
      %p194 = scmp.lt.s32.totalorder %s18, 1
      %s195 = scalar_select %p194, %s18, 1
      %p196 = scmp.lt.s32.totalorder %s19, 0
      %s197 = scalar_select %p196, %s19, 0
      %s198 = smul.addr %s195, 2
      %s199 = sadd.s32 %s197, %s198
      %s200 = smul.addr %s199, 8
      %s201 = scalar_lea.vmem %s3, %s200
      %v202 = vld [vmem:[%s193] sm:$0xff]
      %v203 = vld [vmem:[%s193 + $0x8] sm:$0xff]
      %v204 = vld [vmem:[%s193 + $0x10] sm:$0xff]
      %v205 = vld [vmem:[%s193 + $0x18] sm:$0xff]
      %v206 = vld [vmem:[%s193 + $0x20] sm:$0xff]
      %v207 = vld [vmem:[%s193 + $0x28] sm:$0xff]
      %v208 = vld [vmem:[%s193 + $0x30] sm:$0xff]
      %v209 = vld [vmem:[%s193 + $0x38] sm:$0xff]
      %v210 = vld [vmem:[%s1] sm:$0xff]
      %v211 = vld [vmem:[%s1 + $0x8] sm:$0xff]
      %v212 = vld [vmem:[%s2] sm:$0xff]
      %v213 = vld [vmem:[%s2 + $0x8] sm:$0xff]
      %215 = vset.pattern.permute.xlu0 0
      %216 = vperm.xlu0 %215, %v212
      %v217 = vpop.permute.xlu0 %216
      %220 = vset.pattern.permute.xlu0 0
      %221 = vperm.xlu0 %220, %v213
      %v222 = vpop.permute.xlu0 %221
      %vm224 = vcmask 523264
      %v226 = vsel %vm224, %v210, 0
      %v229 = vsel %vm224, %v211, 0
      %231 = vmatprep.subr.mxu0 0.0
      %232 = vmatpush1.msra.mxu0 0.0
      %233 = vmatprep.subr.mxu0 0.0
      %234 = vmatpush1.msra.mxu0 0.0
      %235 = vmatprep.subr.mxu0 0.0
      %236 = vmatpush1.msra.mxu0 0.0
      %237 = vmatprep.subr.mxu0 0.0
      %238 = vmatpush1.msra.mxu0 0.0
      %239 = vmatprep.subr.mxu0 0.0
      %240 = vmatpush1.msra.mxu0 0.0
      %241 = vmatprep.subr.mxu0 0.0
      %242 = vmatpush1.msra.mxu0 0.0
      %243 = vmatprep.subr.mxu0 0.0
      %244 = vmatpush1.msra.mxu0 0.0
      %245 = vmatprep.subr.mxu0 0.0
      %246 = vmatpush1.msra.mxu0 0.0
      %247 = vmatprep.subr.mxu0 0.0
      %248 = vmatpush1.msra.mxu0 %v209
      %249 = vmatprep.subr.mxu0 0.0
      %250 = vmatpush1.msra.mxu0 %v208
      %251 = vmatprep.subr.mxu0 0.0
      %252 = vmatpush1.msra.mxu0 %v207
      %253 = vmatprep.subr.mxu0 0.0
      %254 = vmatpush1.msra.mxu0 %v206
      %255 = vmatprep.subr.mxu0 0.0
      %256 = vmatpush1.msra.mxu0 %v205
      %257 = vmatprep.subr.mxu0 0.0
      %258 = vmatpush1.msra.mxu0 %v204
      %259 = vmatprep.subr.mxu0 0.0
      %260 = vmatpush1.msra.mxu0 %v203
      %261 = vmatprep.subr.mxu0 0.0
      %262 = vmatpush1.msra.mxu0 %v202
      %263 = vmatprep.subr.mxu0 0.0
      %264 = vmatpush2.msra.mxu0 0.0
      %265 = vmatprep.subr.mxu0 0.0
      %266 = vmatpush2.msra.mxu0 0.0
      %267 = vmatprep.subr.mxu0 0.0
      %268 = vmatpush2.msra.mxu0 0.0
      %269 = vmatprep.subr.mxu0 0.0
      %270 = vmatpush2.msra.mxu0 0.0
      %271 = vmatprep.subr.mxu0 0.0
      %272 = vmatpush2.msra.mxu0 0.0
      %273 = vmatprep.subr.mxu0 0.0
      %274 = vmatpush2.msra.mxu0 0.0
      %275 = vmatprep.subr.mxu0 0.0
      %276 = vmatpush2.msra.mxu0 0.0
      %277 = vmatprep.subr.mxu0 0.0
      %278 = vmatpush2.msra.mxu0 0.0
      %279 = vmatprep.subr.mxu0 0.0
      %280 = vmatpush2.msra.mxu0 0.0
      %281 = vmatprep.subr.mxu0 0.0
      %282 = vmatpush2.msra.mxu0 0.0
      %283 = vmatprep.subr.mxu0 0.0
      %284 = vmatpush2.msra.mxu0 0.0
      %285 = vmatprep.subr.mxu0 0.0
      %286 = vmatpush2.msra.mxu0 0.0
      %287 = vmatprep.subr.mxu0 0.0
      %288 = vmatpush2.msra.mxu0 0.0
      %289 = vmatprep.subr.mxu0 0.0
      %290 = vmatpush2.msra.mxu0 0.0
      %291 = vmatprep.subr.mxu0 0.0
      %292 = vmatpush2.msra.mxu0 0.0
      %293 = vmatprep.subr.mxu0 0.0
      %294 = vmatpush2.msra.mxu0 0.0
      %295 = vmatprep.mubr.f32.mxu0 0.0
      %296 = vmatmul.mubr.f32.gmra.mxu0 %v226
      %v297 = vpop.f32.mrf.mxu0
      %v298 = vadd.f32 %v217, %v297
      %v299 = vpop.f32.mrf.mxu0
      %300 = vmatprep.mubr.f32.mxu0 0.0
      %301 = vmatmul.mubr.f32.gmra.mxu0 %v229
      %v302 = vpop.f32.mrf.mxu0
      %v303 = vadd.f32 %v222, %v302
      %v304 = vpop.f32.mrf.mxu0
      %305 = vdwg.mxu0
      %vm306 = vcmask 130048
      %307 = vst.msk [vmem:[%s201] sm:$0xff] %vm306, %v298
      %308 = vst.msk [vmem:[%s201 + $0x8] sm:$0xff] %vm306, %v303
      %p309 = scmp.lt.s32.totalorder %s18, 1
      %s310 = scalar_select %p309, %s18, 1
      %p311 = scmp.lt.s32.totalorder %s19, 0
      %s312 = scalar_select %p311, %s19, 0
      %s313 = smul.addr %s310, 2
      %s314 = sadd.s32 %s312, %s313
      %s315 = smul.addr %s314, 8
      %s316 = scalar_lea.vmem %s3, %s315
      // Predicated region
      $region33: #{_lambda_.11} parent=31 // pred_check
        %p317 = pneg %p116
      $region34: #{_lambda_.11} parent=31 // pred_check_branch
        %319 = sbr.rel (%p317) target = $region36
      $region35: #{_lambda_.11} parent=31 // pred_region
        _
      $region36: #{_lambda_.11} parent=31 // pred_fallthru
        _
    $region32: #{_lambda_.11} parent=5 // pred_fallthru
      _
    %p320 = scmp.le.s32.totalorder 2, %s9
    // Predicated region
    $region37: #{_lambda_.11} parent=5 // pred_check
      %p321 = pneg %p320
    $region38: #{_lambda_.11} parent=5 // pred_check_branch
      %323 = sbr.rel (%p321) target = $region40
    $region39: #{_lambda_.11} parent=5 // pred_region
      %s324 = ssub.s32 %s9, 2
      // Predicated region
      $region41: #{_lambda_.11} parent=39 // pred_check
        %p325 = pneg %p122
      $region42: #{_lambda_.11} parent=39 // pred_check_branch
        %327 = sbr.rel (%p325) target = $region44
      $region43: #{_lambda_.11} parent=39 // pred_region
        %p328 = scmp.lt.s32.totalorder %s20, 1
        %s329 = scalar_select %p328, %s20, 1
        %p330 = scmp.lt.s32.totalorder %s21, 0
        %s331 = scalar_select %p330, %s21, 0
        %s332 = smul.addr %s329, 2
        %s333 = sadd.s32 %s331, %s332
        %s334 = smul.addr %s333, 8
        %s335 = scalar_lea.vmem %s3, %s334
      $region44: #{_lambda_.11} parent=39 // pred_fallthru
        _
    $region40: #{_lambda_.11} parent=5 // pred_fallthru
      _
  $region6: #{_lambda_.11} parent=0 // loop_footer
    %s13 = sadd.s32 1, %s9
  $region7: #{_lambda_.11} parent=0 // loop_footer_branch
    %8 = sbr.rel target = $region3
  $region8: #{_lambda_.11} parent=0 // loop_exit
    _

// kernel: _lambda_.10
$region0: #{_lambda_.10}
  #allocation0 [shape = 'u32[]', space=smem, size = 0x4, offset = 0x4, fixed_abs, tag = 'smem constant byte address 0x4 - core index']
  #allocation1 [shape = 'u32[144,128]{1,0:T(1,128)}', space=vmem, size = 0x12000, scoped, tag = 'internal scratch']
  %s0 = inlined_call_operand.vmem [shape: f32[2,32,64], index: 0, kind: input, shape index: {}]
  %s1 = inlined_call_operand.vmem [shape: f32[16,32], index: 1, kind: input, shape index: {}]
  %s2 = inlined_call_operand.vmem [shape: f32[16,1], index: 2, kind: input, shape index: {}]
  %s3 = inlined_call_operand.vmem [shape: f32[2,16,64], index: 3, kind: output, shape index: {}]
  %s4 = sld [smem:[#allocation0]]
  $region45: #{_lambda_.10} parent=0
    _
  %s6 = ssub.s32 1, %s4
  %s7 = scalar_select 0, %s6, %s4
  loop: start=0, step=1, limit=4
  $region2: #{_lambda_.10} parent=0 // loop_pre_header
    _
  $region3: #{_lambda_.10} parent=0 // loop_header
    %s9 = sphi 0, %s13
    %p10 = scmp.ge.s32.totalorder %s9, 4
    %s16 = sphi 0, %s28
    %s17 = sphi 0, %s24
    %s18 = sphi 0, %s16
    %s19 = sphi 0, %s17
    %s20 = sphi 0, %s18
    %s21 = sphi 0, %s19
    %s33 = sphi 0, %s35
    %s36 = sphi 0, %s33
    %s37 = sphi 0, %s36
    %s53 = sphi 0, %s37
    %s57 = sphi 0, %s57
    %s59 = sphi 0, %s57
    %s60 = sphi 0, %s59
    %s74 = sphi 0, %s60
    %s78 = sphi 0, %s78
    %s80 = sphi 0, %s78
    %s81 = sphi 0, %s80
    %s95 = sphi 0, %s81
    %s103 = sphi 0, %s105
    %s106 = sphi 0, %s103
    %s107 = sphi 0, %s106
    %s123 = sphi 0, %s107
  $region4: #{_lambda_.10} parent=0 // loop_header_branch
    %12 = sbr.rel (%p10) target = $region8
  $region5: #{_lambda_.10} parent=0 // loop_body
    %s14 = ssub.s32 %s9, 1
    %s15 = ssub.s32 %s9, 2
    %s22 = sadd.s32 1, %s17
    %p23 = scmp.ge.s32.totalorder %s22, 1
    %s24 = scalar_select %p23, 0, %s22
    %s25 = sadd.s32 1, %s16
    %s26 = scalar_select %p23, %s25, %s16
    %p27 = scmp.ge.s32.totalorder %s26, 2
    %s28 = scalar_select %p27, 0, %s26
    %s29 = ssub.s32 %s16, %s28
    %s30 = ssub.s32 %s17, %s24
    %s31 = sor.u32 %s29, %s30
    %p32 = scmp.eq.s32.totalorder %s31, 0
    %s34 = sadd.s32 %s33, 1
    %s35 = scalar_select %p32, %s33, %s34
    %p38 = pneg %p32
    %p39 = scmp.eq.s32.totalorder %s9, 1
    %p40 = por %p38, %p39
    %p41 = scmp.ne.s32.totalorder %s33, %s36
    %p42 = scmp.eq.s32.totalorder %s9, 0
    %p43 = por %p41, %p42
    %p44 = scmp.ne.s32.totalorder %s33, %s36
    %p45 = scmp.eq.s32.totalorder %s14, 1
    %p46 = por %p44, %p45
    %p47 = scmp.ne.s32.totalorder %s36, %s37
    %p48 = scmp.eq.s32.totalorder %s14, 0
    %p49 = por %p47, %p48
    %p50 = scmp.ne.s32.totalorder %s36, %s37
    %p51 = scmp.eq.s32.totalorder %s15, 1
    %p52 = por %p50, %p51
    %p54 = scmp.ne.s32.totalorder %s37, %s53
    %p55 = scmp.eq.s32.totalorder %s15, 0
    %p56 = por %p54, %p55
    %s58 = sadd.s32 %s57, 1
    %p61 = scmp.eq.s32.totalorder %s9, 1
    %p62 = scmp.ne.s32.totalorder %s57, %s59
    %p63 = scmp.eq.s32.totalorder %s9, 0
    %p64 = por %p62, %p63
    %p65 = scmp.ne.s32.totalorder %s57, %s59
    %p66 = scmp.eq.s32.totalorder %s14, 1
    %p67 = por %p65, %p66
    %p68 = scmp.ne.s32.totalorder %s59, %s60
    %p69 = scmp.eq.s32.totalorder %s14, 0
    %p70 = por %p68, %p69
    %p71 = scmp.ne.s32.totalorder %s59, %s60
    %p72 = scmp.eq.s32.totalorder %s15, 1
    %p73 = por %p71, %p72
    %p75 = scmp.ne.s32.totalorder %s60, %s74
    %p76 = scmp.eq.s32.totalorder %s15, 0
    %p77 = por %p75, %p76
    %s79 = sadd.s32 %s78, 1
    %p82 = scmp.eq.s32.totalorder %s9, 1
    %p83 = scmp.ne.s32.totalorder %s78, %s80
    %p84 = scmp.eq.s32.totalorder %s9, 0
    %p85 = por %p83, %p84
    %p86 = scmp.ne.s32.totalorder %s78, %s80
    %p87 = scmp.eq.s32.totalorder %s14, 1
    %p88 = por %p86, %p87
    %p89 = scmp.ne.s32.totalorder %s80, %s81
    %p90 = scmp.eq.s32.totalorder %s14, 0
    %p91 = por %p89, %p90
    %p92 = scmp.ne.s32.totalorder %s80, %s81
    %p93 = scmp.eq.s32.totalorder %s15, 1
    %p94 = por %p92, %p93
    %p96 = scmp.ne.s32.totalorder %s81, %s95
    %p97 = scmp.eq.s32.totalorder %s15, 0
    %p98 = por %p96, %p97
    %s99 = ssub.s32 %s16, %s28
    %s100 = ssub.s32 %s17, %s24
    %s101 = sor.u32 %s99, %s100
    %p102 = scmp.eq.s32.totalorder %s101, 0
    %s104 = sadd.s32 %s103, 1
    %s105 = scalar_select %p102, %s103, %s104
    %p108 = pneg %p102
    %p109 = scmp.eq.s32.totalorder %s9, 1
    %p110 = por %p108, %p109
    %p111 = scmp.ne.s32.totalorder %s103, %s106
    %p112 = scmp.eq.s32.totalorder %s9, 0
    %p113 = por %p111, %p112
    %p114 = scmp.ne.s32.totalorder %s103, %s106
    %p115 = scmp.eq.s32.totalorder %s14, 1
    %p116 = por %p114, %p115
    %p117 = scmp.ne.s32.totalorder %s106, %s107
    %p118 = scmp.eq.s32.totalorder %s14, 0
    %p119 = por %p117, %p118
    %p120 = scmp.ne.s32.totalorder %s106, %s107
    %p121 = scmp.eq.s32.totalorder %s15, 1
    %p122 = por %p120, %p121
    %p124 = scmp.ne.s32.totalorder %s107, %s123
    %p125 = scmp.eq.s32.totalorder %s15, 0
    %p126 = por %p124, %p125
    %p127 = scmp.le.s32.totalorder 1, %s9
    %p128 = scmp.lt.s32.totalorder %s9, 3
    %p129 = pnand %p127, %p128
    %p130 = pneg %p129
    // Predicated region
    $region9: #{_lambda_.10} parent=5 // pred_check
      _
    $region10: #{_lambda_.10} parent=5 // pred_check_branch
      %132 = sbr.rel (%p129) target = $region12
    $region11: #{_lambda_.10} parent=5 // pred_region
      %s133 = ssub.s32 %s9, 1
      // Predicated region
      $region13: #{_lambda_.10} parent=11 // pred_check
        %p134 = pneg %p70
      $region14: #{_lambda_.10} parent=11 // pred_check_branch
        %136 = sbr.rel (%p134) target = $region16
      $region15: #{_lambda_.10} parent=11 // pred_region
        _
      $region16: #{_lambda_.10} parent=11 // pred_fallthru
        _
      // Predicated region
      $region17: #{_lambda_.10} parent=11 // pred_check
        %p137 = pneg %p91
      $region18: #{_lambda_.10} parent=11 // pred_check_branch
        %139 = sbr.rel (%p137) target = $region20
      $region19: #{_lambda_.10} parent=11 // pred_region
        _
      $region20: #{_lambda_.10} parent=11 // pred_fallthru
        _
    $region12: #{_lambda_.10} parent=5 // pred_fallthru
      _
    %p140 = scmp.lt.s32.totalorder %s9, 2
    // Predicated region
    $region21: #{_lambda_.10} parent=5 // pred_check
      %p141 = pneg %p140
    $region22: #{_lambda_.10} parent=5 // pred_check_branch
      %143 = sbr.rel (%p141) target = $region24
    $region23: #{_lambda_.10} parent=5 // pred_region
      // Predicated region
      $region25: #{_lambda_.10} parent=23 // pred_check
        %p144 = pneg %p43
      $region26: #{_lambda_.10} parent=23 // pred_check_branch
        %146 = sbr.rel (%p144) target = $region28
      $region27: #{_lambda_.10} parent=23 // pred_region
        %p147 = scmp.lt.s32.totalorder %s16, 1
        %s148 = scalar_select %p147, %s16, 1
        %p149 = scmp.lt.s32.totalorder %s17, 0
        %s150 = scalar_select %p149, %s17, 0
        %s151 = smul.addr %s148, 4
        %s152 = sadd.s32 %s150, %s151
        %s153 = smul.addr %s152, 8
        %s154 = scalar_lea.vmem %s0, %s153
      $region28: #{_lambda_.10} parent=23 // pred_fallthru
        _
    $region24: #{_lambda_.10} parent=5 // pred_fallthru
      _
    %p155 = scmp.le.s32.totalorder 1, %s9
    %p156 = scmp.lt.s32.totalorder %s9, 3
    %p157 = pnand %p155, %p156
    %p158 = pneg %p157
    // Predicated region
    $region29: #{_lambda_.10} parent=5 // pred_check
      _
    $region30: #{_lambda_.10} parent=5 // pred_check_branch
      %160 = sbr.rel (%p157) target = $region32
    $region31: #{_lambda_.10} parent=5 // pred_region
      %s161 = ssub.s32 %s9, 1
      %p162 = scmp.lt.s32.totalorder %s18, 1
      %s163 = scalar_select %p162, %s18, 1
      %p164 = scmp.lt.s32.totalorder %s19, 0
      %s165 = scalar_select %p164, %s19, 0
      %s166 = smul.addr %s163, 4
      %s167 = sadd.s32 %s165, %s166
      %s168 = smul.addr %s167, 8
      %s169 = scalar_lea.vmem %s0, %s168
      %p170 = pneg %p49
      %p171 = pneg %p46
      %p172 = pneg %p70
      %p173 = pneg %p67
      %p174 = pneg %p91
      %p175 = pneg %p88
      %p176 = pneg %p119
      %p177 = pneg %p116
      %p178 = scmp.lt.s32.totalorder %s18, 1
      %s179 = scalar_select %p178, %s18, 1
      %p180 = scmp.lt.s32.totalorder %s19, 0
      %s181 = scalar_select %p180, %s19, 0
      %s182 = smul.addr %s179, 2
      %s183 = sadd.s32 %s181, %s182
      %s184 = smul.addr %s183, 8
      %s185 = scalar_lea.vmem %s3, %s184
      %p186 = scmp.lt.s32.totalorder %s18, 1
      %s187 = scalar_select %p186, %s18, 1
      %p188 = scmp.lt.s32.totalorder %s19, 0
      %s189 = scalar_select %p188, %s19, 0
      %s190 = smul.addr %s187, 4
      %s191 = sadd.s32 %s189, %s190
      %s192 = smul.addr %s191, 8
      %s193 = scalar_lea.vmem %s0, %s192
      %p194 = scmp.lt.s32.totalorder %s18, 1
      %s195 = scalar_select %p194, %s18, 1
      %p196 = scmp.lt.s32.totalorder %s19, 0
      %s197 = scalar_select %p196, %s19, 0
      %s198 = smul.addr %s195, 2
      %s199 = sadd.s32 %s197, %s198
      %s200 = smul.addr %s199, 8
      %s201 = scalar_lea.vmem %s3, %s200
      %v202 = vld [vmem:[%s193] sm:$0xff]
      %v203 = vld [vmem:[%s193 + $0x8] sm:$0xff]
      %v204 = vld [vmem:[%s193 + $0x10] sm:$0xff]
      %v205 = vld [vmem:[%s193 + $0x18] sm:$0xff]
      %v206 = vld [vmem:[%s1] sm:$0xff]
      %v207 = vld [vmem:[%s1 + $0x8] sm:$0xff]
      %v208 = vld [vmem:[%s2] sm:$0xff]
      %v209 = vld [vmem:[%s2 + $0x8] sm:$0xff]
      %211 = vset.pattern.permute.xlu0 0
      %212 = vperm.xlu0 %211, %v208
      %v213 = vpop.permute.xlu0 %212
      %216 = vset.pattern.permute.xlu0 0
      %217 = vperm.xlu0 %216, %v209
      %v218 = vpop.permute.xlu0 %217
      %vm220 = vcmask 261120
      %v222 = vsel %vm220, %v206, 0
      %v225 = vsel %vm220, %v207, 0
      %227 = vmatprep.subr.mxu0 0.0
      %228 = vmatpush1.msra.mxu0 0.0
      %229 = vmatprep.subr.mxu0 0.0
      %230 = vmatpush1.msra.mxu0 0.0
      %231 = vmatprep.subr.mxu0 0.0
      %232 = vmatpush1.msra.mxu0 0.0
      %233 = vmatprep.subr.mxu0 0.0
      %234 = vmatpush1.msra.mxu0 0.0
      %235 = vmatprep.subr.mxu0 0.0
      %236 = vmatpush1.msra.mxu0 0.0
      %237 = vmatprep.subr.mxu0 0.0
      %238 = vmatpush1.msra.mxu0 0.0
      %239 = vmatprep.subr.mxu0 0.0
      %240 = vmatpush1.msra.mxu0 0.0
      %241 = vmatprep.subr.mxu0 0.0
      %242 = vmatpush1.msra.mxu0 0.0
      %243 = vmatprep.subr.mxu0 0.0
      %244 = vmatpush1.msra.mxu0 0.0
      %245 = vmatprep.subr.mxu0 0.0
      %246 = vmatpush1.msra.mxu0 0.0
      %247 = vmatprep.subr.mxu0 0.0
      %248 = vmatpush1.msra.mxu0 0.0
      %249 = vmatprep.subr.mxu0 0.0
      %250 = vmatpush1.msra.mxu0 0.0
      %251 = vmatprep.subr.mxu0 0.0
      %252 = vmatpush1.msra.mxu0 %v205
      %253 = vmatprep.subr.mxu0 0.0
      %254 = vmatpush1.msra.mxu0 %v204
      %255 = vmatprep.subr.mxu0 0.0
      %256 = vmatpush1.msra.mxu0 %v203
      %257 = vmatprep.subr.mxu0 0.0
      %258 = vmatpush1.msra.mxu0 %v202
      %259 = vmatprep.subr.mxu0 0.0
      %260 = vmatpush2.msra.mxu0 0.0
      %261 = vmatprep.subr.mxu0 0.0
      %262 = vmatpush2.msra.mxu0 0.0
      %263 = vmatprep.subr.mxu0 0.0
      %264 = vmatpush2.msra.mxu0 0.0
      %265 = vmatprep.subr.mxu0 0.0
      %266 = vmatpush2.msra.mxu0 0.0
      %267 = vmatprep.subr.mxu0 0.0
      %268 = vmatpush2.msra.mxu0 0.0
      %269 = vmatprep.subr.mxu0 0.0
      %270 = vmatpush2.msra.mxu0 0.0
      %271 = vmatprep.subr.mxu0 0.0
      %272 = vmatpush2.msra.mxu0 0.0
      %273 = vmatprep.subr.mxu0 0.0
      %274 = vmatpush2.msra.mxu0 0.0
      %275 = vmatprep.subr.mxu0 0.0
      %276 = vmatpush2.msra.mxu0 0.0
      %277 = vmatprep.subr.mxu0 0.0
      %278 = vmatpush2.msra.mxu0 0.0
      %279 = vmatprep.subr.mxu0 0.0
      %280 = vmatpush2.msra.mxu0 0.0
      %281 = vmatprep.subr.mxu0 0.0
      %282 = vmatpush2.msra.mxu0 0.0
      %283 = vmatprep.subr.mxu0 0.0
      %284 = vmatpush2.msra.mxu0 0.0
      %285 = vmatprep.subr.mxu0 0.0
      %286 = vmatpush2.msra.mxu0 0.0
      %287 = vmatprep.subr.mxu0 0.0
      %288 = vmatpush2.msra.mxu0 0.0
      %289 = vmatprep.subr.mxu0 0.0
      %290 = vmatpush2.msra.mxu0 0.0
      %291 = vmatprep.mubr.f32.mxu0 0.0
      %292 = vmatmul.mubr.f32.gmra.mxu0 %v222
      %v293 = vpop.f32.mrf.mxu0
      %v294 = vadd.f32 %v213, %v293
      %v295 = vpop.f32.mrf.mxu0
      %296 = vmatprep.mubr.f32.mxu0 0.0
      %297 = vmatmul.mubr.f32.gmra.mxu0 %v225
      %v298 = vpop.f32.mrf.mxu0
      %v299 = vadd.f32 %v218, %v298
      %v300 = vpop.f32.mrf.mxu0
      %301 = vdwg.mxu0
      %vm302 = vcmask 523264
      %303 = vst.msk [vmem:[%s201] sm:$0xff] %vm302, %v294
      %304 = vst.msk [vmem:[%s201 + $0x8] sm:$0xff] %vm302, %v299
      %p305 = scmp.lt.s32.totalorder %s18, 1
      %s306 = scalar_select %p305, %s18, 1
      %p307 = scmp.lt.s32.totalorder %s19, 0
      %s308 = scalar_select %p307, %s19, 0
      %s309 = smul.addr %s306, 2
      %s310 = sadd.s32 %s308, %s309
      %s311 = smul.addr %s310, 8
      %s312 = scalar_lea.vmem %s3, %s311
      // Predicated region
      $region33: #{_lambda_.10} parent=31 // pred_check
        %p313 = pneg %p116
      $region34: #{_lambda_.10} parent=31 // pred_check_branch
        %315 = sbr.rel (%p313) target = $region36
      $region35: #{_lambda_.10} parent=31 // pred_region
        _
      $region36: #{_lambda_.10} parent=31 // pred_fallthru
        _
    $region32: #{_lambda_.10} parent=5 // pred_fallthru
      _
    %p316 = scmp.le.s32.totalorder 2, %s9
    // Predicated region
    $region37: #{_lambda_.10} parent=5 // pred_check
      %p317 = pneg %p316
    $region38: #{_lambda_.10} parent=5 // pred_check_branch
      %319 = sbr.rel (%p317) target = $region40
    $region39: #{_lambda_.10} parent=5 // pred_region
      %s320 = ssub.s32 %s9, 2
      // Predicated region
      $region41: #{_lambda_.10} parent=39 // pred_check
        %p321 = pneg %p122
      $region42: #{_lambda_.10} parent=39 // pred_check_branch
        %323 = sbr.rel (%p321) target = $region44
      $region43: #{_lambda_.10} parent=39 // pred_region
        %p324 = scmp.lt.s32.totalorder %s20, 1
        %s325 = scalar_select %p324, %s20, 1
        %p326 = scmp.lt.s32.totalorder %s21, 0
        %s327 = scalar_select %p326, %s21, 0
        %s328 = smul.addr %s325, 2
        %s329 = sadd.s32 %s327, %s328
        %s330 = smul.addr %s329, 8
        %s331 = scalar_lea.vmem %s3, %s330
      $region44: #{_lambda_.10} parent=39 // pred_fallthru
        _
    $region40: #{_lambda_.10} parent=5 // pred_fallthru
      _
  $region6: #{_lambda_.10} parent=0 // loop_footer
    %s13 = sadd.s32 1, %s9
  $region7: #{_lambda_.10} parent=0 // loop_footer_branch
    %8 = sbr.rel target = $region3
  $region8: #{_lambda_.10} parent=0 // loop_exit
    _

// kernel: _lambda_.12
$region0: #{_lambda_.12}
  #allocation0 [shape = 'u32[]', space=smem, size = 0x4, offset = 0x4, fixed_abs, tag = 'smem constant byte address 0x4 - core index']
  #allocation1 [shape = 'u32[144,128]{1,0:T(1,128)}', space=vmem, size = 0x12000, scoped, tag = 'internal scratch']
  %s0 = inlined_call_operand.vmem [shape: f32[3,2,16,256], index: 0, kind: input, shape index: {}]
  %s1 = inlined_call_operand.vmem [shape: f32[2,16,256], index: 1, kind: output, shape index: {}]
  %s2 = sld [smem:[#allocation0]]
  $region60: #{_lambda_.12} parent=0
    _
  %s4 = ssub.s32 1, %s2
  %s5 = scalar_select 0, %s4, %s2
  $region1: #{_lambda_.12} parent=0
    #allocation2 [shape = 'u8[98304]{0}', space=vmem, size = 0x18000, scoped, tag = 'input window, operand 0']
    loop: start=0, step=1, limit=4
    $region2: #{_lambda_.12} parent=1 // loop_pre_header
      _
    $region3: #{_lambda_.12} parent=1 // loop_header
      %s7 = sphi 0, %s11
      %p8 = scmp.ge.s32.totalorder %s7, 4
      %s14 = sphi 0, %s26
      %s15 = sphi 0, %s22
      %s16 = sphi 0, %s14
      %s17 = sphi 0, %s15
      %s18 = sphi 0, %s16
      %s19 = sphi 0, %s17
      %s31 = sphi 0, %s33
      %s34 = sphi 0, %s31
      %s35 = sphi 0, %s34
      %s51 = sphi 0, %s35
      %s59 = sphi 0, %s61
      %s62 = sphi 0, %s59
      %s63 = sphi 0, %s62
      %s79 = sphi 0, %s63
    $region4: #{_lambda_.12} parent=1 // loop_header_branch
      %10 = sbr.rel (%p8) target = $region8
    $region5: #{_lambda_.12} parent=1 // loop_body
      %s12 = ssub.s32 %s7, 1
      %s13 = ssub.s32 %s7, 2
      %s20 = sadd.s32 1, %s15
      %p21 = scmp.ge.s32.totalorder %s20, 1
      %s22 = scalar_select %p21, 0, %s20
      %s23 = sadd.s32 1, %s14
      %s24 = scalar_select %p21, %s23, %s14
      %p25 = scmp.ge.s32.totalorder %s24, 2
      %s26 = scalar_select %p25, 0, %s24
      %s27 = ssub.s32 %s14, %s26
      %s28 = ssub.s32 %s15, %s22
      %s29 = sor.u32 %s27, %s28
      %p30 = scmp.eq.s32.totalorder %s29, 0
      %s32 = sadd.s32 %s31, 1
      %s33 = scalar_select %p30, %s31, %s32
      %p36 = pneg %p30
      %p37 = scmp.eq.s32.totalorder %s7, 1
      %p38 = por %p36, %p37
      %p39 = scmp.ne.s32.totalorder %s31, %s34
      %p40 = scmp.eq.s32.totalorder %s7, 0
      %p41 = por %p39, %p40
      %p42 = scmp.ne.s32.totalorder %s31, %s34
      %p43 = scmp.eq.s32.totalorder %s12, 1
      %p44 = por %p42, %p43
      %p45 = scmp.ne.s32.totalorder %s34, %s35
      %p46 = scmp.eq.s32.totalorder %s12, 0
      %p47 = por %p45, %p46
      %p48 = scmp.ne.s32.totalorder %s34, %s35
      %p49 = scmp.eq.s32.totalorder %s13, 1
      %p50 = por %p48, %p49
      %p52 = scmp.ne.s32.totalorder %s35, %s51
      %p53 = scmp.eq.s32.totalorder %s13, 0
      %p54 = por %p52, %p53
      %s55 = ssub.s32 %s14, %s26
      %s56 = ssub.s32 %s15, %s22
      %s57 = sor.u32 %s55, %s56
      %p58 = scmp.eq.s32.totalorder %s57, 0
      %s60 = sadd.s32 %s59, 1
      %s61 = scalar_select %p58, %s59, %s60
      %p64 = pneg %p58
      %p65 = scmp.eq.s32.totalorder %s7, 1
      %p66 = por %p64, %p65
      %p67 = scmp.ne.s32.totalorder %s59, %s62
      %p68 = scmp.eq.s32.totalorder %s7, 0
      %p69 = por %p67, %p68
      %p70 = scmp.ne.s32.totalorder %s59, %s62
      %p71 = scmp.eq.s32.totalorder %s12, 1
      %p72 = por %p70, %p71
      %p73 = scmp.ne.s32.totalorder %s62, %s63
      %p74 = scmp.eq.s32.totalorder %s12, 0
      %p75 = por %p73, %p74
      %p76 = scmp.ne.s32.totalorder %s62, %s63
      %p77 = scmp.eq.s32.totalorder %s13, 1
      %p78 = por %p76, %p77
      %p80 = scmp.ne.s32.totalorder %s63, %s79
      %p81 = scmp.eq.s32.totalorder %s13, 0
      %p82 = por %p80, %p81
      %p83 = scmp.le.s32.totalorder 1, %s7
      %p84 = scmp.lt.s32.totalorder %s7, 3
      %p85 = pnand %p83, %p84
      %p86 = pneg %p85
      // Predicated region
      $region9: #{_lambda_.12} parent=5 // pred_check
        _
      $region10: #{_lambda_.12} parent=5 // pred_check_branch
        %88 = sbr.rel (%p85) target = $region12
      $region11: #{_lambda_.12} parent=5 // pred_region
        %s89 = ssub.s32 %s7, 1
      $region12: #{_lambda_.12} parent=5 // pred_fallthru
        _
      %p90 = scmp.lt.s32.totalorder %s7, 2
      // Predicated region
      $region13: #{_lambda_.12} parent=5 // pred_check
        %p91 = pneg %p90
      $region14: #{_lambda_.12} parent=5 // pred_check_branch
        %93 = sbr.rel (%p91) target = $region16
      $region15: #{_lambda_.12} parent=5 // pred_region
        // Predicated region
        $region17: #{_lambda_.12} parent=15 // pred_check
          %p94 = pneg %p41
        $region18: #{_lambda_.12} parent=15 // pred_check_branch
          %96 = sbr.rel (%p94) target = $region20
        $region19: #{_lambda_.12} parent=15 // pred_region
          %s97 = sand.u32 %s31, 1
          %s98 = sand.u32 %s31, 1
          %s99 = smul.addr %s98, 96
          %s100 = scalar_lea.vmem [#allocation2], %s99
          %s101 = smul.u32 2, %s15
          %s102 = smul.addr %s14, 4
          %s103 = sadd.s32 %s101, %s102
          %s104 = smul.addr %s103, 8
          %s105 = scalar_lea.vmem %s0, %s104
          // Predicated region
          $region21: #{_lambda_.12} parent=19 // pred_check
            _
          $region22: #{_lambda_.12} parent=19 // pred_check_branch
            %107 = sbr.rel (0) target = $region24
          $region23: #{_lambda_.12} parent=19 // pred_region
            // Predicated region
            $region25: #{_lambda_.12} parent=23 // pred_check
              _
            $region26: #{_lambda_.12} parent=23 // pred_check_branch
              %109 = sbr.rel (0) target = $region28
            $region27: #{_lambda_.12} parent=23 // pred_region
              loop: start=0, step=1, limit=1
              $region29: #{_lambda_.12} parent=27 // loop_pre_header
                _
              $region30: #{_lambda_.12} parent=27 // loop_header
                %s111 = sphi 0, %s115
                %p112 = scmp.ge.s32.totalorder %s111, 1
                %s116 = sphi %s105, %s105
                %s117 = sphi %s100, %s100
              $region31: #{_lambda_.12} parent=27 // loop_header_branch
                %114 = sbr.rel (%p112) target = $region35
              $region32: #{_lambda_.12} parent=27 // loop_body
                %v118 = vld [vmem:[%s116] sm:$0xff]
                %119 = vst [vmem:[%s117] sm:$0xff] %v118
                %v120 = vld [vmem:[%s116 + $0x8] sm:$0xff]
                %121 = vst [vmem:[%s117 + $0x8] sm:$0xff] %v120
                %v122 = vld [vmem:[%s116 + $0x10] sm:$0xff]
                %123 = vst [vmem:[%s117 + $0x10] sm:$0xff] %v122
                %v124 = vld [vmem:[%s116 + $0x18] sm:$0xff]
                %125 = vst [vmem:[%s117 + $0x18] sm:$0xff] %v124
                %v126 = vld [vmem:[%s116 + $0x40] sm:$0xff]
                %127 = vst [vmem:[%s117 + $0x20] sm:$0xff] %v126
                %v128 = vld [vmem:[%s116 + $0x48] sm:$0xff]
                %129 = vst [vmem:[%s117 + $0x28] sm:$0xff] %v128
                %v130 = vld [vmem:[%s116 + $0x50] sm:$0xff]
                %131 = vst [vmem:[%s117 + $0x30] sm:$0xff] %v130
                %v132 = vld [vmem:[%s116 + $0x58] sm:$0xff]
                %133 = vst [vmem:[%s117 + $0x38] sm:$0xff] %v132
                %v134 = vld [vmem:[%s116 + $0x80] sm:$0xff]
                %135 = vst [vmem:[%s117 + $0x40] sm:$0xff] %v134
                %v136 = vld [vmem:[%s116 + $0x88] sm:$0xff]
                %137 = vst [vmem:[%s117 + $0x48] sm:$0xff] %v136
                %v138 = vld [vmem:[%s116 + $0x90] sm:$0xff]
                %139 = vst [vmem:[%s117 + $0x50] sm:$0xff] %v138
                %v140 = vld [vmem:[%s116 + $0x98] sm:$0xff]
                %141 = vst [vmem:[%s117 + $0x58] sm:$0xff] %v140
              $region33: #{_lambda_.12} parent=27 // loop_footer
                %s115 = sadd.s32 1, %s111
              $region34: #{_lambda_.12} parent=27 // loop_footer_branch
                %110 = sbr.rel target = $region30
              $region35: #{_lambda_.12} parent=27 // loop_exit
                _
            $region28: #{_lambda_.12} parent=23 // pred_fallthru
              _
            // Predicated region
            $region36: #{_lambda_.12} parent=23 // pred_check
              _
            $region37: #{_lambda_.12} parent=23 // pred_check_branch
              %143 = sbr.rel target = $region39
            $region38: #{_lambda_.12} parent=23 // pred_region
              _
            $region39: #{_lambda_.12} parent=23 // pred_fallthru
              _
          $region24: #{_lambda_.12} parent=19 // pred_fallthru
            _
          %144 = vnop
        $region20: #{_lambda_.12} parent=15 // pred_fallthru
          _
      $region16: #{_lambda_.12} parent=5 // pred_fallthru
        _
      %p145 = scmp.le.s32.totalorder 1, %s7
      %p146 = scmp.lt.s32.totalorder %s7, 3
      %p147 = pnand %p145, %p146
      %p148 = pneg %p147
      // Predicated region
      $region40: #{_lambda_.12} parent=5 // pred_check
        _
      $region41: #{_lambda_.12} parent=5 // pred_check_branch
        %150 = sbr.rel (%p147) target = $region43
      $region42: #{_lambda_.12} parent=5 // pred_region
        %s151 = ssub.s32 %s7, 1
        %s152 = sand.u32 %s34, 1
        %s153 = sand.u32 %s34, 1
        %s154 = smul.addr %s153, 96
        %s155 = scalar_lea.vmem [#allocation2], %s154
        // Predicated region
        $region44: #{_lambda_.12} parent=42 // pred_check
          %p156 = pneg %p47
        $region45: #{_lambda_.12} parent=42 // pred_check_branch
          %158 = sbr.rel (%p156) target = $region47
        $region46: #{_lambda_.12} parent=42 // pred_region
          _
        $region47: #{_lambda_.12} parent=42 // pred_fallthru
          _
        %s159 = sand.u32 %s34, 1
        %s160 = sand.u32 %s34, 1
        %s161 = smul.addr %s160, 96
        %s162 = scalar_lea.vmem [#allocation2], %s161
        %p163 = pneg %p47
        %p164 = pneg %p44
        %p165 = pneg %p75
        %p166 = pneg %p72
        %s167 = smul.u32 2, %s17
        %p168 = scmp.lt.s32.totalorder %s16, 1
        %s169 = scalar_select %p168, %s16, 1
        %p170 = scmp.lt.s32.totalorder %s167, 1
        %s171 = scalar_select %p170, %s167, 1
        %s172 = smul.addr %s169, 4
        %s173 = sadd.s32 %s171, %s172
        %s174 = smul.addr %s173, 8
        %s175 = scalar_lea.vmem %s1, %s174
        %s176 = smul.u32 2, %s17
        %s177 = smul.u32 2, %s17
        %p178 = scmp.lt.s32.totalorder %s16, 1
        %s179 = scalar_select %p178, %s16, 1
        %p180 = scmp.lt.s32.totalorder %s177, 1
        %s181 = scalar_select %p180, %s177, 1
        %s182 = smul.addr %s179, 4
        %s183 = sadd.s32 %s181, %s182
        %s184 = smul.addr %s183, 8
        %s185 = scalar_lea.vmem %s1, %s184
        %s186 = smul.u32 2, %s17
        %v187 = vld [vmem:[%s155] sm:$0xff]
        %v188 = vld [vmem:[%s155 + $0x8] sm:$0xff]
        %v189 = vld [vmem:[%s155 + $0x10] sm:$0xff]
        %v190 = vld [vmem:[%s155 + $0x18] sm:$0xff]
        %v191 = vld [vmem:[%s155 + $0x20] sm:$0xff]
        %v192 = vld [vmem:[%s155 + $0x28] sm:$0xff]
        %v193 = vld [vmem:[%s155 + $0x30] sm:$0xff]
        %v194 = vld [vmem:[%s155 + $0x38] sm:$0xff]
        %v195 = vld [vmem:[%s155 + $0x40] sm:$0xff]
        %v196 = vld [vmem:[%s155 + $0x48] sm:$0xff]
        %v197 = vld [vmem:[%s155 + $0x50] sm:$0xff]
        %v198 = vld [vmem:[%s155 + $0x58] sm:$0xff]
        %v199 = vadd.f32 %v187, %v191
        %v200 = vadd.f32 %v199, %v195
        %v201 = vadd.f32 %v188, %v192
        %v202 = vadd.f32 %v201, %v196
        %v203 = vadd.f32 %v189, %v193
        %v204 = vadd.f32 %v203, %v197
        %v205 = vadd.f32 %v190, %v194
        %v206 = vadd.f32 %v205, %v198
        %v207 = vadd.f32 %v200, 3.0
        %v208 = vadd.f32 %v202, 3.0
        %v209 = vadd.f32 %v204, 3.0
        %v210 = vadd.f32 %v206, 3.0
        %v211 = vmax.f32 %v207, 0.0
        %v212 = vmax.f32 %v208, 0.0
        %v213 = vmax.f32 %v209, 0.0
        %v214 = vmax.f32 %v210, 0.0
        %v215 = vmin.f32 %v211, 6.0
        %v216 = vmin.f32 %v212, 6.0
        %v217 = vmin.f32 %v213, 6.0
        %v218 = vmin.f32 %v214, 6.0
        %v219 = vmul.f32 %v200, %v215
        %v220 = vmul.f32 %v202, %v216
        %v221 = vmul.f32 %v204, %v217
        %v222 = vmul.f32 %v206, %v218
        %v223 = vmul.f32 %v219, 0.16666667
        %v224 = vmul.f32 %v220, 0.16666667
        %v225 = vmul.f32 %v221, 0.16666667
        %v226 = vmul.f32 %v222, 0.16666667
        %227 = vst [vmem:[%s185] sm:$0xff] %v223
        %228 = vst [vmem:[%s185 + $0x8] sm:$0xff] %v224
        %229 = vst [vmem:[%s185 + $0x10] sm:$0xff] %v225
        %230 = vst [vmem:[%s185 + $0x18] sm:$0xff] %v226
        %s231 = smul.u32 2, %s17
        %p232 = scmp.lt.s32.totalorder %s16, 1
        %s233 = scalar_select %p232, %s16, 1
        %p234 = scmp.lt.s32.totalorder %s231, 1
        %s235 = scalar_select %p234, %s231, 1
        %s236 = smul.addr %s233, 4
        %s237 = sadd.s32 %s235, %s236
        %s238 = smul.addr %s237, 8
        %s239 = scalar_lea.vmem %s1, %s238
        // Predicated region
        $region48: #{_lambda_.12} parent=42 // pred_check
          %p240 = pneg %p72
        $region49: #{_lambda_.12} parent=42 // pred_check_branch
          %242 = sbr.rel (%p240) target = $region51
        $region50: #{_lambda_.12} parent=42 // pred_region
          %s243 = smul.u32 2, %s17
        $region51: #{_lambda_.12} parent=42 // pred_fallthru
          _
      $region43: #{_lambda_.12} parent=5 // pred_fallthru
        _
      %p244 = scmp.le.s32.totalorder 2, %s7
      // Predicated region
      $region52: #{_lambda_.12} parent=5 // pred_check
        %p245 = pneg %p244
      $region53: #{_lambda_.12} parent=5 // pred_check_branch
        %247 = sbr.rel (%p245) target = $region55
      $region54: #{_lambda_.12} parent=5 // pred_region
        %s248 = ssub.s32 %s7, 2
        // Predicated region
        $region56: #{_lambda_.12} parent=54 // pred_check
          %p249 = pneg %p78
        $region57: #{_lambda_.12} parent=54 // pred_check_branch
          %251 = sbr.rel (%p249) target = $region59
        $region58: #{_lambda_.12} parent=54 // pred_region
          %s252 = smul.u32 2, %s19
          %p253 = scmp.lt.s32.totalorder %s18, 1
          %s254 = scalar_select %p253, %s18, 1
          %p255 = scmp.lt.s32.totalorder %s252, 1
          %s256 = scalar_select %p255, %s252, 1
          %s257 = smul.addr %s254, 4
          %s258 = sadd.s32 %s256, %s257
          %s259 = smul.addr %s258, 8
          %s260 = scalar_lea.vmem %s1, %s259
        $region59: #{_lambda_.12} parent=54 // pred_fallthru
          _
      $region55: #{_lambda_.12} parent=5 // pred_fallthru
        _
    $region6: #{_lambda_.12} parent=1 // loop_footer
      %s11 = sadd.s32 1, %s7
    $region7: #{_lambda_.12} parent=1 // loop_footer_branch
      %6 = sbr.rel target = $region3
    $region8: #{_lambda_.12} parent=1 // loop_exit
      _

</llo_original>
